<compile_context>
chip_gen: v6e
topology: v6e:2x2x1
jax: 0.10.0
libtpu: 0.0.40
codegen_flags: <defaults>
</compile_context>

<pallas_src>
import math

import jax
import jax.numpy as jnp
from jax import lax
from jax.experimental import pallas as pl
from jax.experimental.pallas import tpu as pltpu  # noqa: F401  (kept for TPU-specific tuning hooks)

# ------------------------- configuration (small test shapes) -------------------------
QUERY_DIM = 32        # query_dim
CONTEXT_DIM = 16      # context_dim
HEADS = 4             # n_heads
HEAD_DIM = 8          # d_head  (inner attention dim = HEADS*HEAD_DIM = 32 = QUERY_DIM)
INNER = HEADS * HEAD_DIM
FF_INNER = 4 * QUERY_DIM          # FeedForward inner dim (mult=4) = 128
N_VISUAL = 8
N_OBJS = 8
BATCH = 2
EPS = 1e-5                        # nn.LayerNorm default


def _layer_norm(x, w, b):
    # PyTorch nn.LayerNorm: biased variance over last dim, eps inside rsqrt.
    mu = jnp.mean(x, axis=-1, keepdims=True)
    var = jnp.mean(jnp.square(x - mu), axis=-1, keepdims=True)
    return (x - mu) * lax.rsqrt(var + EPS) * w + b


def _gelu_exact(x):
    # F.gelu default (exact, erf-based) as used by diffusers GEGLU.
    return 0.5 * x * (1.0 + lax.erf(x * 0.7071067811865475))


def gated_self_attention_kernel(
    x_ref,                    # (B*NV, D)
    objs_ref,                 # (B*NO, Dctx)
    wl_ref, bl_ref,           # (Dctx, D), (1, D)            objs linear
    ln1_w_ref, ln1_b_ref,     # (1, D)
    wqkv_ref,                 # (D, 3*INNER)  = [Wq*scale | Wk | Wv]
    wo_ref, bo_ref,           # (INNER, D), (1, D)           pre-scaled by tanh(alpha_attn)
    ln2_w_ref, ln2_b_ref,     # (1, D)
    wg_ref, bg_ref,           # (D, 2*FF_INNER), (1, 2*FF_INNER)
    w2_ref, b2_ref,           # (FF_INNER, D), (1, D)        pre-scaled by tanh(alpha_dense)
    o_ref,                    # (B*NV, D)
):
    x = x_ref[...]                                                            # (B*NV, D)

    # objs = self.linear(objs): per-token, batch-independent -> one fused matmul.
    objs_p = (jnp.dot(objs_ref[...], wl_ref[...], preferred_element_type=jnp.float32)
              + bl_ref[...])                                                  # (B*NO, D)

    # norm1 over cat([x, objs], seq) == per-token LN on each part (same weights).
    n_x = _layer_norm(x, ln1_w_ref[...], ln1_b_ref[...])
    n_o = _layer_norm(objs_p, ln1_w_ref[...], ln1_b_ref[...])

    # Stack [x_b0; objs_b0; x_b1; objs_b1] along sublanes (all 8-row aligned blocks),
    # then ONE fused QKV projection instead of three matmuls.
    parts = []
    for b in range(BATCH):
        parts.append(n_x[b * N_VISUAL:(b + 1) * N_VISUAL])
        parts.append(n_o[b * N_OBJS:(b + 1) * N_OBJS])
    seq = jnp.concatenate(parts, axis=0)                                      # (B*L, D)
    qkv = jnp.dot(seq, wqkv_ref[...], preferred_element_type=jnp.float32)     # (B*L, 3*INNER)

    L = N_VISUAL + N_OBJS
    attn_rows = []
    for b in range(BATCH):                     # static loop: B=2
        base = b * L
        acc = None
        for h in range(HEADS):                 # static loop: H=4
            # Only visual rows need queries (output is sliced to [:n_visual]).
            qh = qkv[base:base + N_VISUAL, h * HEAD_DIM:(h + 1) * HEAD_DIM]               # (NV, Dh)
            kh = qkv[base:base + L, INNER + h * HEAD_DIM:INNER + (h + 1) * HEAD_DIM]      # (L, Dh)
            vh = qkv[base:base + L, 2 * INNER + h * HEAD_DIM:2 * INNER + (h + 1) * HEAD_DIM]

            # scores: contract last dims directly (no kh.T transpose); Wq already scaled.
            s = lax.dot_general(qh, kh, (((1,), (1,)), ((), ())),
                                preferred_element_type=jnp.float32)            # (NV, L)
            s = s - jnp.max(s, axis=-1, keepdims=True)
            p = jnp.exp(s)
            p = p * pl.reciprocal(jnp.sum(p, axis=-1, keepdims=True), approx=True)

            oh = jnp.dot(p, vh, preferred_element_type=jnp.float32)            # (NV, Dh)
            # Accumulate through sublane-aligned 8-row blocks of Wo (no lane concat).
            contrib = jnp.dot(oh, wo_ref[h * HEAD_DIM:(h + 1) * HEAD_DIM, :],
                              preferred_element_type=jnp.float32)              # (NV, D)
            acc = contrib if acc is None else acc + contrib
        attn_rows.append(acc)
    attn = jnp.concatenate(attn_rows, axis=0)                                  # (B*NV, D)

    # residual 1 (tanh(alpha_attn) already folded into Wo/bo)
    h1 = x + attn + bo_ref[...]

    # ---------------- norm2 + GEGLU feed-forward ----------------
    n2 = _layer_norm(h1, ln2_w_ref[...], ln2_b_ref[...])
    proj = jnp.dot(n2, wg_ref[...], preferred_element_type=jnp.float32) + bg_ref[...]  # (B*NV, 2*FI)
    hidden = proj[:, :FF_INNER]          # 128-lane aligned split: free
    gate = proj[:, FF_INNER:]
    ff = (jnp.dot(hidden * _gelu_exact(gate), w2_ref[...],
                  preferred_element_type=jnp.float32) + b2_ref[...])

    # residual 2 (tanh(alpha_dense) already folded into W2/b2)
    o_ref[...] = (h1 + ff).astype(o_ref.dtype)


def gated_self_attention(x, objs, params):
    """x: (B, n_visual, query_dim); objs: (B, n_objs, context_dim); params: raw module params."""
    (w_lin, b_lin, ln1_w, ln1_b, wq, wk, wv, wo, bo,
     ln2_w, ln2_b, wg, bg, w2, b2, alpha_attn, alpha_dense) = params

    B, NV, D = x.shape
    _, NO, Dctx = objs.shape

    # ---- static, weight-only transforms (zero per-call cost on activations) ----
    scale = 1.0 / math.sqrt(HEAD_DIM)
    wqkv = jnp.concatenate([wq * scale, wk, wv], axis=1)          # (D, 3*INNER)
    ta = jnp.tanh(alpha_attn)
    td = jnp.tanh(alpha_dense)
    wo_s, bo_s = wo * ta, (bo * ta).reshape(1, D)
    w2_s, b2_s = w2 * td, (b2 * td).reshape(1, D)

    out_flat = pl.pallas_call(
        gated_self_attention_kernel,
        out_shape=jax.ShapeDtypeStruct((B * NV, D), x.dtype),
        # Single invocation, no grid: whole (tiny) working set lives in VMEM;
        # batch is folded onto the sublane axis inside the kernel.
    )(
        x.reshape(B * NV, D),
        objs.reshape(B * NO, Dctx),
        w_lin, b_lin.reshape(1, D),
        ln1_w.reshape(1, D), ln1_b.reshape(1, D),
        wqkv,
        wo_s, bo_s,
        ln2_w.reshape(1, D), ln2_b.reshape(1, D),
        wg, bg.reshape(1, 2 * FF_INNER),
        w2_s, b2_s,
    )
    return out_flat.reshape(B, NV, D)


# ---------------- pure-JAX reference (same math, for verification) ----------------
def reference_forward(x, objs, params):
    (w_lin, b_lin, ln1_w, ln1_b, wq, wk, wv, wo, bo,
     ln2_w, ln2_b, wg, bg, w2, b2, alpha_attn, alpha_dense) = params

    def ln(v, w, b):
        mu = jnp.mean(v, axis=-1, keepdims=True)
        var = jnp.mean(jnp.square(v - mu), axis=-1, keepdims=True)
        return (v - mu) * lax.rsqrt(var + EPS) * w + b

    B, NV, D = x.shape
    objs_p = objs @ w_lin + b_lin
    cat = jnp.concatenate([x, objs_p], axis=1)                   # (B, L, D)
    L = cat.shape[1]
    n1 = ln(cat, ln1_w, ln1_b)
    q, k, v = n1 @ wq, n1 @ wk, n1 @ wv
    qh = q.reshape(B, L, HEADS, HEAD_DIM).transpose(0, 2, 1, 3)
    kh = k.reshape(B, L, HEADS, HEAD_DIM).transpose(0, 2, 1, 3)
    vh = v.reshape(B, L, HEADS, HEAD_DIM).transpose(0, 2, 1, 3)
    s = jnp.einsum("bhqd,bhkd->bhqk", qh, kh) / math.sqrt(HEAD_DIM)
    p = jax.nn.softmax(s, axis=-1)
    o = jnp.einsum("bhqk,bhkd->bhqd", p, vh).transpose(0, 2, 1, 3).reshape(B, L, -1)
    attn = o @ wo + bo
    x = x + jnp.tanh(alpha_attn) * attn[:, :NV, :]

    n2 = ln(x, ln2_w, ln2_b)
    proj = n2 @ wg + bg
    hidden, gate = proj[..., :FF_INNER], proj[..., FF_INNER:]
    ff = (hidden * _gelu_exact(gate)) @ w2 + b2
    return x + jnp.tanh(alpha_dense) * ff


def init_params(key):
    ks = jax.random.split(key, 10)
    std = 0.05
    D, Dctx = QUERY_DIM, CONTEXT_DIM
    # NOTE: PyTorch inits alpha_attn/alpha_dense to 0.0 (block == identity). We use
    # nonzero values so the full computation path is actually exercised by the check.
    return (
        std * jax.random.normal(ks[0], (Dctx, D), jnp.float32),            # linear W
        std * jax.random.normal(ks[1], (D,), jnp.float32),                 # linear b
        jnp.ones((D,), jnp.float32), jnp.zeros((D,), jnp.float32),         # norm1 w, b
        std * jax.random.normal(ks[2], (D, INNER), jnp.float32),           # Wq (no bias)
        std * jax.random.normal(ks[3], (D, INNER), jnp.float32),           # Wk
        std * jax.random.normal(ks[4], (D, INNER), jnp.float32),           # Wv
        std * jax.random.normal(ks[5], (INNER, D), jnp.float32),           # Wo
        std * jax.random.normal(ks[6], (D,), jnp.float32),                 # bo
        jnp.ones((D,), jnp.float32), jnp.zeros((D,), jnp.float32),         # norm2 w, b
        std * jax.random.normal(ks[7], (D, 2 * FF_INNER), jnp.float32),    # GEGLU proj W
        std * jax.random.normal(ks[8], (2 * FF_INNER,), jnp.float32),      # GEGLU proj b
        std * jax.random.normal(ks[9], (FF_INNER, D), jnp.float32),        # FF out W
        jnp.zeros((D,), jnp.float32),                                      # FF out b
        jnp.float32(0.8),                                                  # alpha_attn
        jnp.float32(-0.5),                                                 # alpha_dense
    )


# TODO(synk): the `enabled=False` early-return and nn.Dropout (p=0.0, identity) are not
# represented inside the kernel; only the default enabled forward path is implemented.

if __name__ == "__main__":
    key = jax.random.PRNGKey(0)
    kx, ko, kp = jax.random.split(key, 3)
    x = jax.random.normal(kx, (BATCH, N_VISUAL, QUERY_DIM), jnp.float32)
    objs = jax.random.normal(ko, (BATCH, N_OBJS, CONTEXT_DIM), jnp.float32)
    params = init_params(kp)

    out = gated_self_attention(x, objs, params)
    out = jax.block_until_ready(out)

    ref = reference_forward(x, objs, params)
    assert out.shape == (BATCH, N_VISUAL, QUERY_DIM)
    max_err = jnp.max(jnp.abs(out - ref))
    assert jnp.allclose(out, ref, atol=2e-3, rtol=2e-3), f"mismatch vs reference (max abs err {max_err})"

    print("KERNEL_OK")
</pallas_src>

<mosaic_0001>
module attributes {stable_mosaic.version = 11 : i64} {
  func.func @gated_self_attention_kernel(%arg0: memref<16x32xf32, #tpu.memory_space<vmem>>, %arg1: memref<16x16xf32, #tpu.memory_space<vmem>>, %arg2: memref<16x32xf32, #tpu.memory_space<vmem>>, %arg3: memref<1x32xf32, #tpu.memory_space<vmem>>, %arg4: memref<1x32xf32, #tpu.memory_space<vmem>>, %arg5: memref<1x32xf32, #tpu.memory_space<vmem>>, %arg6: memref<32x96xf32, #tpu.memory_space<vmem>>, %arg7: memref<32x32xf32, #tpu.memory_space<vmem>>, %arg8: memref<1x32xf32, #tpu.memory_space<vmem>>, %arg9: memref<1x32xf32, #tpu.memory_space<vmem>>, %arg10: memref<1x32xf32, #tpu.memory_space<vmem>>, %arg11: memref<32x256xf32, #tpu.memory_space<vmem>>, %arg12: memref<1x256xf32, #tpu.memory_space<vmem>>, %arg13: memref<128x32xf32, #tpu.memory_space<vmem>>, %arg14: memref<1x32xf32, #tpu.memory_space<vmem>>, %arg15: memref<16x32xf32, #tpu.memory_space<vmem>>) attributes {dimension_semantics = [], scalar_prefetch = 0 : i64, scratch_operands = 0 : i64, tpu.core_type = #tpu.core_type<tc>} {
    %c0 = arith.constant 0 : index
    %c0_0 = arith.constant 0 : index
    %0 = vector.load %arg0[%c0, %c0_0] : memref<16x32xf32, #tpu.memory_space<vmem>>, vector<16x32xf32>
    %c0_1 = arith.constant 0 : index
    %c0_2 = arith.constant 0 : index
    %1 = vector.load %arg1[%c0_1, %c0_2] : memref<16x16xf32, #tpu.memory_space<vmem>>, vector<16x16xf32>
    %c0_3 = arith.constant 0 : index
    %c0_4 = arith.constant 0 : index
    %2 = vector.load %arg2[%c0_3, %c0_4] : memref<16x32xf32, #tpu.memory_space<vmem>>, vector<16x32xf32>
    %cst = arith.constant dense<0.000000e+00> : vector<16x32xf32>
    %3 = tpu.matmul %1, %2, %cst {dimension_numbers = #tpu.dot_dimension_numbers<[1], [0], [0], [1], [0, 0, 1, 1], [], []>} : vector<16x16xf32>, vector<16x32xf32>, vector<16x32xf32> -> vector<16x32xf32>
    %c0_5 = arith.constant 0 : index
    %c0_6 = arith.constant 0 : index
    %4 = vector.load %arg3[%c0_5, %c0_6] : memref<1x32xf32, #tpu.memory_space<vmem>>, vector<1x32xf32>
    %5 = vector.broadcast %4 : vector<1x32xf32> to vector<16x32xf32>
    %6 = arith.addf %3, %5 : vector<16x32xf32>
    %c0_7 = arith.constant 0 : index
    %c0_8 = arith.constant 0 : index
    %7 = vector.load %arg4[%c0_7, %c0_8] : memref<1x32xf32, #tpu.memory_space<vmem>>, vector<1x32xf32>
    %c0_9 = arith.constant 0 : index
    %c0_10 = arith.constant 0 : index
    %8 = vector.load %arg5[%c0_9, %c0_10] : memref<1x32xf32, #tpu.memory_space<vmem>>, vector<1x32xf32>
    %cst_11 = arith.constant dense<0.000000e+00> : vector<16xf32>
    %9 = vector.multi_reduction <add>, %0, %cst_11 [1] : vector<16x32xf32> to vector<16xf32>
    %10 = vector.shape_cast %9 : vector<16xf32> to vector<16x1xf32>
    %cst_12 = arith.constant 3.200000e+01 : f32
    %11 = vector.broadcast %cst_12 : f32 to vector<16x1xf32>
    %12 = arith.divf %10, %11 : vector<16x1xf32>
    %13 = vector.broadcast %12 : vector<16x1xf32> to vector<16x32xf32>
    %14 = arith.subf %0, %13 : vector<16x32xf32>
    %15 = arith.mulf %14, %14 : vector<16x32xf32>
    %cst_13 = arith.constant dense<0.000000e+00> : vector<16xf32>
    %16 = vector.multi_reduction <add>, %15, %cst_13 [1] : vector<16x32xf32> to vector<16xf32>
    %17 = vector.shape_cast %16 : vector<16xf32> to vector<16x1xf32>
    %cst_14 = arith.constant 3.200000e+01 : f32
    %18 = vector.broadcast %cst_14 : f32 to vector<16x1xf32>
    %19 = arith.divf %17, %18 : vector<16x1xf32>
    %20 = vector.broadcast %12 : vector<16x1xf32> to vector<16x32xf32>
    %21 = arith.subf %0, %20 : vector<16x32xf32>
    %cst_15 = arith.constant 9.99999974E-6 : f32
    %22 = vector.broadcast %cst_15 : f32 to vector<16x1xf32>
    %23 = arith.addf %19, %22 : vector<16x1xf32>
    %24 = math.rsqrt %23 : vector<16x1xf32>
    %25 = vector.broadcast %24 : vector<16x1xf32> to vector<16x32xf32>
    %26 = arith.mulf %21, %25 : vector<16x32xf32>
    %27 = vector.broadcast %7 : vector<1x32xf32> to vector<16x32xf32>
    %28 = arith.mulf %26, %27 : vector<16x32xf32>
    %29 = vector.broadcast %8 : vector<1x32xf32> to vector<16x32xf32>
    %30 = arith.addf %28, %29 : vector<16x32xf32>
    %c0_16 = arith.constant 0 : index
    %c0_17 = arith.constant 0 : index
    %31 = vector.load %arg4[%c0_16, %c0_17] : memref<1x32xf32, #tpu.memory_space<vmem>>, vector<1x32xf32>
    %c0_18 = arith.constant 0 : index
    %c0_19 = arith.constant 0 : index
    %32 = vector.load %arg5[%c0_18, %c0_19] : memref<1x32xf32, #tpu.memory_space<vmem>>, vector<1x32xf32>
    %cst_20 = arith.constant dense<0.000000e+00> : vector<16xf32>
    %33 = vector.multi_reduction <add>, %6, %cst_20 [1] : vector<16x32xf32> to vector<16xf32>
    %34 = vector.shape_cast %33 : vector<16xf32> to vector<16x1xf32>
    %cst_21 = arith.constant 3.200000e+01 : f32
    %35 = vector.broadcast %cst_21 : f32 to vector<16x1xf32>
    %36 = arith.divf %34, %35 : vector<16x1xf32>
    %37 = vector.broadcast %36 : vector<16x1xf32> to vector<16x32xf32>
    %38 = arith.subf %6, %37 : vector<16x32xf32>
    %39 = arith.mulf %38, %38 : vector<16x32xf32>
    %cst_22 = arith.constant dense<0.000000e+00> : vector<16xf32>
    %40 = vector.multi_reduction <add>, %39, %cst_22 [1] : vector<16x32xf32> to vector<16xf32>
    %41 = vector.shape_cast %40 : vector<16xf32> to vector<16x1xf32>
    %cst_23 = arith.constant 3.200000e+01 : f32
    %42 = vector.broadcast %cst_23 : f32 to vector<16x1xf32>
    %43 = arith.divf %41, %42 : vector<16x1xf32>
    %44 = vector.broadcast %36 : vector<16x1xf32> to vector<16x32xf32>
    %45 = arith.subf %6, %44 : vector<16x32xf32>
    %cst_24 = arith.constant 9.99999974E-6 : f32
    %46 = vector.broadcast %cst_24 : f32 to vector<16x1xf32>
    %47 = arith.addf %43, %46 : vector<16x1xf32>
    %48 = math.rsqrt %47 : vector<16x1xf32>
    %49 = vector.broadcast %48 : vector<16x1xf32> to vector<16x32xf32>
    %50 = arith.mulf %45, %49 : vector<16x32xf32>
    %51 = vector.broadcast %31 : vector<1x32xf32> to vector<16x32xf32>
    %52 = arith.mulf %50, %51 : vector<16x32xf32>
    %53 = vector.broadcast %32 : vector<1x32xf32> to vector<16x32xf32>
    %54 = arith.addf %52, %53 : vector<16x32xf32>
    %55 = vector.extract_strided_slice %30 {offsets = [0, 0], sizes = [8, 32], strides = [1, 1]} : vector<16x32xf32> to vector<8x32xf32>
    %56 = vector.extract_strided_slice %54 {offsets = [0, 0], sizes = [8, 32], strides = [1, 1]} : vector<16x32xf32> to vector<8x32xf32>
    %57 = vector.extract_strided_slice %30 {offsets = [8, 0], sizes = [8, 32], strides = [1, 1]} : vector<16x32xf32> to vector<8x32xf32>
    %58 = vector.extract_strided_slice %54 {offsets = [8, 0], sizes = [8, 32], strides = [1, 1]} : vector<16x32xf32> to vector<8x32xf32>
    %59 = tpu.concatenate %55, %56, %57, %58 in 0 : vector<8x32xf32>, vector<8x32xf32>, vector<8x32xf32>, vector<8x32xf32> -> vector<32x32xf32>
    %c0_25 = arith.constant 0 : index
    %c0_26 = arith.constant 0 : index
    %60 = vector.load %arg6[%c0_25, %c0_26] : memref<32x96xf32, #tpu.memory_space<vmem>>, vector<32x96xf32>
    %cst_27 = arith.constant dense<0.000000e+00> : vector<32x96xf32>
    %61 = tpu.matmul %59, %60, %cst_27 {dimension_numbers = #tpu.dot_dimension_numbers<[1], [0], [0], [1], [0, 0, 1, 1], [], []>} : vector<32x32xf32>, vector<32x96xf32>, vector<32x96xf32> -> vector<32x96xf32>
    %62 = vector.extract_strided_slice %61 {offsets = [0, 0], sizes = [8, 8], strides = [1, 1]} : vector<32x96xf32> to vector<8x8xf32>
    %63 = vector.extract_strided_slice %61 {offsets = [0, 32], sizes = [16, 8], strides = [1, 1]} : vector<32x96xf32> to vector<16x8xf32>
    %64 = vector.extract_strided_slice %61 {offsets = [0, 64], sizes = [16, 8], strides = [1, 1]} : vector<32x96xf32> to vector<16x8xf32>
    %cst_28 = arith.constant dense<0.000000e+00> : vector<8x16xf32>
    %65 = tpu.matmul %62, %63, %cst_28 {dimension_numbers = #tpu.dot_dimension_numbers<[1], [1], [0], [0], [0, 0, 1, 0], [], []>} : vector<8x8xf32>, vector<16x8xf32>, vector<8x16xf32> -> vector<8x16xf32>
    %cst_29 = arith.constant dense<0xFF800000> : vector<8xf32>
    %66 = vector.multi_reduction <maximumf>, %65, %cst_29 [1] : vector<8x16xf32> to vector<8xf32>
    %67 = vector.shape_cast %66 : vector<8xf32> to vector<8x1xf32>
    %68 = vector.broadcast %67 : vector<8x1xf32> to vector<8x16xf32>
    %69 = arith.subf %65, %68 : vector<8x16xf32>
    %70 = math.exp %69 : vector<8x16xf32>
    %cst_30 = arith.constant dense<0.000000e+00> : vector<8xf32>
    %71 = vector.multi_reduction <add>, %70, %cst_30 [1] : vector<8x16xf32> to vector<8xf32>
    %72 = vector.shape_cast %71 : vector<8xf32> to vector<8x1xf32>
    %73 = tpu.reciprocal %72 {approx = true} : vector<8x1xf32> -> vector<8x1xf32>
    %74 = vector.broadcast %73 : vector<8x1xf32> to vector<8x16xf32>
    %75 = arith.mulf %70, %74 : vector<8x16xf32>
    %cst_31 = arith.constant dense<0.000000e+00> : vector<8x8xf32>
    %76 = tpu.matmul %75, %64, %cst_31 {dimension_numbers = #tpu.dot_dimension_numbers<[1], [0], [0], [1], [0, 0, 1, 1], [], []>} : vector<8x16xf32>, vector<16x8xf32>, vector<8x8xf32> -> vector<8x8xf32>
    %c0_32 = arith.constant 0 : index
    %c0_33 = arith.constant 0 : index
    %77 = vector.load %arg7[%c0_32, %c0_33] : memref<32x32xf32, #tpu.memory_space<vmem>>, vector<8x32xf32>
    %cst_34 = arith.constant dense<0.000000e+00> : vector<8x32xf32>
    %78 = tpu.matmul %76, %77, %cst_34 {dimension_numbers = #tpu.dot_dimension_numbers<[1], [0], [0], [1], [0, 0, 1, 1], [], []>} : vector<8x8xf32>, vector<8x32xf32>, vector<8x32xf32> -> vector<8x32xf32>
    %79 = vector.extract_strided_slice %61 {offsets = [0, 8], sizes = [8, 8], strides = [1, 1]} : vector<32x96xf32> to vector<8x8xf32>
    %80 = vector.extract_strided_slice %61 {offsets = [0, 40], sizes = [16, 8], strides = [1, 1]} : vector<32x96xf32> to vector<16x8xf32>
    %81 = vector.extract_strided_slice %61 {offsets = [0, 72], sizes = [16, 8], strides = [1, 1]} : vector<32x96xf32> to vector<16x8xf32>
    %cst_35 = arith.constant dense<0.000000e+00> : vector<8x16xf32>
    %82 = tpu.matmul %79, %80, %cst_35 {dimension_numbers = #tpu.dot_dimension_numbers<[1], [1], [0], [0], [0, 0, 1, 0], [], []>} : vector<8x8xf32>, vector<16x8xf32>, vector<8x16xf32> -> vector<8x16xf32>
    %cst_36 = arith.constant dense<0xFF800000> : vector<8xf32>
    %83 = vector.multi_reduction <maximumf>, %82, %cst_36 [1] : vector<8x16xf32> to vector<8xf32>
    %84 = vector.shape_cast %83 : vector<8xf32> to vector<8x1xf32>
    %85 = vector.broadcast %84 : vector<8x1xf32> to vector<8x16xf32>
    %86 = arith.subf %82, %85 : vector<8x16xf32>
    %87 = math.exp %86 : vector<8x16xf32>
    %cst_37 = arith.constant dense<0.000000e+00> : vector<8xf32>
    %88 = vector.multi_reduction <add>, %87, %cst_37 [1] : vector<8x16xf32> to vector<8xf32>
    %89 = vector.shape_cast %88 : vector<8xf32> to vector<8x1xf32>
    %90 = tpu.reciprocal %89 {approx = true} : vector<8x1xf32> -> vector<8x1xf32>
    %91 = vector.broadcast %90 : vector<8x1xf32> to vector<8x16xf32>
    %92 = arith.mulf %87, %91 : vector<8x16xf32>
    %cst_38 = arith.constant dense<0.000000e+00> : vector<8x8xf32>
    %93 = tpu.matmul %92, %81, %cst_38 {dimension_numbers = #tpu.dot_dimension_numbers<[1], [0], [0], [1], [0, 0, 1, 1], [], []>} : vector<8x16xf32>, vector<16x8xf32>, vector<8x8xf32> -> vector<8x8xf32>
    %c8 = arith.constant 8 : index
    %c0_39 = arith.constant 0 : index
    %94 = vector.load %arg7[%c8, %c0_39] : memref<32x32xf32, #tpu.memory_space<vmem>>, vector<8x32xf32>
    %cst_40 = arith.constant dense<0.000000e+00> : vector<8x32xf32>
    %95 = tpu.matmul %93, %94, %cst_40 {dimension_numbers = #tpu.dot_dimension_numbers<[1], [0], [0], [1], [0, 0, 1, 1], [], []>} : vector<8x8xf32>, vector<8x32xf32>, vector<8x32xf32> -> vector<8x32xf32>
    %96 = arith.addf %78, %95 : vector<8x32xf32>
    %97 = vector.extract_strided_slice %61 {offsets = [0, 16], sizes = [8, 8], strides = [1, 1]} : vector<32x96xf32> to vector<8x8xf32>
    %98 = vector.extract_strided_slice %61 {offsets = [0, 48], sizes = [16, 8], strides = [1, 1]} : vector<32x96xf32> to vector<16x8xf32>
    %99 = vector.extract_strided_slice %61 {offsets = [0, 80], sizes = [16, 8], strides = [1, 1]} : vector<32x96xf32> to vector<16x8xf32>
    %cst_41 = arith.constant dense<0.000000e+00> : vector<8x16xf32>
    %100 = tpu.matmul %97, %98, %cst_41 {dimension_numbers = #tpu.dot_dimension_numbers<[1], [1], [0], [0], [0, 0, 1, 0], [], []>} : vector<8x8xf32>, vector<16x8xf32>, vector<8x16xf32> -> vector<8x16xf32>
    %cst_42 = arith.constant dense<0xFF800000> : vector<8xf32>
    %101 = vector.multi_reduction <maximumf>, %100, %cst_42 [1] : vector<8x16xf32> to vector<8xf32>
    %102 = vector.shape_cast %101 : vector<8xf32> to vector<8x1xf32>
    %103 = vector.broadcast %102 : vector<8x1xf32> to vector<8x16xf32>
    %104 = arith.subf %100, %103 : vector<8x16xf32>
    %105 = math.exp %104 : vector<8x16xf32>
    %cst_43 = arith.constant dense<0.000000e+00> : vector<8xf32>
    %106 = vector.multi_reduction <add>, %105, %cst_43 [1] : vector<8x16xf32> to vector<8xf32>
    %107 = vector.shape_cast %106 : vector<8xf32> to vector<8x1xf32>
    %108 = tpu.reciprocal %107 {approx = true} : vector<8x1xf32> -> vector<8x1xf32>
    %109 = vector.broadcast %108 : vector<8x1xf32> to vector<8x16xf32>
    %110 = arith.mulf %105, %109 : vector<8x16xf32>
    %cst_44 = arith.constant dense<0.000000e+00> : vector<8x8xf32>
    %111 = tpu.matmul %110, %99, %cst_44 {dimension_numbers = #tpu.dot_dimension_numbers<[1], [0], [0], [1], [0, 0, 1, 1], [], []>} : vector<8x16xf32>, vector<16x8xf32>, vector<8x8xf32> -> vector<8x8xf32>
    %c16 = arith.constant 16 : index
    %c0_45 = arith.constant 0 : index
    %112 = vector.load %arg7[%c16, %c0_45] : memref<32x32xf32, #tpu.memory_space<vmem>>, vector<8x32xf32>
    %cst_46 = arith.constant dense<0.000000e+00> : vector<8x32xf32>
    %113 = tpu.matmul %111, %112, %cst_46 {dimension_numbers = #tpu.dot_dimension_numbers<[1], [0], [0], [1], [0, 0, 1, 1], [], []>} : vector<8x8xf32>, vector<8x32xf32>, vector<8x32xf32> -> vector<8x32xf32>
    %114 = arith.addf %96, %113 : vector<8x32xf32>
    %115 = vector.extract_strided_slice %61 {offsets = [0, 24], sizes = [8, 8], strides = [1, 1]} : vector<32x96xf32> to vector<8x8xf32>
    %116 = vector.extract_strided_slice %61 {offsets = [0, 56], sizes = [16, 8], strides = [1, 1]} : vector<32x96xf32> to vector<16x8xf32>
    %117 = vector.extract_strided_slice %61 {offsets = [0, 88], sizes = [16, 8], strides = [1, 1]} : vector<32x96xf32> to vector<16x8xf32>
    %cst_47 = arith.constant dense<0.000000e+00> : vector<8x16xf32>
    %118 = tpu.matmul %115, %116, %cst_47 {dimension_numbers = #tpu.dot_dimension_numbers<[1], [1], [0], [0], [0, 0, 1, 0], [], []>} : vector<8x8xf32>, vector<16x8xf32>, vector<8x16xf32> -> vector<8x16xf32>
    %cst_48 = arith.constant dense<0xFF800000> : vector<8xf32>
    %119 = vector.multi_reduction <maximumf>, %118, %cst_48 [1] : vector<8x16xf32> to vector<8xf32>
    %120 = vector.shape_cast %119 : vector<8xf32> to vector<8x1xf32>
    %121 = vector.broadcast %120 : vector<8x1xf32> to vector<8x16xf32>
    %122 = arith.subf %118, %121 : vector<8x16xf32>
    %123 = math.exp %122 : vector<8x16xf32>
    %cst_49 = arith.constant dense<0.000000e+00> : vector<8xf32>
    %124 = vector.multi_reduction <add>, %123, %cst_49 [1] : vector<8x16xf32> to vector<8xf32>
    %125 = vector.shape_cast %124 : vector<8xf32> to vector<8x1xf32>
    %126 = tpu.reciprocal %125 {approx = true} : vector<8x1xf32> -> vector<8x1xf32>
    %127 = vector.broadcast %126 : vector<8x1xf32> to vector<8x16xf32>
    %128 = arith.mulf %123, %127 : vector<8x16xf32>
    %cst_50 = arith.constant dense<0.000000e+00> : vector<8x8xf32>
    %129 = tpu.matmul %128, %117, %cst_50 {dimension_numbers = #tpu.dot_dimension_numbers<[1], [0], [0], [1], [0, 0, 1, 1], [], []>} : vector<8x16xf32>, vector<16x8xf32>, vector<8x8xf32> -> vector<8x8xf32>
    %c24 = arith.constant 24 : index
    %c0_51 = arith.constant 0 : index
    %130 = vector.load %arg7[%c24, %c0_51] : memref<32x32xf32, #tpu.memory_space<vmem>>, vector<8x32xf32>
    %cst_52 = arith.constant dense<0.000000e+00> : vector<8x32xf32>
    %131 = tpu.matmul %129, %130, %cst_52 {dimension_numbers = #tpu.dot_dimension_numbers<[1], [0], [0], [1], [0, 0, 1, 1], [], []>} : vector<8x8xf32>, vector<8x32xf32>, vector<8x32xf32> -> vector<8x32xf32>
    %132 = arith.addf %114, %131 : vector<8x32xf32>
    %133 = vector.extract_strided_slice %61 {offsets = [16, 0], sizes = [8, 8], strides = [1, 1]} : vector<32x96xf32> to vector<8x8xf32>
    %134 = vector.extract_strided_slice %61 {offsets = [16, 32], sizes = [16, 8], strides = [1, 1]} : vector<32x96xf32> to vector<16x8xf32>
    %135 = vector.extract_strided_slice %61 {offsets = [16, 64], sizes = [16, 8], strides = [1, 1]} : vector<32x96xf32> to vector<16x8xf32>
    %cst_53 = arith.constant dense<0.000000e+00> : vector<8x16xf32>
    %136 = tpu.matmul %133, %134, %cst_53 {dimension_numbers = #tpu.dot_dimension_numbers<[1], [1], [0], [0], [0, 0, 1, 0], [], []>} : vector<8x8xf32>, vector<16x8xf32>, vector<8x16xf32> -> vector<8x16xf32>
    %cst_54 = arith.constant dense<0xFF800000> : vector<8xf32>
    %137 = vector.multi_reduction <maximumf>, %136, %cst_54 [1] : vector<8x16xf32> to vector<8xf32>
    %138 = vector.shape_cast %137 : vector<8xf32> to vector<8x1xf32>
    %139 = vector.broadcast %138 : vector<8x1xf32> to vector<8x16xf32>
    %140 = arith.subf %136, %139 : vector<8x16xf32>
    %141 = math.exp %140 : vector<8x16xf32>
    %cst_55 = arith.constant dense<0.000000e+00> : vector<8xf32>
    %142 = vector.multi_reduction <add>, %141, %cst_55 [1] : vector<8x16xf32> to vector<8xf32>
    %143 = vector.shape_cast %142 : vector<8xf32> to vector<8x1xf32>
    %144 = tpu.reciprocal %143 {approx = true} : vector<8x1xf32> -> vector<8x1xf32>
    %145 = vector.broadcast %144 : vector<8x1xf32> to vector<8x16xf32>
    %146 = arith.mulf %141, %145 : vector<8x16xf32>
    %cst_56 = arith.constant dense<0.000000e+00> : vector<8x8xf32>
    %147 = tpu.matmul %146, %135, %cst_56 {dimension_numbers = #tpu.dot_dimension_numbers<[1], [0], [0], [1], [0, 0, 1, 1], [], []>} : vector<8x16xf32>, vector<16x8xf32>, vector<8x8xf32> -> vector<8x8xf32>
    %c0_57 = arith.constant 0 : index
    %c0_58 = arith.constant 0 : index
    %148 = vector.load %arg7[%c0_57, %c0_58] : memref<32x32xf32, #tpu.memory_space<vmem>>, vector<8x32xf32>
    %cst_59 = arith.constant dense<0.000000e+00> : vector<8x32xf32>
    %149 = tpu.matmul %147, %148, %cst_59 {dimension_numbers = #tpu.dot_dimension_numbers<[1], [0], [0], [1], [0, 0, 1, 1], [], []>} : vector<8x8xf32>, vector<8x32xf32>, vector<8x32xf32> -> vector<8x32xf32>
    %150 = vector.extract_strided_slice %61 {offsets = [16, 8], sizes = [8, 8], strides = [1, 1]} : vector<32x96xf32> to vector<8x8xf32>
    %151 = vector.extract_strided_slice %61 {offsets = [16, 40], sizes = [16, 8], strides = [1, 1]} : vector<32x96xf32> to vector<16x8xf32>
    %152 = vector.extract_strided_slice %61 {offsets = [16, 72], sizes = [16, 8], strides = [1, 1]} : vector<32x96xf32> to vector<16x8xf32>
    %cst_60 = arith.constant dense<0.000000e+00> : vector<8x16xf32>
    %153 = tpu.matmul %150, %151, %cst_60 {dimension_numbers = #tpu.dot_dimension_numbers<[1], [1], [0], [0], [0, 0, 1, 0], [], []>} : vector<8x8xf32>, vector<16x8xf32>, vector<8x16xf32> -> vector<8x16xf32>
    %cst_61 = arith.constant dense<0xFF800000> : vector<8xf32>
    %154 = vector.multi_reduction <maximumf>, %153, %cst_61 [1] : vector<8x16xf32> to vector<8xf32>
    %155 = vector.shape_cast %154 : vector<8xf32> to vector<8x1xf32>
    %156 = vector.broadcast %155 : vector<8x1xf32> to vector<8x16xf32>
    %157 = arith.subf %153, %156 : vector<8x16xf32>
    %158 = math.exp %157 : vector<8x16xf32>
    %cst_62 = arith.constant dense<0.000000e+00> : vector<8xf32>
    %159 = vector.multi_reduction <add>, %158, %cst_62 [1] : vector<8x16xf32> to vector<8xf32>
    %160 = vector.shape_cast %159 : vector<8xf32> to vector<8x1xf32>
    %161 = tpu.reciprocal %160 {approx = true} : vector<8x1xf32> -> vector<8x1xf32>
    %162 = vector.broadcast %161 : vector<8x1xf32> to vector<8x16xf32>
    %163 = arith.mulf %158, %162 : vector<8x16xf32>
    %cst_63 = arith.constant dense<0.000000e+00> : vector<8x8xf32>
    %164 = tpu.matmul %163, %152, %cst_63 {dimension_numbers = #tpu.dot_dimension_numbers<[1], [0], [0], [1], [0, 0, 1, 1], [], []>} : vector<8x16xf32>, vector<16x8xf32>, vector<8x8xf32> -> vector<8x8xf32>
    %c8_64 = arith.constant 8 : index
    %c0_65 = arith.constant 0 : index
    %165 = vector.load %arg7[%c8_64, %c0_65] : memref<32x32xf32, #tpu.memory_space<vmem>>, vector<8x32xf32>
    %cst_66 = arith.constant dense<0.000000e+00> : vector<8x32xf32>
    %166 = tpu.matmul %164, %165, %cst_66 {dimension_numbers = #tpu.dot_dimension_numbers<[1], [0], [0], [1], [0, 0, 1, 1], [], []>} : vector<8x8xf32>, vector<8x32xf32>, vector<8x32xf32> -> vector<8x32xf32>
    %167 = arith.addf %149, %166 : vector<8x32xf32>
    %168 = vector.extract_strided_slice %61 {offsets = [16, 16], sizes = [8, 8], strides = [1, 1]} : vector<32x96xf32> to vector<8x8xf32>
    %169 = vector.extract_strided_slice %61 {offsets = [16, 48], sizes = [16, 8], strides = [1, 1]} : vector<32x96xf32> to vector<16x8xf32>
    %170 = vector.extract_strided_slice %61 {offsets = [16, 80], sizes = [16, 8], strides = [1, 1]} : vector<32x96xf32> to vector<16x8xf32>
    %cst_67 = arith.constant dense<0.000000e+00> : vector<8x16xf32>
    %171 = tpu.matmul %168, %169, %cst_67 {dimension_numbers = #tpu.dot_dimension_numbers<[1], [1], [0], [0], [0, 0, 1, 0], [], []>} : vector<8x8xf32>, vector<16x8xf32>, vector<8x16xf32> -> vector<8x16xf32>
    %cst_68 = arith.constant dense<0xFF800000> : vector<8xf32>
    %172 = vector.multi_reduction <maximumf>, %171, %cst_68 [1] : vector<8x16xf32> to vector<8xf32>
    %173 = vector.shape_cast %172 : vector<8xf32> to vector<8x1xf32>
    %174 = vector.broadcast %173 : vector<8x1xf32> to vector<8x16xf32>
    %175 = arith.subf %171, %174 : vector<8x16xf32>
    %176 = math.exp %175 : vector<8x16xf32>
    %cst_69 = arith.constant dense<0.000000e+00> : vector<8xf32>
    %177 = vector.multi_reduction <add>, %176, %cst_69 [1] : vector<8x16xf32> to vector<8xf32>
    %178 = vector.shape_cast %177 : vector<8xf32> to vector<8x1xf32>
    %179 = tpu.reciprocal %178 {approx = true} : vector<8x1xf32> -> vector<8x1xf32>
    %180 = vector.broadcast %179 : vector<8x1xf32> to vector<8x16xf32>
    %181 = arith.mulf %176, %180 : vector<8x16xf32>
    %cst_70 = arith.constant dense<0.000000e+00> : vector<8x8xf32>
    %182 = tpu.matmul %181, %170, %cst_70 {dimension_numbers = #tpu.dot_dimension_numbers<[1], [0], [0], [1], [0, 0, 1, 1], [], []>} : vector<8x16xf32>, vector<16x8xf32>, vector<8x8xf32> -> vector<8x8xf32>
    %c16_71 = arith.constant 16 : index
    %c0_72 = arith.constant 0 : index
    %183 = vector.load %arg7[%c16_71, %c0_72] : memref<32x32xf32, #tpu.memory_space<vmem>>, vector<8x32xf32>
    %cst_73 = arith.constant dense<0.000000e+00> : vector<8x32xf32>
    %184 = tpu.matmul %182, %183, %cst_73 {dimension_numbers = #tpu.dot_dimension_numbers<[1], [0], [0], [1], [0, 0, 1, 1], [], []>} : vector<8x8xf32>, vector<8x32xf32>, vector<8x32xf32> -> vector<8x32xf32>
    %185 = arith.addf %167, %184 : vector<8x32xf32>
    %186 = vector.extract_strided_slice %61 {offsets = [16, 24], sizes = [8, 8], strides = [1, 1]} : vector<32x96xf32> to vector<8x8xf32>
    %187 = vector.extract_strided_slice %61 {offsets = [16, 56], sizes = [16, 8], strides = [1, 1]} : vector<32x96xf32> to vector<16x8xf32>
    %188 = vector.extract_strided_slice %61 {offsets = [16, 88], sizes = [16, 8], strides = [1, 1]} : vector<32x96xf32> to vector<16x8xf32>
    %cst_74 = arith.constant dense<0.000000e+00> : vector<8x16xf32>
    %189 = tpu.matmul %186, %187, %cst_74 {dimension_numbers = #tpu.dot_dimension_numbers<[1], [1], [0], [0], [0, 0, 1, 0], [], []>} : vector<8x8xf32>, vector<16x8xf32>, vector<8x16xf32> -> vector<8x16xf32>
    %cst_75 = arith.constant dense<0xFF800000> : vector<8xf32>
    %190 = vector.multi_reduction <maximumf>, %189, %cst_75 [1] : vector<8x16xf32> to vector<8xf32>
    %191 = vector.shape_cast %190 : vector<8xf32> to vector<8x1xf32>
    %192 = vector.broadcast %191 : vector<8x1xf32> to vector<8x16xf32>
    %193 = arith.subf %189, %192 : vector<8x16xf32>
    %194 = math.exp %193 : vector<8x16xf32>
    %cst_76 = arith.constant dense<0.000000e+00> : vector<8xf32>
    %195 = vector.multi_reduction <add>, %194, %cst_76 [1] : vector<8x16xf32> to vector<8xf32>
    %196 = vector.shape_cast %195 : vector<8xf32> to vector<8x1xf32>
    %197 = tpu.reciprocal %196 {approx = true} : vector<8x1xf32> -> vector<8x1xf32>
    %198 = vector.broadcast %197 : vector<8x1xf32> to vector<8x16xf32>
    %199 = arith.mulf %194, %198 : vector<8x16xf32>
    %cst_77 = arith.constant dense<0.000000e+00> : vector<8x8xf32>
    %200 = tpu.matmul %199, %188, %cst_77 {dimension_numbers = #tpu.dot_dimension_numbers<[1], [0], [0], [1], [0, 0, 1, 1], [], []>} : vector<8x16xf32>, vector<16x8xf32>, vector<8x8xf32> -> vector<8x8xf32>
    %c24_78 = arith.constant 24 : index
    %c0_79 = arith.constant 0 : index
    %201 = vector.load %arg7[%c24_78, %c0_79] : memref<32x32xf32, #tpu.memory_space<vmem>>, vector<8x32xf32>
    %cst_80 = arith.constant dense<0.000000e+00> : vector<8x32xf32>
    %202 = tpu.matmul %200, %201, %cst_80 {dimension_numbers = #tpu.dot_dimension_numbers<[1], [0], [0], [1], [0, 0, 1, 1], [], []>} : vector<8x8xf32>, vector<8x32xf32>, vector<8x32xf32> -> vector<8x32xf32>
    %203 = arith.addf %185, %202 : vector<8x32xf32>
    %204 = tpu.concatenate %132, %203 in 0 : vector<8x32xf32>, vector<8x32xf32> -> vector<16x32xf32>
    %205 = arith.addf %0, %204 : vector<16x32xf32>
    %c0_81 = arith.constant 0 : index
    %c0_82 = arith.constant 0 : index
    %206 = vector.load %arg8[%c0_81, %c0_82] : memref<1x32xf32, #tpu.memory_space<vmem>>, vector<1x32xf32>
    %207 = vector.broadcast %206 : vector<1x32xf32> to vector<16x32xf32>
    %208 = arith.addf %205, %207 : vector<16x32xf32>
    %c0_83 = arith.constant 0 : index
    %c0_84 = arith.constant 0 : index
    %209 = vector.load %arg9[%c0_83, %c0_84] : memref<1x32xf32, #tpu.memory_space<vmem>>, vector<1x32xf32>
    %c0_85 = arith.constant 0 : index
    %c0_86 = arith.constant 0 : index
    %210 = vector.load %arg10[%c0_85, %c0_86] : memref<1x32xf32, #tpu.memory_space<vmem>>, vector<1x32xf32>
    %cst_87 = arith.constant dense<0.000000e+00> : vector<16xf32>
    %211 = vector.multi_reduction <add>, %208, %cst_87 [1] : vector<16x32xf32> to vector<16xf32>
    %212 = vector.shape_cast %211 : vector<16xf32> to vector<16x1xf32>
    %cst_88 = arith.constant 3.200000e+01 : f32
    %213 = vector.broadcast %cst_88 : f32 to vector<16x1xf32>
    %214 = arith.divf %212, %213 : vector<16x1xf32>
    %215 = vector.broadcast %214 : vector<16x1xf32> to vector<16x32xf32>
    %216 = arith.subf %208, %215 : vector<16x32xf32>
    %217 = arith.mulf %216, %216 : vector<16x32xf32>
    %cst_89 = arith.constant dense<0.000000e+00> : vector<16xf32>
    %218 = vector.multi_reduction <add>, %217, %cst_89 [1] : vector<16x32xf32> to vector<16xf32>
    %219 = vector.shape_cast %218 : vector<16xf32> to vector<16x1xf32>
    %cst_90 = arith.constant 3.200000e+01 : f32
    %220 = vector.broadcast %cst_90 : f32 to vector<16x1xf32>
    %221 = arith.divf %219, %220 : vector<16x1xf32>
    %222 = vector.broadcast %214 : vector<16x1xf32> to vector<16x32xf32>
    %223 = arith.subf %208, %222 : vector<16x32xf32>
    %cst_91 = arith.constant 9.99999974E-6 : f32
    %224 = vector.broadcast %cst_91 : f32 to vector<16x1xf32>
    %225 = arith.addf %221, %224 : vector<16x1xf32>
    %226 = math.rsqrt %225 : vector<16x1xf32>
    %227 = vector.broadcast %226 : vector<16x1xf32> to vector<16x32xf32>
    %228 = arith.mulf %223, %227 : vector<16x32xf32>
    %229 = vector.broadcast %209 : vector<1x32xf32> to vector<16x32xf32>
    %230 = arith.mulf %228, %229 : vector<16x32xf32>
    %231 = vector.broadcast %210 : vector<1x32xf32> to vector<16x32xf32>
    %232 = arith.addf %230, %231 : vector<16x32xf32>
    %c0_92 = arith.constant 0 : index
    %c0_93 = arith.constant 0 : index
    %233 = vector.load %arg11[%c0_92, %c0_93] : memref<32x256xf32, #tpu.memory_space<vmem>>, vector<32x256xf32>
    %cst_94 = arith.constant dense<0.000000e+00> : vector<16x256xf32>
    %234 = tpu.matmul %232, %233, %cst_94 {dimension_numbers = #tpu.dot_dimension_numbers<[1], [0], [0], [1], [0, 0, 1, 1], [], []>} : vector<16x32xf32>, vector<32x256xf32>, vector<16x256xf32> -> vector<16x256xf32>
    %c0_95 = arith.constant 0 : index
    %c0_96 = arith.constant 0 : index
    %235 = vector.load %arg12[%c0_95, %c0_96] : memref<1x256xf32, #tpu.memory_space<vmem>>, vector<1x256xf32>
    %236 = vector.broadcast %235 : vector<1x256xf32> to vector<16x256xf32>
    %237 = arith.addf %234, %236 : vector<16x256xf32>
    %238 = vector.extract_strided_slice %237 {offsets = [0, 0], sizes = [16, 128], strides = [1, 1]} : vector<16x256xf32> to vector<16x128xf32>
    %239 = vector.extract_strided_slice %237 {offsets = [0, 128], sizes = [16, 128], strides = [1, 1]} : vector<16x256xf32> to vector<16x128xf32>
    %cst_97 = arith.constant 5.000000e-01 : f32
    %240 = vector.broadcast %cst_97 : f32 to vector<16x128xf32>
    %241 = arith.mulf %240, %239 : vector<16x128xf32>
    %cst_98 = arith.constant 0.707106769 : f32
    %242 = vector.broadcast %cst_98 : f32 to vector<16x128xf32>
    %243 = arith.mulf %239, %242 : vector<16x128xf32>
    %244 = math.erf %243 : vector<16x128xf32>
    %cst_99 = arith.constant 1.000000e+00 : f32
    %245 = vector.broadcast %cst_99 : f32 to vector<16x128xf32>
    %246 = arith.addf %245, %244 : vector<16x128xf32>
    %247 = arith.mulf %241, %246 : vector<16x128xf32>
    %248 = arith.mulf %238, %247 : vector<16x128xf32>
    %c0_100 = arith.constant 0 : index
    %c0_101 = arith.constant 0 : index
    %249 = vector.load %arg13[%c0_100, %c0_101] : memref<128x32xf32, #tpu.memory_space<vmem>>, vector<128x32xf32>
    %cst_102 = arith.constant dense<0.000000e+00> : vector<16x32xf32>
    %250 = tpu.matmul %248, %249, %cst_102 {dimension_numbers = #tpu.dot_dimension_numbers<[1], [0], [0], [1], [0, 0, 1, 1], [], []>} : vector<16x128xf32>, vector<128x32xf32>, vector<16x32xf32> -> vector<16x32xf32>
    %c0_103 = arith.constant 0 : index
    %c0_104 = arith.constant 0 : index
    %251 = vector.load %arg14[%c0_103, %c0_104] : memref<1x32xf32, #tpu.memory_space<vmem>>, vector<1x32xf32>
    %252 = vector.broadcast %251 : vector<1x32xf32> to vector<16x32xf32>
    %253 = arith.addf %250, %252 : vector<16x32xf32>
    %254 = arith.addf %208, %253 : vector<16x32xf32>
    %c0_105 = arith.constant 0 : index
    %c0_106 = arith.constant 0 : index
    %255 = vector.load %arg15[%c0_105, %c0_106] : memref<16x32xf32, #tpu.memory_space<vmem>>, vector<16x32xf32>
    tpu.vector_store %arg15[%c0_105, %c0_106], %254 {strides = array<i32>} : memref<16x32xf32, #tpu.memory_space<vmem>>, vector<16x32xf32>,
    return
  }
}

</mosaic_0001>

<llo_original>
// kernel: tpu_custom_call.1
$region0: #{tpu_custom_call.1}
  #allocation0 [shape = 'u32[]', space=smem, size = 0x4, offset = 0x4, fixed_abs, tag = 'smem constant byte address 0x4 - core index']
  #allocation1 [shape = 'u32[144,128]{1,0:T(1,128)}', space=vmem, size = 0x12000, scoped, tag = 'internal scratch']
  %s0 = inlined_call_operand.vmem [shape: f32[16,32], index: 0, kind: input, shape index: {}]
  %s1 = inlined_call_operand.vmem [shape: f32[16,16], index: 1, kind: input, shape index: {}]
  %s2 = inlined_call_operand.hbm [shape: f32[16,32], index: 2, kind: input, shape index: {}]
  %s3 = inlined_call_operand.vmem [shape: f32[1,32], index: 3, kind: input, shape index: {}]
  %s4 = inlined_call_operand.vmem [shape: f32[1,32], index: 4, kind: input, shape index: {}]
  %s5 = inlined_call_operand.vmem [shape: f32[1,32], index: 5, kind: input, shape index: {}]
  %s6 = inlined_call_operand.vmem [shape: f32[32,96], index: 6, kind: input, shape index: {}]
  %s7 = inlined_call_operand.vmem [shape: f32[32,32], index: 7, kind: input, shape index: {}]
  %s8 = inlined_call_operand.vmem [shape: f32[1,32], index: 8, kind: input, shape index: {}]
  %s9 = inlined_call_operand.vmem [shape: f32[1,32], index: 9, kind: input, shape index: {}]
  %s10 = inlined_call_operand.vmem [shape: f32[1,32], index: 10, kind: input, shape index: {}]
  %s11 = inlined_call_operand.vmem [shape: f32[32,256], index: 11, kind: input, shape index: {}]
  %s12 = inlined_call_operand.vmem [shape: f32[1,256], index: 12, kind: input, shape index: {}]
  %s13 = inlined_call_operand.vmem [shape: f32[128,32], index: 13, kind: input, shape index: {}]
  %s14 = inlined_call_operand.vmem [shape: f32[1,32], index: 14, kind: input, shape index: {}]
  %s15 = inlined_call_operand.hbm [shape: f32[16,32], index: 15, kind: output, shape index: {}]
  %s16 = sld [smem:[#allocation0]]
  $region74: #{tpu_custom_call.1} parent=0
    _
  %s18 = ssub.s32 1, %s16
  %s19 = scalar_select 0, %s18, %s16
  $region1: #{tpu_custom_call.1} parent=0
    #allocation2 [shape = 'u8[8192]{0}', space=vmem, size = 0x2000, scoped, tag = 'input window, operand 2, single buffered']
    #allocation3 [shape = 's32[1]{0}', space=sflag, size = 0x4, scoped, tag = 'scoped memory for tpu_custom_call.1']
    #allocation4 [shape = 's32[1]{0}', space=sflag, size = 0x4, scoped, tag = 'scoped memory for tpu_custom_call.1']
    #allocation5 [shape = 'u8[8192]{0}', space=vmem, size = 0x2000, scoped, tag = 'output window, operand 0, single buffered']
    %20 = vsyncpa [#allocation3], 0
    %21 = vsyncpa [#allocation4], 0
    // Predicated region
    $region2: #{tpu_custom_call.1} parent=1 // pred_check
      _
    $region3: #{tpu_custom_call.1} parent=1 // pred_check_branch
      %23 = sbr.rel (0) target = $region5
    $region4: #{tpu_custom_call.1} parent=1 // pred_region
      _
    $region5: #{tpu_custom_call.1} parent=1 // pred_fallthru
      _
    // Predicated region
    $region6: #{tpu_custom_call.1} parent=1 // pred_check
      _
    $region7: #{tpu_custom_call.1} parent=1 // pred_check_branch
      %25 = sbr.rel (0) target = $region9
    $region8: #{tpu_custom_call.1} parent=1 // pred_region
      _
    $region9: #{tpu_custom_call.1} parent=1 // pred_fallthru
      _
    // Predicated region
    $region10: #{tpu_custom_call.1} parent=1 // pred_check
      _
    $region11: #{tpu_custom_call.1} parent=1 // pred_check_branch
      %27 = sbr.rel (0) target = $region13
    $region12: #{tpu_custom_call.1} parent=1 // pred_region
      %s29 = ssub.s32 256, 256
      %30 = vsyncadd [#allocation3], %s29
      %s31 = sshll.u32 [#allocation2], 4
      %s32 = int_to_ptr.vmem [resolvable:$true] %s31
      %37 = dma.hbm_to_vmem [thread:$0]  %s2, 256, %s32, [#allocation3], 128, 128, 8
    $region13: #{tpu_custom_call.1} parent=1 // pred_fallthru
      _
    // Predicated region
    $region14: #{tpu_custom_call.1} parent=1 // pred_check
      _
    $region15: #{tpu_custom_call.1} parent=1 // pred_check_branch
      %39 = sbr.rel (0) target = $region17
    $region16: #{tpu_custom_call.1} parent=1 // pred_region
      _
    $region17: #{tpu_custom_call.1} parent=1 // pred_fallthru
      _
    // Predicated region
    $region18: #{tpu_custom_call.1} parent=1 // pred_check
      _
    $region19: #{tpu_custom_call.1} parent=1 // pred_check_branch
      %41 = sbr.rel (0) target = $region21
    $region20: #{tpu_custom_call.1} parent=1 // pred_region
      _
    $region21: #{tpu_custom_call.1} parent=1 // pred_fallthru
      _
    // Predicated region
    $region22: #{tpu_custom_call.1} parent=1 // pred_check
      _
    $region23: #{tpu_custom_call.1} parent=1 // pred_check_branch
      %43 = sbr.rel (0) target = $region25
    $region24: #{tpu_custom_call.1} parent=1 // pred_region
      _
    $region25: #{tpu_custom_call.1} parent=1 // pred_fallthru
      _
    // Predicated region
    $region26: #{tpu_custom_call.1} parent=1 // pred_check
      _
    $region27: #{tpu_custom_call.1} parent=1 // pred_check_branch
      %45 = sbr.rel (0) target = $region29
    $region28: #{tpu_custom_call.1} parent=1 // pred_region
      _
    $region29: #{tpu_custom_call.1} parent=1 // pred_fallthru
      _
    // Predicated region
    $region30: #{tpu_custom_call.1} parent=1 // pred_check
      _
    $region31: #{tpu_custom_call.1} parent=1 // pred_check_branch
      %47 = sbr.rel (0) target = $region33
    $region32: #{tpu_custom_call.1} parent=1 // pred_region
      _
    $region33: #{tpu_custom_call.1} parent=1 // pred_fallthru
      _
    // Predicated region
    $region34: #{tpu_custom_call.1} parent=1 // pred_check
      _
    $region35: #{tpu_custom_call.1} parent=1 // pred_check_branch
      %49 = sbr.rel (0) target = $region37
    $region36: #{tpu_custom_call.1} parent=1 // pred_region
      _
    $region37: #{tpu_custom_call.1} parent=1 // pred_fallthru
      _
    // Predicated region
    $region38: #{tpu_custom_call.1} parent=1 // pred_check
      _
    $region39: #{tpu_custom_call.1} parent=1 // pred_check_branch
      %51 = sbr.rel (0) target = $region41
    $region40: #{tpu_custom_call.1} parent=1 // pred_region
      _
    $region41: #{tpu_custom_call.1} parent=1 // pred_fallthru
      _
    // Predicated region
    $region42: #{tpu_custom_call.1} parent=1 // pred_check
      _
    $region43: #{tpu_custom_call.1} parent=1 // pred_check_branch
      %53 = sbr.rel (0) target = $region45
    $region44: #{tpu_custom_call.1} parent=1 // pred_region
      _
    $region45: #{tpu_custom_call.1} parent=1 // pred_fallthru
      _
    // Predicated region
    $region46: #{tpu_custom_call.1} parent=1 // pred_check
      _
    $region47: #{tpu_custom_call.1} parent=1 // pred_check_branch
      %55 = sbr.rel (0) target = $region49
    $region48: #{tpu_custom_call.1} parent=1 // pred_region
      _
    $region49: #{tpu_custom_call.1} parent=1 // pred_fallthru
      _
    // Predicated region
    $region50: #{tpu_custom_call.1} parent=1 // pred_check
      _
    $region51: #{tpu_custom_call.1} parent=1 // pred_check_branch
      %57 = sbr.rel (0) target = $region53
    $region52: #{tpu_custom_call.1} parent=1 // pred_region
      _
    $region53: #{tpu_custom_call.1} parent=1 // pred_fallthru
      _
    // Predicated region
    $region54: #{tpu_custom_call.1} parent=1 // pred_check
      _
    $region55: #{tpu_custom_call.1} parent=1 // pred_check_branch
      %59 = sbr.rel (0) target = $region57
    $region56: #{tpu_custom_call.1} parent=1 // pred_region
      _
    $region57: #{tpu_custom_call.1} parent=1 // pred_fallthru
      _
    // Predicated region
    $region58: #{tpu_custom_call.1} parent=1 // pred_check
      _
    $region59: #{tpu_custom_call.1} parent=1 // pred_check_branch
      %61 = sbr.rel (0) target = $region61
    $region60: #{tpu_custom_call.1} parent=1 // pred_region
      _
    $region61: #{tpu_custom_call.1} parent=1 // pred_fallthru
      _
    // Predicated region
    $region62: #{tpu_custom_call.1} parent=1 // pred_check
      _
    $region63: #{tpu_custom_call.1} parent=1 // pred_check_branch
      %63 = sbr.rel (0) target = $region65
    $region64: #{tpu_custom_call.1} parent=1 // pred_region
      %64 = dma.done [#allocation3], 256
    $region65: #{tpu_custom_call.1} parent=1 // pred_fallthru
      _
    %v65 = vld [vmem:[%s0] sm:$0xff]
    %v66 = vld [vmem:[%s0 + $0x8] sm:$0xff]
    %v67 = vld [vmem:[%s1] sm:$0xff]
    %v68 = vld [vmem:[%s1 + $0x8] sm:$0xff]
    %v69 = vld [vmem:[#allocation2] sm:$0xff]
    %v70 = vld [vmem:[#allocation2 + $0x8] sm:$0xff]
    %v71 = vld [vmem:[%s3] sm:$0x1]
    %v73 = vlaneseq
    %v74 = vshrl.u32 %v73, 7
    %v75 = vsub.s32 0, %v74
    %v76 = vrot.slane %v71, %v75
    %vm78 = vcmask 130048
    %v80 = vsel %vm78, %v67, 0
    %v83 = vsel %vm78, %v68, 0
    %85 = vmatprep.subr.mxu0 0.0
    %86 = vmatpush1.msra.mxu0 0.0
    %87 = vmatprep.subr.mxu0 0.0
    %88 = vmatpush1.msra.mxu0 0.0
    %89 = vmatprep.subr.mxu0 0.0
    %90 = vmatpush1.msra.mxu0 0.0
    %91 = vmatprep.subr.mxu0 0.0
    %92 = vmatpush1.msra.mxu0 0.0
    %93 = vmatprep.subr.mxu0 0.0
    %94 = vmatpush1.msra.mxu0 0.0
    %95 = vmatprep.subr.mxu0 0.0
    %96 = vmatpush1.msra.mxu0 0.0
    %97 = vmatprep.subr.mxu0 0.0
    %98 = vmatpush1.msra.mxu0 0.0
    %99 = vmatprep.subr.mxu0 0.0
    %100 = vmatpush1.msra.mxu0 0.0
    %101 = vmatprep.subr.mxu0 0.0
    %102 = vmatpush1.msra.mxu0 0.0
    %103 = vmatprep.subr.mxu0 0.0
    %104 = vmatpush1.msra.mxu0 0.0
    %105 = vmatprep.subr.mxu0 0.0
    %106 = vmatpush1.msra.mxu0 0.0
    %107 = vmatprep.subr.mxu0 0.0
    %108 = vmatpush1.msra.mxu0 0.0
    %109 = vmatprep.subr.mxu0 0.0
    %110 = vmatpush1.msra.mxu0 0.0
    %111 = vmatprep.subr.mxu0 0.0
    %112 = vmatpush1.msra.mxu0 0.0
    %113 = vmatprep.subr.mxu0 0.0
    %114 = vmatpush1.msra.mxu0 %v70
    %115 = vmatprep.subr.mxu0 0.0
    %116 = vmatpush1.msra.mxu0 %v69
    %117 = vmatprep.subr.mxu0 0.0
    %118 = vmatpush2.msra.mxu0 0.0
    %119 = vmatprep.subr.mxu0 0.0
    %120 = vmatpush2.msra.mxu0 0.0
    %121 = vmatprep.subr.mxu0 0.0
    %122 = vmatpush2.msra.mxu0 0.0
    %123 = vmatprep.subr.mxu0 0.0
    %124 = vmatpush2.msra.mxu0 0.0
    %125 = vmatprep.subr.mxu0 0.0
    %126 = vmatpush2.msra.mxu0 0.0
    %127 = vmatprep.subr.mxu0 0.0
    %128 = vmatpush2.msra.mxu0 0.0
    %129 = vmatprep.subr.mxu0 0.0
    %130 = vmatpush2.msra.mxu0 0.0
    %131 = vmatprep.subr.mxu0 0.0
    %132 = vmatpush2.msra.mxu0 0.0
    %133 = vmatprep.subr.mxu0 0.0
    %134 = vmatpush2.msra.mxu0 0.0
    %135 = vmatprep.subr.mxu0 0.0
    %136 = vmatpush2.msra.mxu0 0.0
    %137 = vmatprep.subr.mxu0 0.0
    %138 = vmatpush2.msra.mxu0 0.0
    %139 = vmatprep.subr.mxu0 0.0
    %140 = vmatpush2.msra.mxu0 0.0
    %141 = vmatprep.subr.mxu0 0.0
    %142 = vmatpush2.msra.mxu0 0.0
    %143 = vmatprep.subr.mxu0 0.0
    %144 = vmatpush2.msra.mxu0 0.0
    %145 = vmatprep.subr.mxu0 0.0
    %146 = vmatpush2.msra.mxu0 0.0
    %147 = vmatprep.subr.mxu0 0.0
    %148 = vmatpush2.msra.mxu0 0.0
    %149 = vmatprep.mubr.f32.mxu0 0.0
    %150 = vmatmul.mubr.f32.gmra.mxu0 %v80
    %v151 = vpop.f32.mrf.mxu0
    %v152 = vadd.f32 %v76, %v151
    %v153 = vpop.f32.mrf.mxu0
    %154 = vmatprep.mubr.f32.mxu0 0.0
    %155 = vmatmul.mubr.f32.gmra.mxu0 %v83
    %v156 = vpop.f32.mrf.mxu0
    %v157 = vadd.f32 %v76, %v156
    %v158 = vpop.f32.mrf.mxu0
    %159 = vdwg.mxu0
    %v160 = vld [vmem:[%s4] sm:$0x1]
    %v161 = vld [vmem:[%s5] sm:$0x1]
    %vm162 = vcmask 261120
    %v163 = vsel %vm162, %v65, 0.0
    %164 = vadd.xlane.f32.xlu0 %v163
    %v165 = vpop.xlane.xlu0 %164
    %v166 = vsel %vm162, %v66, 0.0
    %167 = vadd.xlane.f32.xlu0 %v166
    %v168 = vpop.xlane.xlu0 %167
    %v169 = vrcp.pop 32.0
    %v170 = vmul.f32 %v165, %v169
    %v171 = vmul.f32 %v168, %v169
    %v172 = vsub.f32 %v65, %v170
    %v173 = vsub.f32 %v66, %v171
    %v174 = vmul.f32 %v172, %v172
    %v175 = vmul.f32 %v173, %v173
    %v176 = vsel %vm162, %v174, 0.0
    %177 = vadd.xlane.f32.xlu0 %v176
    %v178 = vpop.xlane.xlu0 %177
    %v179 = vsel %vm162, %v175, 0.0
    %180 = vadd.xlane.f32.xlu0 %v179
    %v181 = vpop.xlane.xlu0 %180
    %v182 = vmul.f32 %v178, %v169
    %v183 = vmul.f32 %v181, %v169
    %v184 = vadd.f32 %v182, 1e-05
    %v185 = vadd.f32 %v183, 1e-05
    %v186 = vrsqrt.pop %v184
    %v187 = vrsqrt.pop %v185
    %v188 = vmul.f32 %v172, %v186
    %v189 = vmul.f32 %v173, %v187
    %v191 = vlaneseq
    %v192 = vshrl.u32 %v191, 7
    %v193 = vsub.s32 0, %v192
    %v194 = vrot.slane %v160, %v193
    %v196 = vmul.f32 %v188, %v194
    %v197 = vmul.f32 %v189, %v194
    %v199 = vlaneseq
    %v200 = vshrl.u32 %v199, 7
    %v201 = vsub.s32 0, %v200
    %v202 = vrot.slane %v161, %v201
    %v204 = vadd.f32 %v196, %v202
    %v205 = vadd.f32 %v197, %v202
    %v206 = vsel %vm162, %v152, 0.0
    %207 = vadd.xlane.f32.xlu0 %v206
    %v208 = vpop.xlane.xlu0 %207
    %v209 = vsel %vm162, %v157, 0.0
    %210 = vadd.xlane.f32.xlu0 %v209
    %v211 = vpop.xlane.xlu0 %210
    %v212 = vmul.f32 %v208, %v169
    %v213 = vmul.f32 %v211, %v169
    %v214 = vsub.f32 %v152, %v212
    %v215 = vsub.f32 %v157, %v213
    %v216 = vmul.f32 %v214, %v214
    %v217 = vmul.f32 %v215, %v215
    %v218 = vsel %vm162, %v216, 0.0
    %219 = vadd.xlane.f32.xlu0 %v218
    %v220 = vpop.xlane.xlu0 %219
    %v221 = vsel %vm162, %v217, 0.0
    %222 = vadd.xlane.f32.xlu0 %v221
    %v223 = vpop.xlane.xlu0 %222
    %v224 = vmul.f32 %v220, %v169
    %v225 = vmul.f32 %v223, %v169
    %v226 = vadd.f32 %v224, 1e-05
    %v227 = vadd.f32 %v225, 1e-05
    %v228 = vrsqrt.pop %v226
    %v229 = vrsqrt.pop %v227
    %v230 = vmul.f32 %v214, %v228
    %v231 = vmul.f32 %v215, %v229
    %v232 = vmul.f32 %v230, %v194
    %v233 = vmul.f32 %v231, %v194
    %v234 = vadd.f32 %v232, %v202
    %v235 = vadd.f32 %v233, %v202
    %v236 = vld [vmem:[%s6] sm:$0xff]
    %v237 = vld [vmem:[%s6 + $0x8] sm:$0xff]
    %v238 = vld [vmem:[%s6 + $0x10] sm:$0xff]
    %v239 = vld [vmem:[%s6 + $0x18] sm:$0xff]
    %v241 = vsel %vm162, %v204, 0
    %v244 = vsel %vm162, %v234, 0
    %v247 = vsel %vm162, %v205, 0
    %v250 = vsel %vm162, %v235, 0
    %252 = vmatprep.subr.mxu0 0.0
    %253 = vmatpush1.msra.mxu0 0.0
    %254 = vmatprep.subr.mxu0 0.0
    %255 = vmatpush1.msra.mxu0 0.0
    %256 = vmatprep.subr.mxu0 0.0
    %257 = vmatpush1.msra.mxu0 0.0
    %258 = vmatprep.subr.mxu0 0.0
    %259 = vmatpush1.msra.mxu0 0.0
    %260 = vmatprep.subr.mxu0 0.0
    %261 = vmatpush1.msra.mxu0 0.0
    %262 = vmatprep.subr.mxu0 0.0
    %263 = vmatpush1.msra.mxu0 0.0
    %264 = vmatprep.subr.mxu0 0.0
    %265 = vmatpush1.msra.mxu0 0.0
    %266 = vmatprep.subr.mxu0 0.0
    %267 = vmatpush1.msra.mxu0 0.0
    %268 = vmatprep.subr.mxu0 0.0
    %269 = vmatpush1.msra.mxu0 0.0
    %270 = vmatprep.subr.mxu0 0.0
    %271 = vmatpush1.msra.mxu0 0.0
    %272 = vmatprep.subr.mxu0 0.0
    %273 = vmatpush1.msra.mxu0 0.0
    %274 = vmatprep.subr.mxu0 0.0
    %275 = vmatpush1.msra.mxu0 0.0
    %276 = vmatprep.subr.mxu0 0.0
    %277 = vmatpush1.msra.mxu0 %v239
    %278 = vmatprep.subr.mxu0 0.0
    %279 = vmatpush1.msra.mxu0 %v238
    %280 = vmatprep.subr.mxu0 0.0
    %281 = vmatpush1.msra.mxu0 %v237
    %282 = vmatprep.subr.mxu0 0.0
    %283 = vmatpush1.msra.mxu0 %v236
    %284 = vmatprep.subr.mxu0 0.0
    %285 = vmatpush2.msra.mxu0 0.0
    %286 = vmatprep.subr.mxu0 0.0
    %287 = vmatpush2.msra.mxu0 0.0
    %288 = vmatprep.subr.mxu0 0.0
    %289 = vmatpush2.msra.mxu0 0.0
    %290 = vmatprep.subr.mxu0 0.0
    %291 = vmatpush2.msra.mxu0 0.0
    %292 = vmatprep.subr.mxu0 0.0
    %293 = vmatpush2.msra.mxu0 0.0
    %294 = vmatprep.subr.mxu0 0.0
    %295 = vmatpush2.msra.mxu0 0.0
    %296 = vmatprep.subr.mxu0 0.0
    %297 = vmatpush2.msra.mxu0 0.0
    %298 = vmatprep.subr.mxu0 0.0
    %299 = vmatpush2.msra.mxu0 0.0
    %300 = vmatprep.subr.mxu0 0.0
    %301 = vmatpush2.msra.mxu0 0.0
    %302 = vmatprep.subr.mxu0 0.0
    %303 = vmatpush2.msra.mxu0 0.0
    %304 = vmatprep.subr.mxu0 0.0
    %305 = vmatpush2.msra.mxu0 0.0
    %306 = vmatprep.subr.mxu0 0.0
    %307 = vmatpush2.msra.mxu0 0.0
    %308 = vmatprep.subr.mxu0 0.0
    %309 = vmatpush2.msra.mxu0 0.0
    %310 = vmatprep.subr.mxu0 0.0
    %311 = vmatpush2.msra.mxu0 0.0
    %312 = vmatprep.subr.mxu0 0.0
    %313 = vmatpush2.msra.mxu0 0.0
    %314 = vmatprep.subr.mxu0 0.0
    %315 = vmatpush2.msra.mxu0 0.0
    %316 = vmatprep.mubr.f32.mxu0 0.0
    %317 = vmatmul.mubr.f32.gmra.mxu0 %v241
    %v318 = vpop.f32.mrf.mxu0
    %v319 = vadd.f32 0.0, %v318
    %v320 = vpop.f32.mrf.mxu0
    %321 = vmatprep.mubr.f32.mxu0 0.0
    %322 = vmatmul.mubr.f32.gmra.mxu0 %v244
    %v323 = vpop.f32.mrf.mxu0
    %v324 = vadd.f32 0.0, %v323
    %v325 = vpop.f32.mrf.mxu0
    %326 = vmatprep.mubr.f32.mxu0 0.0
    %327 = vmatmul.mubr.f32.gmra.mxu0 %v247
    %v328 = vpop.f32.mrf.mxu0
    %v329 = vadd.f32 0.0, %v328
    %v330 = vpop.f32.mrf.mxu0
    %331 = vmatprep.mubr.f32.mxu0 0.0
    %332 = vmatmul.mubr.f32.gmra.mxu0 %v250
    %v333 = vpop.f32.mrf.mxu0
    %v334 = vadd.f32 0.0, %v333
    %v335 = vpop.f32.mrf.mxu0
    %336 = vdwg.mxu0
    %339 = vrot.lane.b32.xlu0 %v319, 96
    %v340 = vpop.permute.xlu0 %339
    %341 = vrot.lane.b32.xlu0 %v324, 96
    %v342 = vpop.permute.xlu0 %341
    %vm343 = vcmask 64512
    %v344 = vsel %vm343, %v319, 0
    %v346 = vsel %vm343, %v340, 0
    %v348 = vsel %vm343, %v342, 0
    %350 = vmatprep.subr.mxu0 0.0
    %351 = vmatpush1.xpose.msra.mxu0 0.0
    %352 = vmatprep.subr.mxu0 0.0
    %353 = vmatpush1.xpose.msra.mxu0 0.0
    %354 = vmatprep.subr.mxu0 0.0
    %355 = vmatpush1.xpose.msra.mxu0 0.0
    %356 = vmatprep.subr.mxu0 0.0
    %357 = vmatpush1.xpose.msra.mxu0 0.0
    %358 = vmatprep.subr.mxu0 0.0
    %359 = vmatpush1.xpose.msra.mxu0 0.0
    %360 = vmatprep.subr.mxu0 0.0
    %361 = vmatpush1.xpose.msra.mxu0 0.0
    %362 = vmatprep.subr.mxu0 0.0
    %363 = vmatpush1.xpose.msra.mxu0 0.0
    %364 = vmatprep.subr.mxu0 0.0
    %365 = vmatpush1.xpose.msra.mxu0 0.0
    %366 = vmatprep.subr.mxu0 0.0
    %367 = vmatpush1.xpose.msra.mxu0 0.0
    %368 = vmatprep.subr.mxu0 0.0
    %369 = vmatpush1.xpose.msra.mxu0 0.0
    %370 = vmatprep.subr.mxu0 0.0
    %371 = vmatpush1.xpose.msra.mxu0 0.0
    %372 = vmatprep.subr.mxu0 0.0
    %373 = vmatpush1.xpose.msra.mxu0 0.0
    %374 = vmatprep.subr.mxu0 0.0
    %375 = vmatpush1.xpose.msra.mxu0 0.0
    %376 = vmatprep.subr.mxu0 0.0
    %377 = vmatpush1.xpose.msra.mxu0 0.0
    %378 = vmatprep.subr.mxu0 0.0
    %379 = vmatpush1.xpose.msra.mxu0 %v348
    %380 = vmatprep.subr.mxu0 0.0
    %381 = vmatpush1.xpose.msra.mxu0 %v346
    %382 = vmatprep.subr.mxu0 0.0
    %383 = vmatpush2.xpose.msra.mxu0 0.0
    %384 = vmatprep.subr.mxu0 0.0
    %385 = vmatpush2.xpose.msra.mxu0 0.0
    %386 = vmatprep.subr.mxu0 0.0
    %387 = vmatpush2.xpose.msra.mxu0 0.0
    %388 = vmatprep.subr.mxu0 0.0
    %389 = vmatpush2.xpose.msra.mxu0 0.0
    %390 = vmatprep.subr.mxu0 0.0
    %391 = vmatpush2.xpose.msra.mxu0 0.0
    %392 = vmatprep.subr.mxu0 0.0
    %393 = vmatpush2.xpose.msra.mxu0 0.0
    %394 = vmatprep.subr.mxu0 0.0
    %395 = vmatpush2.xpose.msra.mxu0 0.0
    %396 = vmatprep.subr.mxu0 0.0
    %397 = vmatpush2.xpose.msra.mxu0 0.0
    %398 = vmatprep.subr.mxu0 0.0
    %399 = vmatpush2.xpose.msra.mxu0 0.0
    %400 = vmatprep.subr.mxu0 0.0
    %401 = vmatpush2.xpose.msra.mxu0 0.0
    %402 = vmatprep.subr.mxu0 0.0
    %403 = vmatpush2.xpose.msra.mxu0 0.0
    %404 = vmatprep.subr.mxu0 0.0
    %405 = vmatpush2.xpose.msra.mxu0 0.0
    %406 = vmatprep.subr.mxu0 0.0
    %407 = vmatpush2.xpose.msra.mxu0 0.0
    %408 = vmatprep.subr.mxu0 0.0
    %409 = vmatpush2.xpose.msra.mxu0 0.0
    %410 = vmatprep.subr.mxu0 0.0
    %411 = vmatpush2.xpose.msra.mxu0 0.0
    %412 = vmatprep.subr.mxu0 0.0
    %413 = vmatpush2.xpose.msra.mxu0 0.0
    %414 = vmatprep.mubr.f32.mxu0 0.0
    %415 = vmatmul.mubr.f32.gmra.mxu0 %v344
    %v416 = vpop.f32.mrf.mxu0
    %v417 = vadd.f32 0.0, %v416
    %v418 = vpop.f32.mrf.mxu0
    %419 = vdwg.mxu0
    %v420 = vsel %vm78, %v417, -inf
    %421 = vmax.xlane.f32.xlu0 %v420
    %v422 = vpop.xlane.xlu0 %421
    %v423 = vsub.f32 %v417, %v422
    %v424 = vmul.f32 %v423, 1.442695
    %v425 = vpow.pop %v424
    %v426 = vsel %vm78, %v425, 0.0
    %427 = vadd.xlane.f32.xlu0 %v426
    %v428 = vpop.xlane.xlu0 %427
    %v429 = vrcp.pop %v428
    %v430 = vmul.f32 %v425, %v429
    %431 = vrot.lane.b32.xlu0 %v319, 64
    %v432 = vpop.permute.xlu0 %431
    %433 = vrot.lane.b32.xlu0 %v324, 64
    %v434 = vpop.permute.xlu0 %433
    %v438 = vsel %vm78, %v430, 0
    %440 = vmatprep.subr.mxu0 0.0
    %441 = vmatpush1.msra.mxu0 0.0
    %442 = vmatprep.subr.mxu0 0.0
    %443 = vmatpush1.msra.mxu0 0.0
    %444 = vmatprep.subr.mxu0 0.0
    %445 = vmatpush1.msra.mxu0 0.0
    %446 = vmatprep.subr.mxu0 0.0
    %447 = vmatpush1.msra.mxu0 0.0
    %448 = vmatprep.subr.mxu0 0.0
    %449 = vmatpush1.msra.mxu0 0.0
    %450 = vmatprep.subr.mxu0 0.0
    %451 = vmatpush1.msra.mxu0 0.0
    %452 = vmatprep.subr.mxu0 0.0
    %453 = vmatpush1.msra.mxu0 0.0
    %454 = vmatprep.subr.mxu0 0.0
    %455 = vmatpush1.msra.mxu0 0.0
    %456 = vmatprep.subr.mxu0 0.0
    %457 = vmatpush1.msra.mxu0 0.0
    %458 = vmatprep.subr.mxu0 0.0
    %459 = vmatpush1.msra.mxu0 0.0
    %460 = vmatprep.subr.mxu0 0.0
    %461 = vmatpush1.msra.mxu0 0.0
    %462 = vmatprep.subr.mxu0 0.0
    %463 = vmatpush1.msra.mxu0 0.0
    %464 = vmatprep.subr.mxu0 0.0
    %465 = vmatpush1.msra.mxu0 0.0
    %466 = vmatprep.subr.mxu0 0.0
    %467 = vmatpush1.msra.mxu0 0.0
    %468 = vmatprep.subr.mxu0 0.0
    %469 = vmatpush1.msra.mxu0 %v434
    %470 = vmatprep.subr.mxu0 0.0
    %471 = vmatpush1.msra.mxu0 %v432
    %472 = vmatprep.subr.mxu0 0.0
    %473 = vmatpush2.msra.mxu0 0.0
    %474 = vmatprep.subr.mxu0 0.0
    %475 = vmatpush2.msra.mxu0 0.0
    %476 = vmatprep.subr.mxu0 0.0
    %477 = vmatpush2.msra.mxu0 0.0
    %478 = vmatprep.subr.mxu0 0.0
    %479 = vmatpush2.msra.mxu0 0.0
    %480 = vmatprep.subr.mxu0 0.0
    %481 = vmatpush2.msra.mxu0 0.0
    %482 = vmatprep.subr.mxu0 0.0
    %483 = vmatpush2.msra.mxu0 0.0
    %484 = vmatprep.subr.mxu0 0.0
    %485 = vmatpush2.msra.mxu0 0.0
    %486 = vmatprep.subr.mxu0 0.0
    %487 = vmatpush2.msra.mxu0 0.0
    %488 = vmatprep.subr.mxu0 0.0
    %489 = vmatpush2.msra.mxu0 0.0
    %490 = vmatprep.subr.mxu0 0.0
    %491 = vmatpush2.msra.mxu0 0.0
    %492 = vmatprep.subr.mxu0 0.0
    %493 = vmatpush2.msra.mxu0 0.0
    %494 = vmatprep.subr.mxu0 0.0
    %495 = vmatpush2.msra.mxu0 0.0
    %496 = vmatprep.subr.mxu0 0.0
    %497 = vmatpush2.msra.mxu0 0.0
    %498 = vmatprep.subr.mxu0 0.0
    %499 = vmatpush2.msra.mxu0 0.0
    %500 = vmatprep.subr.mxu0 0.0
    %501 = vmatpush2.msra.mxu0 0.0
    %502 = vmatprep.subr.mxu0 0.0
    %503 = vmatpush2.msra.mxu0 0.0
    %504 = vmatprep.mubr.f32.mxu0 0.0
    %505 = vmatmul.mubr.f32.gmra.mxu0 %v438
    %v506 = vpop.f32.mrf.mxu0
    %v507 = vadd.f32 0.0, %v506
    %v508 = vpop.f32.mrf.mxu0
    %509 = vdwg.mxu0
    %v510 = vld [vmem:[%s7] sm:$0xff]
    %511 = vrot.lane.b32.xlu0 %v319, 120
    %v512 = vpop.permute.xlu0 %511
    %513 = vrot.lane.b32.xlu0 %v319, 88
    %v514 = vpop.permute.xlu0 %513
    %515 = vrot.lane.b32.xlu0 %v324, 88
    %v516 = vpop.permute.xlu0 %515
    %v517 = vsel %vm343, %v512, 0
    %v519 = vsel %vm343, %v514, 0
    %v521 = vsel %vm343, %v516, 0
    %523 = vmatprep.subr.mxu0 0.0
    %524 = vmatpush1.xpose.msra.mxu0 0.0
    %525 = vmatprep.subr.mxu0 0.0
    %526 = vmatpush1.xpose.msra.mxu0 0.0
    %527 = vmatprep.subr.mxu0 0.0
    %528 = vmatpush1.xpose.msra.mxu0 0.0
    %529 = vmatprep.subr.mxu0 0.0
    %530 = vmatpush1.xpose.msra.mxu0 0.0
    %531 = vmatprep.subr.mxu0 0.0
    %532 = vmatpush1.xpose.msra.mxu0 0.0
    %533 = vmatprep.subr.mxu0 0.0
    %534 = vmatpush1.xpose.msra.mxu0 0.0
    %535 = vmatprep.subr.mxu0 0.0
    %536 = vmatpush1.xpose.msra.mxu0 0.0
    %537 = vmatprep.subr.mxu0 0.0
    %538 = vmatpush1.xpose.msra.mxu0 0.0
    %539 = vmatprep.subr.mxu0 0.0
    %540 = vmatpush1.xpose.msra.mxu0 0.0
    %541 = vmatprep.subr.mxu0 0.0
    %542 = vmatpush1.xpose.msra.mxu0 0.0
    %543 = vmatprep.subr.mxu0 0.0
    %544 = vmatpush1.xpose.msra.mxu0 0.0
    %545 = vmatprep.subr.mxu0 0.0
    %546 = vmatpush1.xpose.msra.mxu0 0.0
    %547 = vmatprep.subr.mxu0 0.0
    %548 = vmatpush1.xpose.msra.mxu0 0.0
    %549 = vmatprep.subr.mxu0 0.0
    %550 = vmatpush1.xpose.msra.mxu0 0.0
    %551 = vmatprep.subr.mxu0 0.0
    %552 = vmatpush1.xpose.msra.mxu0 %v521
    %553 = vmatprep.subr.mxu0 0.0
    %554 = vmatpush1.xpose.msra.mxu0 %v519
    %555 = vmatprep.subr.mxu0 0.0
    %556 = vmatpush2.xpose.msra.mxu0 0.0
    %557 = vmatprep.subr.mxu0 0.0
    %558 = vmatpush2.xpose.msra.mxu0 0.0
    %559 = vmatprep.subr.mxu0 0.0
    %560 = vmatpush2.xpose.msra.mxu0 0.0
    %561 = vmatprep.subr.mxu0 0.0
    %562 = vmatpush2.xpose.msra.mxu0 0.0
    %563 = vmatprep.subr.mxu0 0.0
    %564 = vmatpush2.xpose.msra.mxu0 0.0
    %565 = vmatprep.subr.mxu0 0.0
    %566 = vmatpush2.xpose.msra.mxu0 0.0
    %567 = vmatprep.subr.mxu0 0.0
    %568 = vmatpush2.xpose.msra.mxu0 0.0
    %569 = vmatprep.subr.mxu0 0.0
    %570 = vmatpush2.xpose.msra.mxu0 0.0
    %571 = vmatprep.subr.mxu0 0.0
    %572 = vmatpush2.xpose.msra.mxu0 0.0
    %573 = vmatprep.subr.mxu0 0.0
    %574 = vmatpush2.xpose.msra.mxu0 0.0
    %575 = vmatprep.subr.mxu0 0.0
    %576 = vmatpush2.xpose.msra.mxu0 0.0
    %577 = vmatprep.subr.mxu0 0.0
    %578 = vmatpush2.xpose.msra.mxu0 0.0
    %579 = vmatprep.subr.mxu0 0.0
    %580 = vmatpush2.xpose.msra.mxu0 0.0
    %581 = vmatprep.subr.mxu0 0.0
    %582 = vmatpush2.xpose.msra.mxu0 0.0
    %583 = vmatprep.subr.mxu0 0.0
    %584 = vmatpush2.xpose.msra.mxu0 0.0
    %585 = vmatprep.subr.mxu0 0.0
    %586 = vmatpush2.xpose.msra.mxu0 0.0
    %587 = vmatprep.mubr.f32.mxu0 0.0
    %588 = vmatmul.mubr.f32.gmra.mxu0 %v517
    %v589 = vpop.f32.mrf.mxu0
    %v590 = vadd.f32 0.0, %v589
    %v591 = vpop.f32.mrf.mxu0
    %592 = vdwg.mxu0
    %v593 = vsel %vm78, %v590, -inf
    %594 = vmax.xlane.f32.xlu0 %v593
    %v595 = vpop.xlane.xlu0 %594
    %v596 = vsub.f32 %v590, %v595
    %v597 = vmul.f32 %v596, 1.442695
    %v598 = vpow.pop %v597
    %v599 = vsel %vm78, %v598, 0.0
    %600 = vadd.xlane.f32.xlu0 %v599
    %v601 = vpop.xlane.xlu0 %600
    %v602 = vrcp.pop %v601
    %v603 = vmul.f32 %v598, %v602
    %604 = vrot.lane.b32.xlu0 %v319, 56
    %v605 = vpop.permute.xlu0 %604
    %606 = vrot.lane.b32.xlu0 %v324, 56
    %v607 = vpop.permute.xlu0 %606
    %v611 = vsel %vm78, %v603, 0
    %613 = vmatprep.subr.mxu0 0.0
    %614 = vmatpush1.msra.mxu0 0.0
    %615 = vmatprep.subr.mxu0 0.0
    %616 = vmatpush1.msra.mxu0 0.0
    %617 = vmatprep.subr.mxu0 0.0
    %618 = vmatpush1.msra.mxu0 0.0
    %619 = vmatprep.subr.mxu0 0.0
    %620 = vmatpush1.msra.mxu0 0.0
    %621 = vmatprep.subr.mxu0 0.0
    %622 = vmatpush1.msra.mxu0 0.0
    %623 = vmatprep.subr.mxu0 0.0
    %624 = vmatpush1.msra.mxu0 0.0
    %625 = vmatprep.subr.mxu0 0.0
    %626 = vmatpush1.msra.mxu0 0.0
    %627 = vmatprep.subr.mxu0 0.0
    %628 = vmatpush1.msra.mxu0 0.0
    %629 = vmatprep.subr.mxu0 0.0
    %630 = vmatpush1.msra.mxu0 0.0
    %631 = vmatprep.subr.mxu0 0.0
    %632 = vmatpush1.msra.mxu0 0.0
    %633 = vmatprep.subr.mxu0 0.0
    %634 = vmatpush1.msra.mxu0 0.0
    %635 = vmatprep.subr.mxu0 0.0
    %636 = vmatpush1.msra.mxu0 0.0
    %637 = vmatprep.subr.mxu0 0.0
    %638 = vmatpush1.msra.mxu0 0.0
    %639 = vmatprep.subr.mxu0 0.0
    %640 = vmatpush1.msra.mxu0 0.0
    %641 = vmatprep.subr.mxu0 0.0
    %642 = vmatpush1.msra.mxu0 %v607
    %643 = vmatprep.subr.mxu0 0.0
    %644 = vmatpush1.msra.mxu0 %v605
    %645 = vmatprep.subr.mxu0 0.0
    %646 = vmatpush2.msra.mxu0 0.0
    %647 = vmatprep.subr.mxu0 0.0
    %648 = vmatpush2.msra.mxu0 0.0
    %649 = vmatprep.subr.mxu0 0.0
    %650 = vmatpush2.msra.mxu0 0.0
    %651 = vmatprep.subr.mxu0 0.0
    %652 = vmatpush2.msra.mxu0 0.0
    %653 = vmatprep.subr.mxu0 0.0
    %654 = vmatpush2.msra.mxu0 0.0
    %655 = vmatprep.subr.mxu0 0.0
    %656 = vmatpush2.msra.mxu0 0.0
    %657 = vmatprep.subr.mxu0 0.0
    %658 = vmatpush2.msra.mxu0 0.0
    %659 = vmatprep.subr.mxu0 0.0
    %660 = vmatpush2.msra.mxu0 0.0
    %661 = vmatprep.subr.mxu0 0.0
    %662 = vmatpush2.msra.mxu0 0.0
    %663 = vmatprep.subr.mxu0 0.0
    %664 = vmatpush2.msra.mxu0 0.0
    %665 = vmatprep.subr.mxu0 0.0
    %666 = vmatpush2.msra.mxu0 0.0
    %667 = vmatprep.subr.mxu0 0.0
    %668 = vmatpush2.msra.mxu0 0.0
    %669 = vmatprep.subr.mxu0 0.0
    %670 = vmatpush2.msra.mxu0 0.0
    %671 = vmatprep.subr.mxu0 0.0
    %672 = vmatpush2.msra.mxu0 0.0
    %673 = vmatprep.subr.mxu0 0.0
    %674 = vmatpush2.msra.mxu0 0.0
    %675 = vmatprep.subr.mxu0 0.0
    %676 = vmatpush2.msra.mxu0 0.0
    %677 = vmatprep.mubr.f32.mxu0 0.0
    %678 = vmatmul.mubr.f32.gmra.mxu0 %v611
    %v679 = vpop.f32.mrf.mxu0
    %v680 = vadd.f32 0.0, %v679
    %v681 = vpop.f32.mrf.mxu0
    %682 = vdwg.mxu0
    %v683 = vld [vmem:[%s7 + $0x8] sm:$0xff]
    %v685 = vsel %vm343, %v680, 0
    %687 = vmatprep.subr.mxu0 0.0
    %688 = vmatpush1.msra.mxu0 0.0
    %689 = vmatprep.subr.mxu0 0.0
    %690 = vmatpush1.msra.mxu0 0.0
    %691 = vmatprep.subr.mxu0 0.0
    %692 = vmatpush1.msra.mxu0 0.0
    %693 = vmatprep.subr.mxu0 0.0
    %694 = vmatpush1.msra.mxu0 0.0
    %695 = vmatprep.subr.mxu0 0.0
    %696 = vmatpush1.msra.mxu0 0.0
    %697 = vmatprep.subr.mxu0 0.0
    %698 = vmatpush1.msra.mxu0 0.0
    %699 = vmatprep.subr.mxu0 0.0
    %700 = vmatpush1.msra.mxu0 0.0
    %701 = vmatprep.subr.mxu0 0.0
    %702 = vmatpush1.msra.mxu0 0.0
    %703 = vmatprep.subr.mxu0 0.0
    %704 = vmatpush1.msra.mxu0 0.0
    %705 = vmatprep.subr.mxu0 0.0
    %706 = vmatpush1.msra.mxu0 0.0
    %707 = vmatprep.subr.mxu0 0.0
    %708 = vmatpush1.msra.mxu0 0.0
    %709 = vmatprep.subr.mxu0 0.0
    %710 = vmatpush1.msra.mxu0 0.0
    %711 = vmatprep.subr.mxu0 0.0
    %712 = vmatpush1.msra.mxu0 0.0
    %713 = vmatprep.subr.mxu0 0.0
    %714 = vmatpush1.msra.mxu0 0.0
    %715 = vmatprep.subr.mxu0 0.0
    %716 = vmatpush1.msra.mxu0 0.0
    %717 = vmatprep.subr.mxu0 0.0
    %718 = vmatpush1.msra.mxu0 %v683
    %719 = vmatprep.subr.mxu0 0.0
    %720 = vmatpush2.msra.mxu0 0.0
    %721 = vmatprep.subr.mxu0 0.0
    %722 = vmatpush2.msra.mxu0 0.0
    %723 = vmatprep.subr.mxu0 0.0
    %724 = vmatpush2.msra.mxu0 0.0
    %725 = vmatprep.subr.mxu0 0.0
    %726 = vmatpush2.msra.mxu0 0.0
    %727 = vmatprep.subr.mxu0 0.0
    %728 = vmatpush2.msra.mxu0 0.0
    %729 = vmatprep.subr.mxu0 0.0
    %730 = vmatpush2.msra.mxu0 0.0
    %731 = vmatprep.subr.mxu0 0.0
    %732 = vmatpush2.msra.mxu0 0.0
    %733 = vmatprep.subr.mxu0 0.0
    %734 = vmatpush2.msra.mxu0 0.0
    %735 = vmatprep.subr.mxu0 0.0
    %736 = vmatpush2.msra.mxu0 0.0
    %737 = vmatprep.subr.mxu0 0.0
    %738 = vmatpush2.msra.mxu0 0.0
    %739 = vmatprep.subr.mxu0 0.0
    %740 = vmatpush2.msra.mxu0 0.0
    %741 = vmatprep.subr.mxu0 0.0
    %742 = vmatpush2.msra.mxu0 0.0
    %743 = vmatprep.subr.mxu0 0.0
    %744 = vmatpush2.msra.mxu0 0.0
    %745 = vmatprep.subr.mxu0 0.0
    %746 = vmatpush2.msra.mxu0 0.0
    %747 = vmatprep.subr.mxu0 0.0
    %748 = vmatpush2.msra.mxu0 0.0
    %749 = vmatprep.subr.mxu0 0.0
    %750 = vmatpush2.msra.mxu0 0.0
    %751 = vmatprep.mubr.f32.mxu0 0.0
    %752 = vmatmul.mubr.f32.gmra.mxu0 %v685
    %v753 = vpop.f32.mrf.mxu0
    %v754 = vadd.f32 0.0, %v753
    %v755 = vpop.f32.mrf.mxu0
    %756 = vdwg.mxu0
    %v758 = vsel %vm343, %v507, 0
    %760 = vmatprep.subr.mxu0 0.0
    %761 = vmatpush1.msra.mxu0 0.0
    %762 = vmatprep.subr.mxu0 0.0
    %763 = vmatpush1.msra.mxu0 0.0
    %764 = vmatprep.subr.mxu0 0.0
    %765 = vmatpush1.msra.mxu0 0.0
    %766 = vmatprep.subr.mxu0 0.0
    %767 = vmatpush1.msra.mxu0 0.0
    %768 = vmatprep.subr.mxu0 0.0
    %769 = vmatpush1.msra.mxu0 0.0
    %770 = vmatprep.subr.mxu0 0.0
    %771 = vmatpush1.msra.mxu0 0.0
    %772 = vmatprep.subr.mxu0 0.0
    %773 = vmatpush1.msra.mxu0 0.0
    %774 = vmatprep.subr.mxu0 0.0
    %775 = vmatpush1.msra.mxu0 0.0
    %776 = vmatprep.subr.mxu0 0.0
    %777 = vmatpush1.msra.mxu0 0.0
    %778 = vmatprep.subr.mxu0 0.0
    %779 = vmatpush1.msra.mxu0 0.0
    %780 = vmatprep.subr.mxu0 0.0
    %781 = vmatpush1.msra.mxu0 0.0
    %782 = vmatprep.subr.mxu0 0.0
    %783 = vmatpush1.msra.mxu0 0.0
    %784 = vmatprep.subr.mxu0 0.0
    %785 = vmatpush1.msra.mxu0 0.0
    %786 = vmatprep.subr.mxu0 0.0
    %787 = vmatpush1.msra.mxu0 0.0
    %788 = vmatprep.subr.mxu0 0.0
    %789 = vmatpush1.msra.mxu0 0.0
    %790 = vmatprep.subr.mxu0 0.0
    %791 = vmatpush1.msra.mxu0 %v510
    %792 = vmatprep.subr.mxu0 0.0
    %793 = vmatpush2.msra.mxu0 0.0
    %794 = vmatprep.subr.mxu0 0.0
    %795 = vmatpush2.msra.mxu0 0.0
    %796 = vmatprep.subr.mxu0 0.0
    %797 = vmatpush2.msra.mxu0 0.0
    %798 = vmatprep.subr.mxu0 0.0
    %799 = vmatpush2.msra.mxu0 0.0
    %800 = vmatprep.subr.mxu0 0.0
    %801 = vmatpush2.msra.mxu0 0.0
    %802 = vmatprep.subr.mxu0 0.0
    %803 = vmatpush2.msra.mxu0 0.0
    %804 = vmatprep.subr.mxu0 0.0
    %805 = vmatpush2.msra.mxu0 0.0
    %806 = vmatprep.subr.mxu0 0.0
    %807 = vmatpush2.msra.mxu0 0.0
    %808 = vmatprep.subr.mxu0 0.0
    %809 = vmatpush2.msra.mxu0 0.0
    %810 = vmatprep.subr.mxu0 0.0
    %811 = vmatpush2.msra.mxu0 0.0
    %812 = vmatprep.subr.mxu0 0.0
    %813 = vmatpush2.msra.mxu0 0.0
    %814 = vmatprep.subr.mxu0 0.0
    %815 = vmatpush2.msra.mxu0 0.0
    %816 = vmatprep.subr.mxu0 0.0
    %817 = vmatpush2.msra.mxu0 0.0
    %818 = vmatprep.subr.mxu0 0.0
    %819 = vmatpush2.msra.mxu0 0.0
    %820 = vmatprep.subr.mxu0 0.0
    %821 = vmatpush2.msra.mxu0 0.0
    %822 = vmatprep.subr.mxu0 0.0
    %823 = vmatpush2.msra.mxu0 0.0
    %824 = vmatprep.mubr.f32.mxu0 0.0
    %825 = vmatmul.mubr.f32.gmra.mxu0 %v758
    %v826 = vpop.f32.mrf.mxu0
    %v827 = vadd.f32 %v754, %v826
    %v828 = vpop.f32.mrf.mxu0
    %829 = vdwg.mxu0
    %830 = vrot.lane.b32.xlu0 %v319, 112
    %v831 = vpop.permute.xlu0 %830
    %832 = vrot.lane.b32.xlu0 %v319, 80
    %v833 = vpop.permute.xlu0 %832
    %834 = vrot.lane.b32.xlu0 %v324, 80
    %v835 = vpop.permute.xlu0 %834
    %v836 = vsel %vm343, %v831, 0
    %v838 = vsel %vm343, %v833, 0
    %v840 = vsel %vm343, %v835, 0
    %842 = vmatprep.subr.mxu0 0.0
    %843 = vmatpush1.xpose.msra.mxu0 0.0
    %844 = vmatprep.subr.mxu0 0.0
    %845 = vmatpush1.xpose.msra.mxu0 0.0
    %846 = vmatprep.subr.mxu0 0.0
    %847 = vmatpush1.xpose.msra.mxu0 0.0
    %848 = vmatprep.subr.mxu0 0.0
    %849 = vmatpush1.xpose.msra.mxu0 0.0
    %850 = vmatprep.subr.mxu0 0.0
    %851 = vmatpush1.xpose.msra.mxu0 0.0
    %852 = vmatprep.subr.mxu0 0.0
    %853 = vmatpush1.xpose.msra.mxu0 0.0
    %854 = vmatprep.subr.mxu0 0.0
    %855 = vmatpush1.xpose.msra.mxu0 0.0
    %856 = vmatprep.subr.mxu0 0.0
    %857 = vmatpush1.xpose.msra.mxu0 0.0
    %858 = vmatprep.subr.mxu0 0.0
    %859 = vmatpush1.xpose.msra.mxu0 0.0
    %860 = vmatprep.subr.mxu0 0.0
    %861 = vmatpush1.xpose.msra.mxu0 0.0
    %862 = vmatprep.subr.mxu0 0.0
    %863 = vmatpush1.xpose.msra.mxu0 0.0
    %864 = vmatprep.subr.mxu0 0.0
    %865 = vmatpush1.xpose.msra.mxu0 0.0
    %866 = vmatprep.subr.mxu0 0.0
    %867 = vmatpush1.xpose.msra.mxu0 0.0
    %868 = vmatprep.subr.mxu0 0.0
    %869 = vmatpush1.xpose.msra.mxu0 0.0
    %870 = vmatprep.subr.mxu0 0.0
    %871 = vmatpush1.xpose.msra.mxu0 %v840
    %872 = vmatprep.subr.mxu0 0.0
    %873 = vmatpush1.xpose.msra.mxu0 %v838
    %874 = vmatprep.subr.mxu0 0.0
    %875 = vmatpush2.xpose.msra.mxu0 0.0
    %876 = vmatprep.subr.mxu0 0.0
    %877 = vmatpush2.xpose.msra.mxu0 0.0
    %878 = vmatprep.subr.mxu0 0.0
    %879 = vmatpush2.xpose.msra.mxu0 0.0
    %880 = vmatprep.subr.mxu0 0.0
    %881 = vmatpush2.xpose.msra.mxu0 0.0
    %882 = vmatprep.subr.mxu0 0.0
    %883 = vmatpush2.xpose.msra.mxu0 0.0
    %884 = vmatprep.subr.mxu0 0.0
    %885 = vmatpush2.xpose.msra.mxu0 0.0
    %886 = vmatprep.subr.mxu0 0.0
    %887 = vmatpush2.xpose.msra.mxu0 0.0
    %888 = vmatprep.subr.mxu0 0.0
    %889 = vmatpush2.xpose.msra.mxu0 0.0
    %890 = vmatprep.subr.mxu0 0.0
    %891 = vmatpush2.xpose.msra.mxu0 0.0
    %892 = vmatprep.subr.mxu0 0.0
    %893 = vmatpush2.xpose.msra.mxu0 0.0
    %894 = vmatprep.subr.mxu0 0.0
    %895 = vmatpush2.xpose.msra.mxu0 0.0
    %896 = vmatprep.subr.mxu0 0.0
    %897 = vmatpush2.xpose.msra.mxu0 0.0
    %898 = vmatprep.subr.mxu0 0.0
    %899 = vmatpush2.xpose.msra.mxu0 0.0
    %900 = vmatprep.subr.mxu0 0.0
    %901 = vmatpush2.xpose.msra.mxu0 0.0
    %902 = vmatprep.subr.mxu0 0.0
    %903 = vmatpush2.xpose.msra.mxu0 0.0
    %904 = vmatprep.subr.mxu0 0.0
    %905 = vmatpush2.xpose.msra.mxu0 0.0
    %906 = vmatprep.mubr.f32.mxu0 0.0
    %907 = vmatmul.mubr.f32.gmra.mxu0 %v836
    %v908 = vpop.f32.mrf.mxu0
    %v909 = vadd.f32 0.0, %v908
    %v910 = vpop.f32.mrf.mxu0
    %911 = vdwg.mxu0
    %v912 = vsel %vm78, %v909, -inf
    %913 = vmax.xlane.f32.xlu0 %v912
    %v914 = vpop.xlane.xlu0 %913
    %v915 = vsub.f32 %v909, %v914
    %v916 = vmul.f32 %v915, 1.442695
    %v917 = vpow.pop %v916
    %v918 = vsel %vm78, %v917, 0.0
    %919 = vadd.xlane.f32.xlu0 %v918
    %v920 = vpop.xlane.xlu0 %919
    %v921 = vrcp.pop %v920
    %v922 = vmul.f32 %v917, %v921
    %923 = vrot.lane.b32.xlu0 %v319, 48
    %v924 = vpop.permute.xlu0 %923
    %925 = vrot.lane.b32.xlu0 %v324, 48
    %v926 = vpop.permute.xlu0 %925
    %v930 = vsel %vm78, %v922, 0
    %932 = vmatprep.subr.mxu0 0.0
    %933 = vmatpush1.msra.mxu0 0.0
    %934 = vmatprep.subr.mxu0 0.0
    %935 = vmatpush1.msra.mxu0 0.0
    %936 = vmatprep.subr.mxu0 0.0
    %937 = vmatpush1.msra.mxu0 0.0
    %938 = vmatprep.subr.mxu0 0.0
    %939 = vmatpush1.msra.mxu0 0.0
    %940 = vmatprep.subr.mxu0 0.0
    %941 = vmatpush1.msra.mxu0 0.0
    %942 = vmatprep.subr.mxu0 0.0
    %943 = vmatpush1.msra.mxu0 0.0
    %944 = vmatprep.subr.mxu0 0.0
    %945 = vmatpush1.msra.mxu0 0.0
    %946 = vmatprep.subr.mxu0 0.0
    %947 = vmatpush1.msra.mxu0 0.0
    %948 = vmatprep.subr.mxu0 0.0
    %949 = vmatpush1.msra.mxu0 0.0
    %950 = vmatprep.subr.mxu0 0.0
    %951 = vmatpush1.msra.mxu0 0.0
    %952 = vmatprep.subr.mxu0 0.0
    %953 = vmatpush1.msra.mxu0 0.0
    %954 = vmatprep.subr.mxu0 0.0
    %955 = vmatpush1.msra.mxu0 0.0
    %956 = vmatprep.subr.mxu0 0.0
    %957 = vmatpush1.msra.mxu0 0.0
    %958 = vmatprep.subr.mxu0 0.0
    %959 = vmatpush1.msra.mxu0 0.0
    %960 = vmatprep.subr.mxu0 0.0
    %961 = vmatpush1.msra.mxu0 %v926
    %962 = vmatprep.subr.mxu0 0.0
    %963 = vmatpush1.msra.mxu0 %v924
    %964 = vmatprep.subr.mxu0 0.0
    %965 = vmatpush2.msra.mxu0 0.0
    %966 = vmatprep.subr.mxu0 0.0
    %967 = vmatpush2.msra.mxu0 0.0
    %968 = vmatprep.subr.mxu0 0.0
    %969 = vmatpush2.msra.mxu0 0.0
    %970 = vmatprep.subr.mxu0 0.0
    %971 = vmatpush2.msra.mxu0 0.0
    %972 = vmatprep.subr.mxu0 0.0
    %973 = vmatpush2.msra.mxu0 0.0
    %974 = vmatprep.subr.mxu0 0.0
    %975 = vmatpush2.msra.mxu0 0.0
    %976 = vmatprep.subr.mxu0 0.0
    %977 = vmatpush2.msra.mxu0 0.0
    %978 = vmatprep.subr.mxu0 0.0
    %979 = vmatpush2.msra.mxu0 0.0
    %980 = vmatprep.subr.mxu0 0.0
    %981 = vmatpush2.msra.mxu0 0.0
    %982 = vmatprep.subr.mxu0 0.0
    %983 = vmatpush2.msra.mxu0 0.0
    %984 = vmatprep.subr.mxu0 0.0
    %985 = vmatpush2.msra.mxu0 0.0
    %986 = vmatprep.subr.mxu0 0.0
    %987 = vmatpush2.msra.mxu0 0.0
    %988 = vmatprep.subr.mxu0 0.0
    %989 = vmatpush2.msra.mxu0 0.0
    %990 = vmatprep.subr.mxu0 0.0
    %991 = vmatpush2.msra.mxu0 0.0
    %992 = vmatprep.subr.mxu0 0.0
    %993 = vmatpush2.msra.mxu0 0.0
    %994 = vmatprep.subr.mxu0 0.0
    %995 = vmatpush2.msra.mxu0 0.0
    %996 = vmatprep.mubr.f32.mxu0 0.0
    %997 = vmatmul.mubr.f32.gmra.mxu0 %v930
    %v998 = vpop.f32.mrf.mxu0
    %v999 = vadd.f32 0.0, %v998
    %v1000 = vpop.f32.mrf.mxu0
    %1001 = vdwg.mxu0
    %v1002 = vld [vmem:[%s7 + $0x10] sm:$0xff]
    %v1004 = vsel %vm343, %v999, 0
    %1006 = vmatprep.subr.mxu0 0.0
    %1007 = vmatpush1.msra.mxu0 0.0
    %1008 = vmatprep.subr.mxu0 0.0
    %1009 = vmatpush1.msra.mxu0 0.0
    %1010 = vmatprep.subr.mxu0 0.0
    %1011 = vmatpush1.msra.mxu0 0.0
    %1012 = vmatprep.subr.mxu0 0.0
    %1013 = vmatpush1.msra.mxu0 0.0
    %1014 = vmatprep.subr.mxu0 0.0
    %1015 = vmatpush1.msra.mxu0 0.0
    %1016 = vmatprep.subr.mxu0 0.0
    %1017 = vmatpush1.msra.mxu0 0.0
    %1018 = vmatprep.subr.mxu0 0.0
    %1019 = vmatpush1.msra.mxu0 0.0
    %1020 = vmatprep.subr.mxu0 0.0
    %1021 = vmatpush1.msra.mxu0 0.0
    %1022 = vmatprep.subr.mxu0 0.0
    %1023 = vmatpush1.msra.mxu0 0.0
    %1024 = vmatprep.subr.mxu0 0.0
    %1025 = vmatpush1.msra.mxu0 0.0
    %1026 = vmatprep.subr.mxu0 0.0
    %1027 = vmatpush1.msra.mxu0 0.0
    %1028 = vmatprep.subr.mxu0 0.0
    %1029 = vmatpush1.msra.mxu0 0.0
    %1030 = vmatprep.subr.mxu0 0.0
    %1031 = vmatpush1.msra.mxu0 0.0
    %1032 = vmatprep.subr.mxu0 0.0
    %1033 = vmatpush1.msra.mxu0 0.0
    %1034 = vmatprep.subr.mxu0 0.0
    %1035 = vmatpush1.msra.mxu0 0.0
    %1036 = vmatprep.subr.mxu0 0.0
    %1037 = vmatpush1.msra.mxu0 %v1002
    %1038 = vmatprep.subr.mxu0 0.0
    %1039 = vmatpush2.msra.mxu0 0.0
    %1040 = vmatprep.subr.mxu0 0.0
    %1041 = vmatpush2.msra.mxu0 0.0
    %1042 = vmatprep.subr.mxu0 0.0
    %1043 = vmatpush2.msra.mxu0 0.0
    %1044 = vmatprep.subr.mxu0 0.0
    %1045 = vmatpush2.msra.mxu0 0.0
    %1046 = vmatprep.subr.mxu0 0.0
    %1047 = vmatpush2.msra.mxu0 0.0
    %1048 = vmatprep.subr.mxu0 0.0
    %1049 = vmatpush2.msra.mxu0 0.0
    %1050 = vmatprep.subr.mxu0 0.0
    %1051 = vmatpush2.msra.mxu0 0.0
    %1052 = vmatprep.subr.mxu0 0.0
    %1053 = vmatpush2.msra.mxu0 0.0
    %1054 = vmatprep.subr.mxu0 0.0
    %1055 = vmatpush2.msra.mxu0 0.0
    %1056 = vmatprep.subr.mxu0 0.0
    %1057 = vmatpush2.msra.mxu0 0.0
    %1058 = vmatprep.subr.mxu0 0.0
    %1059 = vmatpush2.msra.mxu0 0.0
    %1060 = vmatprep.subr.mxu0 0.0
    %1061 = vmatpush2.msra.mxu0 0.0
    %1062 = vmatprep.subr.mxu0 0.0
    %1063 = vmatpush2.msra.mxu0 0.0
    %1064 = vmatprep.subr.mxu0 0.0
    %1065 = vmatpush2.msra.mxu0 0.0
    %1066 = vmatprep.subr.mxu0 0.0
    %1067 = vmatpush2.msra.mxu0 0.0
    %1068 = vmatprep.subr.mxu0 0.0
    %1069 = vmatpush2.msra.mxu0 0.0
    %1070 = vmatprep.mubr.f32.mxu0 0.0
    %1071 = vmatmul.mubr.f32.gmra.mxu0 %v1004
    %v1072 = vpop.f32.mrf.mxu0
    %v1073 = vadd.f32 0.0, %v1072
    %v1074 = vpop.f32.mrf.mxu0
    %1075 = vdwg.mxu0
    %v1076 = vadd.f32 %v827, %v1073
    %1077 = vrot.lane.b32.xlu0 %v319, 104
    %v1078 = vpop.permute.xlu0 %1077
    %1079 = vrot.lane.b32.xlu0 %v319, 72
    %v1080 = vpop.permute.xlu0 %1079
    %1081 = vrot.lane.b32.xlu0 %v324, 72
    %v1082 = vpop.permute.xlu0 %1081
    %v1083 = vsel %vm343, %v1078, 0
    %v1085 = vsel %vm343, %v1080, 0
    %v1087 = vsel %vm343, %v1082, 0
    %1089 = vmatprep.subr.mxu0 0.0
    %1090 = vmatpush1.xpose.msra.mxu0 0.0
    %1091 = vmatprep.subr.mxu0 0.0
    %1092 = vmatpush1.xpose.msra.mxu0 0.0
    %1093 = vmatprep.subr.mxu0 0.0
    %1094 = vmatpush1.xpose.msra.mxu0 0.0
    %1095 = vmatprep.subr.mxu0 0.0
    %1096 = vmatpush1.xpose.msra.mxu0 0.0
    %1097 = vmatprep.subr.mxu0 0.0
    %1098 = vmatpush1.xpose.msra.mxu0 0.0
    %1099 = vmatprep.subr.mxu0 0.0
    %1100 = vmatpush1.xpose.msra.mxu0 0.0
    %1101 = vmatprep.subr.mxu0 0.0
    %1102 = vmatpush1.xpose.msra.mxu0 0.0
    %1103 = vmatprep.subr.mxu0 0.0
    %1104 = vmatpush1.xpose.msra.mxu0 0.0
    %1105 = vmatprep.subr.mxu0 0.0
    %1106 = vmatpush1.xpose.msra.mxu0 0.0
    %1107 = vmatprep.subr.mxu0 0.0
    %1108 = vmatpush1.xpose.msra.mxu0 0.0
    %1109 = vmatprep.subr.mxu0 0.0
    %1110 = vmatpush1.xpose.msra.mxu0 0.0
    %1111 = vmatprep.subr.mxu0 0.0
    %1112 = vmatpush1.xpose.msra.mxu0 0.0
    %1113 = vmatprep.subr.mxu0 0.0
    %1114 = vmatpush1.xpose.msra.mxu0 0.0
    %1115 = vmatprep.subr.mxu0 0.0
    %1116 = vmatpush1.xpose.msra.mxu0 0.0
    %1117 = vmatprep.subr.mxu0 0.0
    %1118 = vmatpush1.xpose.msra.mxu0 %v1087
    %1119 = vmatprep.subr.mxu0 0.0
    %1120 = vmatpush1.xpose.msra.mxu0 %v1085
    %1121 = vmatprep.subr.mxu0 0.0
    %1122 = vmatpush2.xpose.msra.mxu0 0.0
    %1123 = vmatprep.subr.mxu0 0.0
    %1124 = vmatpush2.xpose.msra.mxu0 0.0
    %1125 = vmatprep.subr.mxu0 0.0
    %1126 = vmatpush2.xpose.msra.mxu0 0.0
    %1127 = vmatprep.subr.mxu0 0.0
    %1128 = vmatpush2.xpose.msra.mxu0 0.0
    %1129 = vmatprep.subr.mxu0 0.0
    %1130 = vmatpush2.xpose.msra.mxu0 0.0
    %1131 = vmatprep.subr.mxu0 0.0
    %1132 = vmatpush2.xpose.msra.mxu0 0.0
    %1133 = vmatprep.subr.mxu0 0.0
    %1134 = vmatpush2.xpose.msra.mxu0 0.0
    %1135 = vmatprep.subr.mxu0 0.0
    %1136 = vmatpush2.xpose.msra.mxu0 0.0
    %1137 = vmatprep.subr.mxu0 0.0
    %1138 = vmatpush2.xpose.msra.mxu0 0.0
    %1139 = vmatprep.subr.mxu0 0.0
    %1140 = vmatpush2.xpose.msra.mxu0 0.0
    %1141 = vmatprep.subr.mxu0 0.0
    %1142 = vmatpush2.xpose.msra.mxu0 0.0
    %1143 = vmatprep.subr.mxu0 0.0
    %1144 = vmatpush2.xpose.msra.mxu0 0.0
    %1145 = vmatprep.subr.mxu0 0.0
    %1146 = vmatpush2.xpose.msra.mxu0 0.0
    %1147 = vmatprep.subr.mxu0 0.0
    %1148 = vmatpush2.xpose.msra.mxu0 0.0
    %1149 = vmatprep.subr.mxu0 0.0
    %1150 = vmatpush2.xpose.msra.mxu0 0.0
    %1151 = vmatprep.subr.mxu0 0.0
    %1152 = vmatpush2.xpose.msra.mxu0 0.0
    %1153 = vmatprep.mubr.f32.mxu0 0.0
    %1154 = vmatmul.mubr.f32.gmra.mxu0 %v1083
    %v1155 = vpop.f32.mrf.mxu0
    %v1156 = vadd.f32 0.0, %v1155
    %v1157 = vpop.f32.mrf.mxu0
    %1158 = vdwg.mxu0
    %v1159 = vsel %vm78, %v1156, -inf
    %1160 = vmax.xlane.f32.xlu0 %v1159
    %v1161 = vpop.xlane.xlu0 %1160
    %v1162 = vsub.f32 %v1156, %v1161
    %v1163 = vmul.f32 %v1162, 1.442695
    %v1164 = vpow.pop %v1163
    %v1165 = vsel %vm78, %v1164, 0.0
    %1166 = vadd.xlane.f32.xlu0 %v1165
    %v1167 = vpop.xlane.xlu0 %1166
    %v1168 = vrcp.pop %v1167
    %v1169 = vmul.f32 %v1164, %v1168
    %1170 = vrot.lane.b32.xlu0 %v319, 40
    %v1171 = vpop.permute.xlu0 %1170
    %1172 = vrot.lane.b32.xlu0 %v324, 40
    %v1173 = vpop.permute.xlu0 %1172
    %v1177 = vsel %vm78, %v1169, 0
    %1179 = vmatprep.subr.mxu0 0.0
    %1180 = vmatpush1.msra.mxu0 0.0
    %1181 = vmatprep.subr.mxu0 0.0
    %1182 = vmatpush1.msra.mxu0 0.0
    %1183 = vmatprep.subr.mxu0 0.0
    %1184 = vmatpush1.msra.mxu0 0.0
    %1185 = vmatprep.subr.mxu0 0.0
    %1186 = vmatpush1.msra.mxu0 0.0
    %1187 = vmatprep.subr.mxu0 0.0
    %1188 = vmatpush1.msra.mxu0 0.0
    %1189 = vmatprep.subr.mxu0 0.0
    %1190 = vmatpush1.msra.mxu0 0.0
    %1191 = vmatprep.subr.mxu0 0.0
    %1192 = vmatpush1.msra.mxu0 0.0
    %1193 = vmatprep.subr.mxu0 0.0
    %1194 = vmatpush1.msra.mxu0 0.0
    %1195 = vmatprep.subr.mxu0 0.0
    %1196 = vmatpush1.msra.mxu0 0.0
    %1197 = vmatprep.subr.mxu0 0.0
    %1198 = vmatpush1.msra.mxu0 0.0
    %1199 = vmatprep.subr.mxu0 0.0
    %1200 = vmatpush1.msra.mxu0 0.0
    %1201 = vmatprep.subr.mxu0 0.0
    %1202 = vmatpush1.msra.mxu0 0.0
    %1203 = vmatprep.subr.mxu0 0.0
    %1204 = vmatpush1.msra.mxu0 0.0
    %1205 = vmatprep.subr.mxu0 0.0
    %1206 = vmatpush1.msra.mxu0 0.0
    %1207 = vmatprep.subr.mxu0 0.0
    %1208 = vmatpush1.msra.mxu0 %v1173
    %1209 = vmatprep.subr.mxu0 0.0
    %1210 = vmatpush1.msra.mxu0 %v1171
    %1211 = vmatprep.subr.mxu0 0.0
    %1212 = vmatpush2.msra.mxu0 0.0
    %1213 = vmatprep.subr.mxu0 0.0
    %1214 = vmatpush2.msra.mxu0 0.0
    %1215 = vmatprep.subr.mxu0 0.0
    %1216 = vmatpush2.msra.mxu0 0.0
    %1217 = vmatprep.subr.mxu0 0.0
    %1218 = vmatpush2.msra.mxu0 0.0
    %1219 = vmatprep.subr.mxu0 0.0
    %1220 = vmatpush2.msra.mxu0 0.0
    %1221 = vmatprep.subr.mxu0 0.0
    %1222 = vmatpush2.msra.mxu0 0.0
    %1223 = vmatprep.subr.mxu0 0.0
    %1224 = vmatpush2.msra.mxu0 0.0
    %1225 = vmatprep.subr.mxu0 0.0
    %1226 = vmatpush2.msra.mxu0 0.0
    %1227 = vmatprep.subr.mxu0 0.0
    %1228 = vmatpush2.msra.mxu0 0.0
    %1229 = vmatprep.subr.mxu0 0.0
    %1230 = vmatpush2.msra.mxu0 0.0
    %1231 = vmatprep.subr.mxu0 0.0
    %1232 = vmatpush2.msra.mxu0 0.0
    %1233 = vmatprep.subr.mxu0 0.0
    %1234 = vmatpush2.msra.mxu0 0.0
    %1235 = vmatprep.subr.mxu0 0.0
    %1236 = vmatpush2.msra.mxu0 0.0
    %1237 = vmatprep.subr.mxu0 0.0
    %1238 = vmatpush2.msra.mxu0 0.0
    %1239 = vmatprep.subr.mxu0 0.0
    %1240 = vmatpush2.msra.mxu0 0.0
    %1241 = vmatprep.subr.mxu0 0.0
    %1242 = vmatpush2.msra.mxu0 0.0
    %1243 = vmatprep.mubr.f32.mxu0 0.0
    %1244 = vmatmul.mubr.f32.gmra.mxu0 %v1177
    %v1245 = vpop.f32.mrf.mxu0
    %v1246 = vadd.f32 0.0, %v1245
    %v1247 = vpop.f32.mrf.mxu0
    %1248 = vdwg.mxu0
    %v1249 = vld [vmem:[%s7 + $0x18] sm:$0xff]
    %v1251 = vsel %vm343, %v1246, 0
    %1253 = vmatprep.subr.mxu0 0.0
    %1254 = vmatpush1.msra.mxu0 0.0
    %1255 = vmatprep.subr.mxu0 0.0
    %1256 = vmatpush1.msra.mxu0 0.0
    %1257 = vmatprep.subr.mxu0 0.0
    %1258 = vmatpush1.msra.mxu0 0.0
    %1259 = vmatprep.subr.mxu0 0.0
    %1260 = vmatpush1.msra.mxu0 0.0
    %1261 = vmatprep.subr.mxu0 0.0
    %1262 = vmatpush1.msra.mxu0 0.0
    %1263 = vmatprep.subr.mxu0 0.0
    %1264 = vmatpush1.msra.mxu0 0.0
    %1265 = vmatprep.subr.mxu0 0.0
    %1266 = vmatpush1.msra.mxu0 0.0
    %1267 = vmatprep.subr.mxu0 0.0
    %1268 = vmatpush1.msra.mxu0 0.0
    %1269 = vmatprep.subr.mxu0 0.0
    %1270 = vmatpush1.msra.mxu0 0.0
    %1271 = vmatprep.subr.mxu0 0.0
    %1272 = vmatpush1.msra.mxu0 0.0
    %1273 = vmatprep.subr.mxu0 0.0
    %1274 = vmatpush1.msra.mxu0 0.0
    %1275 = vmatprep.subr.mxu0 0.0
    %1276 = vmatpush1.msra.mxu0 0.0
    %1277 = vmatprep.subr.mxu0 0.0
    %1278 = vmatpush1.msra.mxu0 0.0
    %1279 = vmatprep.subr.mxu0 0.0
    %1280 = vmatpush1.msra.mxu0 0.0
    %1281 = vmatprep.subr.mxu0 0.0
    %1282 = vmatpush1.msra.mxu0 0.0
    %1283 = vmatprep.subr.mxu0 0.0
    %1284 = vmatpush1.msra.mxu0 %v1249
    %1285 = vmatprep.subr.mxu0 0.0
    %1286 = vmatpush2.msra.mxu0 0.0
    %1287 = vmatprep.subr.mxu0 0.0
    %1288 = vmatpush2.msra.mxu0 0.0
    %1289 = vmatprep.subr.mxu0 0.0
    %1290 = vmatpush2.msra.mxu0 0.0
    %1291 = vmatprep.subr.mxu0 0.0
    %1292 = vmatpush2.msra.mxu0 0.0
    %1293 = vmatprep.subr.mxu0 0.0
    %1294 = vmatpush2.msra.mxu0 0.0
    %1295 = vmatprep.subr.mxu0 0.0
    %1296 = vmatpush2.msra.mxu0 0.0
    %1297 = vmatprep.subr.mxu0 0.0
    %1298 = vmatpush2.msra.mxu0 0.0
    %1299 = vmatprep.subr.mxu0 0.0
    %1300 = vmatpush2.msra.mxu0 0.0
    %1301 = vmatprep.subr.mxu0 0.0
    %1302 = vmatpush2.msra.mxu0 0.0
    %1303 = vmatprep.subr.mxu0 0.0
    %1304 = vmatpush2.msra.mxu0 0.0
    %1305 = vmatprep.subr.mxu0 0.0
    %1306 = vmatpush2.msra.mxu0 0.0
    %1307 = vmatprep.subr.mxu0 0.0
    %1308 = vmatpush2.msra.mxu0 0.0
    %1309 = vmatprep.subr.mxu0 0.0
    %1310 = vmatpush2.msra.mxu0 0.0
    %1311 = vmatprep.subr.mxu0 0.0
    %1312 = vmatpush2.msra.mxu0 0.0
    %1313 = vmatprep.subr.mxu0 0.0
    %1314 = vmatpush2.msra.mxu0 0.0
    %1315 = vmatprep.subr.mxu0 0.0
    %1316 = vmatpush2.msra.mxu0 0.0
    %1317 = vmatprep.mubr.f32.mxu0 0.0
    %1318 = vmatmul.mubr.f32.gmra.mxu0 %v1251
    %v1319 = vpop.f32.mrf.mxu0
    %v1320 = vadd.f32 0.0, %v1319
    %v1321 = vpop.f32.mrf.mxu0
    %1322 = vdwg.mxu0
    %v1323 = vadd.f32 %v1076, %v1320
    %1326 = vrot.lane.b32.xlu0 %v329, 96
    %v1327 = vpop.permute.xlu0 %1326
    %1328 = vrot.lane.b32.xlu0 %v334, 96
    %v1329 = vpop.permute.xlu0 %1328
    %v1330 = vsel %vm343, %v329, 0
    %v1332 = vsel %vm343, %v1327, 0
    %v1334 = vsel %vm343, %v1329, 0
    %1336 = vmatprep.subr.mxu0 0.0
    %1337 = vmatpush1.xpose.msra.mxu0 0.0
    %1338 = vmatprep.subr.mxu0 0.0
    %1339 = vmatpush1.xpose.msra.mxu0 0.0
    %1340 = vmatprep.subr.mxu0 0.0
    %1341 = vmatpush1.xpose.msra.mxu0 0.0
    %1342 = vmatprep.subr.mxu0 0.0
    %1343 = vmatpush1.xpose.msra.mxu0 0.0
    %1344 = vmatprep.subr.mxu0 0.0
    %1345 = vmatpush1.xpose.msra.mxu0 0.0
    %1346 = vmatprep.subr.mxu0 0.0
    %1347 = vmatpush1.xpose.msra.mxu0 0.0
    %1348 = vmatprep.subr.mxu0 0.0
    %1349 = vmatpush1.xpose.msra.mxu0 0.0
    %1350 = vmatprep.subr.mxu0 0.0
    %1351 = vmatpush1.xpose.msra.mxu0 0.0
    %1352 = vmatprep.subr.mxu0 0.0
    %1353 = vmatpush1.xpose.msra.mxu0 0.0
    %1354 = vmatprep.subr.mxu0 0.0
    %1355 = vmatpush1.xpose.msra.mxu0 0.0
    %1356 = vmatprep.subr.mxu0 0.0
    %1357 = vmatpush1.xpose.msra.mxu0 0.0
    %1358 = vmatprep.subr.mxu0 0.0
    %1359 = vmatpush1.xpose.msra.mxu0 0.0
    %1360 = vmatprep.subr.mxu0 0.0
    %1361 = vmatpush1.xpose.msra.mxu0 0.0
    %1362 = vmatprep.subr.mxu0 0.0
    %1363 = vmatpush1.xpose.msra.mxu0 0.0
    %1364 = vmatprep.subr.mxu0 0.0
    %1365 = vmatpush1.xpose.msra.mxu0 %v1334
    %1366 = vmatprep.subr.mxu0 0.0
    %1367 = vmatpush1.xpose.msra.mxu0 %v1332
    %1368 = vmatprep.subr.mxu0 0.0
    %1369 = vmatpush2.xpose.msra.mxu0 0.0
    %1370 = vmatprep.subr.mxu0 0.0
    %1371 = vmatpush2.xpose.msra.mxu0 0.0
    %1372 = vmatprep.subr.mxu0 0.0
    %1373 = vmatpush2.xpose.msra.mxu0 0.0
    %1374 = vmatprep.subr.mxu0 0.0
    %1375 = vmatpush2.xpose.msra.mxu0 0.0
    %1376 = vmatprep.subr.mxu0 0.0
    %1377 = vmatpush2.xpose.msra.mxu0 0.0
    %1378 = vmatprep.subr.mxu0 0.0
    %1379 = vmatpush2.xpose.msra.mxu0 0.0
    %1380 = vmatprep.subr.mxu0 0.0
    %1381 = vmatpush2.xpose.msra.mxu0 0.0
    %1382 = vmatprep.subr.mxu0 0.0
    %1383 = vmatpush2.xpose.msra.mxu0 0.0
    %1384 = vmatprep.subr.mxu0 0.0
    %1385 = vmatpush2.xpose.msra.mxu0 0.0
    %1386 = vmatprep.subr.mxu0 0.0
    %1387 = vmatpush2.xpose.msra.mxu0 0.0
    %1388 = vmatprep.subr.mxu0 0.0
    %1389 = vmatpush2.xpose.msra.mxu0 0.0
    %1390 = vmatprep.subr.mxu0 0.0
    %1391 = vmatpush2.xpose.msra.mxu0 0.0
    %1392 = vmatprep.subr.mxu0 0.0
    %1393 = vmatpush2.xpose.msra.mxu0 0.0
    %1394 = vmatprep.subr.mxu0 0.0
    %1395 = vmatpush2.xpose.msra.mxu0 0.0
    %1396 = vmatprep.subr.mxu0 0.0
    %1397 = vmatpush2.xpose.msra.mxu0 0.0
    %1398 = vmatprep.subr.mxu0 0.0
    %1399 = vmatpush2.xpose.msra.mxu0 0.0
    %1400 = vmatprep.mubr.f32.mxu0 0.0
    %1401 = vmatmul.mubr.f32.gmra.mxu0 %v1330
    %v1402 = vpop.f32.mrf.mxu0
    %v1403 = vadd.f32 0.0, %v1402
    %v1404 = vpop.f32.mrf.mxu0
    %1405 = vdwg.mxu0
    %v1406 = vsel %vm78, %v1403, -inf
    %1407 = vmax.xlane.f32.xlu0 %v1406
    %v1408 = vpop.xlane.xlu0 %1407
    %v1409 = vsub.f32 %v1403, %v1408
    %v1410 = vmul.f32 %v1409, 1.442695
    %v1411 = vpow.pop %v1410
    %v1412 = vsel %vm78, %v1411, 0.0
    %1413 = vadd.xlane.f32.xlu0 %v1412
    %v1414 = vpop.xlane.xlu0 %1413
    %v1415 = vrcp.pop %v1414
    %v1416 = vmul.f32 %v1411, %v1415
    %1417 = vrot.lane.b32.xlu0 %v329, 64
    %v1418 = vpop.permute.xlu0 %1417
    %1419 = vrot.lane.b32.xlu0 %v334, 64
    %v1420 = vpop.permute.xlu0 %1419
    %v1424 = vsel %vm78, %v1416, 0
    %1426 = vmatprep.subr.mxu0 0.0
    %1427 = vmatpush1.msra.mxu0 0.0
    %1428 = vmatprep.subr.mxu0 0.0
    %1429 = vmatpush1.msra.mxu0 0.0
    %1430 = vmatprep.subr.mxu0 0.0
    %1431 = vmatpush1.msra.mxu0 0.0
    %1432 = vmatprep.subr.mxu0 0.0
    %1433 = vmatpush1.msra.mxu0 0.0
    %1434 = vmatprep.subr.mxu0 0.0
    %1435 = vmatpush1.msra.mxu0 0.0
    %1436 = vmatprep.subr.mxu0 0.0
    %1437 = vmatpush1.msra.mxu0 0.0
    %1438 = vmatprep.subr.mxu0 0.0
    %1439 = vmatpush1.msra.mxu0 0.0
    %1440 = vmatprep.subr.mxu0 0.0
    %1441 = vmatpush1.msra.mxu0 0.0
    %1442 = vmatprep.subr.mxu0 0.0
    %1443 = vmatpush1.msra.mxu0 0.0
    %1444 = vmatprep.subr.mxu0 0.0
    %1445 = vmatpush1.msra.mxu0 0.0
    %1446 = vmatprep.subr.mxu0 0.0
    %1447 = vmatpush1.msra.mxu0 0.0
    %1448 = vmatprep.subr.mxu0 0.0
    %1449 = vmatpush1.msra.mxu0 0.0
    %1450 = vmatprep.subr.mxu0 0.0
    %1451 = vmatpush1.msra.mxu0 0.0
    %1452 = vmatprep.subr.mxu0 0.0
    %1453 = vmatpush1.msra.mxu0 0.0
    %1454 = vmatprep.subr.mxu0 0.0
    %1455 = vmatpush1.msra.mxu0 %v1420
    %1456 = vmatprep.subr.mxu0 0.0
    %1457 = vmatpush1.msra.mxu0 %v1418
    %1458 = vmatprep.subr.mxu0 0.0
    %1459 = vmatpush2.msra.mxu0 0.0
    %1460 = vmatprep.subr.mxu0 0.0
    %1461 = vmatpush2.msra.mxu0 0.0
    %1462 = vmatprep.subr.mxu0 0.0
    %1463 = vmatpush2.msra.mxu0 0.0
    %1464 = vmatprep.subr.mxu0 0.0
    %1465 = vmatpush2.msra.mxu0 0.0
    %1466 = vmatprep.subr.mxu0 0.0
    %1467 = vmatpush2.msra.mxu0 0.0
    %1468 = vmatprep.subr.mxu0 0.0
    %1469 = vmatpush2.msra.mxu0 0.0
    %1470 = vmatprep.subr.mxu0 0.0
    %1471 = vmatpush2.msra.mxu0 0.0
    %1472 = vmatprep.subr.mxu0 0.0
    %1473 = vmatpush2.msra.mxu0 0.0
    %1474 = vmatprep.subr.mxu0 0.0
    %1475 = vmatpush2.msra.mxu0 0.0
    %1476 = vmatprep.subr.mxu0 0.0
    %1477 = vmatpush2.msra.mxu0 0.0
    %1478 = vmatprep.subr.mxu0 0.0
    %1479 = vmatpush2.msra.mxu0 0.0
    %1480 = vmatprep.subr.mxu0 0.0
    %1481 = vmatpush2.msra.mxu0 0.0
    %1482 = vmatprep.subr.mxu0 0.0
    %1483 = vmatpush2.msra.mxu0 0.0
    %1484 = vmatprep.subr.mxu0 0.0
    %1485 = vmatpush2.msra.mxu0 0.0
    %1486 = vmatprep.subr.mxu0 0.0
    %1487 = vmatpush2.msra.mxu0 0.0
    %1488 = vmatprep.subr.mxu0 0.0
    %1489 = vmatpush2.msra.mxu0 0.0
    %1490 = vmatprep.mubr.f32.mxu0 0.0
    %1491 = vmatmul.mubr.f32.gmra.mxu0 %v1424
    %v1492 = vpop.f32.mrf.mxu0
    %v1493 = vadd.f32 0.0, %v1492
    %v1494 = vpop.f32.mrf.mxu0
    %1495 = vdwg.mxu0
    %1496 = vrot.lane.b32.xlu0 %v329, 120
    %v1497 = vpop.permute.xlu0 %1496
    %1498 = vrot.lane.b32.xlu0 %v329, 88
    %v1499 = vpop.permute.xlu0 %1498
    %1500 = vrot.lane.b32.xlu0 %v334, 88
    %v1501 = vpop.permute.xlu0 %1500
    %v1502 = vsel %vm343, %v1497, 0
    %v1504 = vsel %vm343, %v1499, 0
    %v1506 = vsel %vm343, %v1501, 0
    %1508 = vmatprep.subr.mxu0 0.0
    %1509 = vmatpush1.xpose.msra.mxu0 0.0
    %1510 = vmatprep.subr.mxu0 0.0
    %1511 = vmatpush1.xpose.msra.mxu0 0.0
    %1512 = vmatprep.subr.mxu0 0.0
    %1513 = vmatpush1.xpose.msra.mxu0 0.0
    %1514 = vmatprep.subr.mxu0 0.0
    %1515 = vmatpush1.xpose.msra.mxu0 0.0
    %1516 = vmatprep.subr.mxu0 0.0
    %1517 = vmatpush1.xpose.msra.mxu0 0.0
    %1518 = vmatprep.subr.mxu0 0.0
    %1519 = vmatpush1.xpose.msra.mxu0 0.0
    %1520 = vmatprep.subr.mxu0 0.0
    %1521 = vmatpush1.xpose.msra.mxu0 0.0
    %1522 = vmatprep.subr.mxu0 0.0
    %1523 = vmatpush1.xpose.msra.mxu0 0.0
    %1524 = vmatprep.subr.mxu0 0.0
    %1525 = vmatpush1.xpose.msra.mxu0 0.0
    %1526 = vmatprep.subr.mxu0 0.0
    %1527 = vmatpush1.xpose.msra.mxu0 0.0
    %1528 = vmatprep.subr.mxu0 0.0
    %1529 = vmatpush1.xpose.msra.mxu0 0.0
    %1530 = vmatprep.subr.mxu0 0.0
    %1531 = vmatpush1.xpose.msra.mxu0 0.0
    %1532 = vmatprep.subr.mxu0 0.0
    %1533 = vmatpush1.xpose.msra.mxu0 0.0
    %1534 = vmatprep.subr.mxu0 0.0
    %1535 = vmatpush1.xpose.msra.mxu0 0.0
    %1536 = vmatprep.subr.mxu0 0.0
    %1537 = vmatpush1.xpose.msra.mxu0 %v1506
    %1538 = vmatprep.subr.mxu0 0.0
    %1539 = vmatpush1.xpose.msra.mxu0 %v1504
    %1540 = vmatprep.subr.mxu0 0.0
    %1541 = vmatpush2.xpose.msra.mxu0 0.0
    %1542 = vmatprep.subr.mxu0 0.0
    %1543 = vmatpush2.xpose.msra.mxu0 0.0
    %1544 = vmatprep.subr.mxu0 0.0
    %1545 = vmatpush2.xpose.msra.mxu0 0.0
    %1546 = vmatprep.subr.mxu0 0.0
    %1547 = vmatpush2.xpose.msra.mxu0 0.0
    %1548 = vmatprep.subr.mxu0 0.0
    %1549 = vmatpush2.xpose.msra.mxu0 0.0
    %1550 = vmatprep.subr.mxu0 0.0
    %1551 = vmatpush2.xpose.msra.mxu0 0.0
    %1552 = vmatprep.subr.mxu0 0.0
    %1553 = vmatpush2.xpose.msra.mxu0 0.0
    %1554 = vmatprep.subr.mxu0 0.0
    %1555 = vmatpush2.xpose.msra.mxu0 0.0
    %1556 = vmatprep.subr.mxu0 0.0
    %1557 = vmatpush2.xpose.msra.mxu0 0.0
    %1558 = vmatprep.subr.mxu0 0.0
    %1559 = vmatpush2.xpose.msra.mxu0 0.0
    %1560 = vmatprep.subr.mxu0 0.0
    %1561 = vmatpush2.xpose.msra.mxu0 0.0
    %1562 = vmatprep.subr.mxu0 0.0
    %1563 = vmatpush2.xpose.msra.mxu0 0.0
    %1564 = vmatprep.subr.mxu0 0.0
    %1565 = vmatpush2.xpose.msra.mxu0 0.0
    %1566 = vmatprep.subr.mxu0 0.0
    %1567 = vmatpush2.xpose.msra.mxu0 0.0
    %1568 = vmatprep.subr.mxu0 0.0
    %1569 = vmatpush2.xpose.msra.mxu0 0.0
    %1570 = vmatprep.subr.mxu0 0.0
    %1571 = vmatpush2.xpose.msra.mxu0 0.0
    %1572 = vmatprep.mubr.f32.mxu0 0.0
    %1573 = vmatmul.mubr.f32.gmra.mxu0 %v1502
    %v1574 = vpop.f32.mrf.mxu0
    %v1575 = vadd.f32 0.0, %v1574
    %v1576 = vpop.f32.mrf.mxu0
    %1577 = vdwg.mxu0
    %v1578 = vsel %vm78, %v1575, -inf
    %1579 = vmax.xlane.f32.xlu0 %v1578
    %v1580 = vpop.xlane.xlu0 %1579
    %v1581 = vsub.f32 %v1575, %v1580
    %v1582 = vmul.f32 %v1581, 1.442695
    %v1583 = vpow.pop %v1582
    %v1584 = vsel %vm78, %v1583, 0.0
    %1585 = vadd.xlane.f32.xlu0 %v1584
    %v1586 = vpop.xlane.xlu0 %1585
    %v1587 = vrcp.pop %v1586
    %v1588 = vmul.f32 %v1583, %v1587
    %1589 = vrot.lane.b32.xlu0 %v329, 56
    %v1590 = vpop.permute.xlu0 %1589
    %1591 = vrot.lane.b32.xlu0 %v334, 56
    %v1592 = vpop.permute.xlu0 %1591
    %v1596 = vsel %vm78, %v1588, 0
    %1598 = vmatprep.subr.mxu0 0.0
    %1599 = vmatpush1.msra.mxu0 0.0
    %1600 = vmatprep.subr.mxu0 0.0
    %1601 = vmatpush1.msra.mxu0 0.0
    %1602 = vmatprep.subr.mxu0 0.0
    %1603 = vmatpush1.msra.mxu0 0.0
    %1604 = vmatprep.subr.mxu0 0.0
    %1605 = vmatpush1.msra.mxu0 0.0
    %1606 = vmatprep.subr.mxu0 0.0
    %1607 = vmatpush1.msra.mxu0 0.0
    %1608 = vmatprep.subr.mxu0 0.0
    %1609 = vmatpush1.msra.mxu0 0.0
    %1610 = vmatprep.subr.mxu0 0.0
    %1611 = vmatpush1.msra.mxu0 0.0
    %1612 = vmatprep.subr.mxu0 0.0
    %1613 = vmatpush1.msra.mxu0 0.0
    %1614 = vmatprep.subr.mxu0 0.0
    %1615 = vmatpush1.msra.mxu0 0.0
    %1616 = vmatprep.subr.mxu0 0.0
    %1617 = vmatpush1.msra.mxu0 0.0
    %1618 = vmatprep.subr.mxu0 0.0
    %1619 = vmatpush1.msra.mxu0 0.0
    %1620 = vmatprep.subr.mxu0 0.0
    %1621 = vmatpush1.msra.mxu0 0.0
    %1622 = vmatprep.subr.mxu0 0.0
    %1623 = vmatpush1.msra.mxu0 0.0
    %1624 = vmatprep.subr.mxu0 0.0
    %1625 = vmatpush1.msra.mxu0 0.0
    %1626 = vmatprep.subr.mxu0 0.0
    %1627 = vmatpush1.msra.mxu0 %v1592
    %1628 = vmatprep.subr.mxu0 0.0
    %1629 = vmatpush1.msra.mxu0 %v1590
    %1630 = vmatprep.subr.mxu0 0.0
    %1631 = vmatpush2.msra.mxu0 0.0
    %1632 = vmatprep.subr.mxu0 0.0
    %1633 = vmatpush2.msra.mxu0 0.0
    %1634 = vmatprep.subr.mxu0 0.0
    %1635 = vmatpush2.msra.mxu0 0.0
    %1636 = vmatprep.subr.mxu0 0.0
    %1637 = vmatpush2.msra.mxu0 0.0
    %1638 = vmatprep.subr.mxu0 0.0
    %1639 = vmatpush2.msra.mxu0 0.0
    %1640 = vmatprep.subr.mxu0 0.0
    %1641 = vmatpush2.msra.mxu0 0.0
    %1642 = vmatprep.subr.mxu0 0.0
    %1643 = vmatpush2.msra.mxu0 0.0
    %1644 = vmatprep.subr.mxu0 0.0
    %1645 = vmatpush2.msra.mxu0 0.0
    %1646 = vmatprep.subr.mxu0 0.0
    %1647 = vmatpush2.msra.mxu0 0.0
    %1648 = vmatprep.subr.mxu0 0.0
    %1649 = vmatpush2.msra.mxu0 0.0
    %1650 = vmatprep.subr.mxu0 0.0
    %1651 = vmatpush2.msra.mxu0 0.0
    %1652 = vmatprep.subr.mxu0 0.0
    %1653 = vmatpush2.msra.mxu0 0.0
    %1654 = vmatprep.subr.mxu0 0.0
    %1655 = vmatpush2.msra.mxu0 0.0
    %1656 = vmatprep.subr.mxu0 0.0
    %1657 = vmatpush2.msra.mxu0 0.0
    %1658 = vmatprep.subr.mxu0 0.0
    %1659 = vmatpush2.msra.mxu0 0.0
    %1660 = vmatprep.subr.mxu0 0.0
    %1661 = vmatpush2.msra.mxu0 0.0
    %1662 = vmatprep.mubr.f32.mxu0 0.0
    %1663 = vmatmul.mubr.f32.gmra.mxu0 %v1596
    %v1664 = vpop.f32.mrf.mxu0
    %v1665 = vadd.f32 0.0, %v1664
    %v1666 = vpop.f32.mrf.mxu0
    %1667 = vdwg.mxu0
    %v1669 = vsel %vm343, %v1665, 0
    %1671 = vmatprep.subr.mxu0 0.0
    %1672 = vmatpush1.msra.mxu0 0.0
    %1673 = vmatprep.subr.mxu0 0.0
    %1674 = vmatpush1.msra.mxu0 0.0
    %1675 = vmatprep.subr.mxu0 0.0
    %1676 = vmatpush1.msra.mxu0 0.0
    %1677 = vmatprep.subr.mxu0 0.0
    %1678 = vmatpush1.msra.mxu0 0.0
    %1679 = vmatprep.subr.mxu0 0.0
    %1680 = vmatpush1.msra.mxu0 0.0
    %1681 = vmatprep.subr.mxu0 0.0
    %1682 = vmatpush1.msra.mxu0 0.0
    %1683 = vmatprep.subr.mxu0 0.0
    %1684 = vmatpush1.msra.mxu0 0.0
    %1685 = vmatprep.subr.mxu0 0.0
    %1686 = vmatpush1.msra.mxu0 0.0
    %1687 = vmatprep.subr.mxu0 0.0
    %1688 = vmatpush1.msra.mxu0 0.0
    %1689 = vmatprep.subr.mxu0 0.0
    %1690 = vmatpush1.msra.mxu0 0.0
    %1691 = vmatprep.subr.mxu0 0.0
    %1692 = vmatpush1.msra.mxu0 0.0
    %1693 = vmatprep.subr.mxu0 0.0
    %1694 = vmatpush1.msra.mxu0 0.0
    %1695 = vmatprep.subr.mxu0 0.0
    %1696 = vmatpush1.msra.mxu0 0.0
    %1697 = vmatprep.subr.mxu0 0.0
    %1698 = vmatpush1.msra.mxu0 0.0
    %1699 = vmatprep.subr.mxu0 0.0
    %1700 = vmatpush1.msra.mxu0 0.0
    %1701 = vmatprep.subr.mxu0 0.0
    %1702 = vmatpush1.msra.mxu0 %v683
    %1703 = vmatprep.subr.mxu0 0.0
    %1704 = vmatpush2.msra.mxu0 0.0
    %1705 = vmatprep.subr.mxu0 0.0
    %1706 = vmatpush2.msra.mxu0 0.0
    %1707 = vmatprep.subr.mxu0 0.0
    %1708 = vmatpush2.msra.mxu0 0.0
    %1709 = vmatprep.subr.mxu0 0.0
    %1710 = vmatpush2.msra.mxu0 0.0
    %1711 = vmatprep.subr.mxu0 0.0
    %1712 = vmatpush2.msra.mxu0 0.0
    %1713 = vmatprep.subr.mxu0 0.0
    %1714 = vmatpush2.msra.mxu0 0.0
    %1715 = vmatprep.subr.mxu0 0.0
    %1716 = vmatpush2.msra.mxu0 0.0
    %1717 = vmatprep.subr.mxu0 0.0
    %1718 = vmatpush2.msra.mxu0 0.0
    %1719 = vmatprep.subr.mxu0 0.0
    %1720 = vmatpush2.msra.mxu0 0.0
    %1721 = vmatprep.subr.mxu0 0.0
    %1722 = vmatpush2.msra.mxu0 0.0
    %1723 = vmatprep.subr.mxu0 0.0
    %1724 = vmatpush2.msra.mxu0 0.0
    %1725 = vmatprep.subr.mxu0 0.0
    %1726 = vmatpush2.msra.mxu0 0.0
    %1727 = vmatprep.subr.mxu0 0.0
    %1728 = vmatpush2.msra.mxu0 0.0
    %1729 = vmatprep.subr.mxu0 0.0
    %1730 = vmatpush2.msra.mxu0 0.0
    %1731 = vmatprep.subr.mxu0 0.0
    %1732 = vmatpush2.msra.mxu0 0.0
    %1733 = vmatprep.subr.mxu0 0.0
    %1734 = vmatpush2.msra.mxu0 0.0
    %1735 = vmatprep.mubr.f32.mxu0 0.0
    %1736 = vmatmul.mubr.f32.gmra.mxu0 %v1669
    %v1737 = vpop.f32.mrf.mxu0
    %v1738 = vadd.f32 0.0, %v1737
    %v1739 = vpop.f32.mrf.mxu0
    %1740 = vdwg.mxu0
    %v1742 = vsel %vm343, %v1493, 0
    %1744 = vmatprep.subr.mxu0 0.0
    %1745 = vmatpush1.msra.mxu0 0.0
    %1746 = vmatprep.subr.mxu0 0.0
    %1747 = vmatpush1.msra.mxu0 0.0
    %1748 = vmatprep.subr.mxu0 0.0
    %1749 = vmatpush1.msra.mxu0 0.0
    %1750 = vmatprep.subr.mxu0 0.0
    %1751 = vmatpush1.msra.mxu0 0.0
    %1752 = vmatprep.subr.mxu0 0.0
    %1753 = vmatpush1.msra.mxu0 0.0
    %1754 = vmatprep.subr.mxu0 0.0
    %1755 = vmatpush1.msra.mxu0 0.0
    %1756 = vmatprep.subr.mxu0 0.0
    %1757 = vmatpush1.msra.mxu0 0.0
    %1758 = vmatprep.subr.mxu0 0.0
    %1759 = vmatpush1.msra.mxu0 0.0
    %1760 = vmatprep.subr.mxu0 0.0
    %1761 = vmatpush1.msra.mxu0 0.0
    %1762 = vmatprep.subr.mxu0 0.0
    %1763 = vmatpush1.msra.mxu0 0.0
    %1764 = vmatprep.subr.mxu0 0.0
    %1765 = vmatpush1.msra.mxu0 0.0
    %1766 = vmatprep.subr.mxu0 0.0
    %1767 = vmatpush1.msra.mxu0 0.0
    %1768 = vmatprep.subr.mxu0 0.0
    %1769 = vmatpush1.msra.mxu0 0.0
    %1770 = vmatprep.subr.mxu0 0.0
    %1771 = vmatpush1.msra.mxu0 0.0
    %1772 = vmatprep.subr.mxu0 0.0
    %1773 = vmatpush1.msra.mxu0 0.0
    %1774 = vmatprep.subr.mxu0 0.0
    %1775 = vmatpush1.msra.mxu0 %v510
    %1776 = vmatprep.subr.mxu0 0.0
    %1777 = vmatpush2.msra.mxu0 0.0
    %1778 = vmatprep.subr.mxu0 0.0
    %1779 = vmatpush2.msra.mxu0 0.0
    %1780 = vmatprep.subr.mxu0 0.0
    %1781 = vmatpush2.msra.mxu0 0.0
    %1782 = vmatprep.subr.mxu0 0.0
    %1783 = vmatpush2.msra.mxu0 0.0
    %1784 = vmatprep.subr.mxu0 0.0
    %1785 = vmatpush2.msra.mxu0 0.0
    %1786 = vmatprep.subr.mxu0 0.0
    %1787 = vmatpush2.msra.mxu0 0.0
    %1788 = vmatprep.subr.mxu0 0.0
    %1789 = vmatpush2.msra.mxu0 0.0
    %1790 = vmatprep.subr.mxu0 0.0
    %1791 = vmatpush2.msra.mxu0 0.0
    %1792 = vmatprep.subr.mxu0 0.0
    %1793 = vmatpush2.msra.mxu0 0.0
    %1794 = vmatprep.subr.mxu0 0.0
    %1795 = vmatpush2.msra.mxu0 0.0
    %1796 = vmatprep.subr.mxu0 0.0
    %1797 = vmatpush2.msra.mxu0 0.0
    %1798 = vmatprep.subr.mxu0 0.0
    %1799 = vmatpush2.msra.mxu0 0.0
    %1800 = vmatprep.subr.mxu0 0.0
    %1801 = vmatpush2.msra.mxu0 0.0
    %1802 = vmatprep.subr.mxu0 0.0
    %1803 = vmatpush2.msra.mxu0 0.0
    %1804 = vmatprep.subr.mxu0 0.0
    %1805 = vmatpush2.msra.mxu0 0.0
    %1806 = vmatprep.subr.mxu0 0.0
    %1807 = vmatpush2.msra.mxu0 0.0
    %1808 = vmatprep.mubr.f32.mxu0 0.0
    %1809 = vmatmul.mubr.f32.gmra.mxu0 %v1742
    %v1810 = vpop.f32.mrf.mxu0
    %v1811 = vadd.f32 %v1738, %v1810
    %v1812 = vpop.f32.mrf.mxu0
    %1813 = vdwg.mxu0
    %1814 = vrot.lane.b32.xlu0 %v329, 112
    %v1815 = vpop.permute.xlu0 %1814
    %1816 = vrot.lane.b32.xlu0 %v329, 80
    %v1817 = vpop.permute.xlu0 %1816
    %1818 = vrot.lane.b32.xlu0 %v334, 80
    %v1819 = vpop.permute.xlu0 %1818
    %v1820 = vsel %vm343, %v1815, 0
    %v1822 = vsel %vm343, %v1817, 0
    %v1824 = vsel %vm343, %v1819, 0
    %1826 = vmatprep.subr.mxu0 0.0
    %1827 = vmatpush1.xpose.msra.mxu0 0.0
    %1828 = vmatprep.subr.mxu0 0.0
    %1829 = vmatpush1.xpose.msra.mxu0 0.0
    %1830 = vmatprep.subr.mxu0 0.0
    %1831 = vmatpush1.xpose.msra.mxu0 0.0
    %1832 = vmatprep.subr.mxu0 0.0
    %1833 = vmatpush1.xpose.msra.mxu0 0.0
    %1834 = vmatprep.subr.mxu0 0.0
    %1835 = vmatpush1.xpose.msra.mxu0 0.0
    %1836 = vmatprep.subr.mxu0 0.0
    %1837 = vmatpush1.xpose.msra.mxu0 0.0
    %1838 = vmatprep.subr.mxu0 0.0
    %1839 = vmatpush1.xpose.msra.mxu0 0.0
    %1840 = vmatprep.subr.mxu0 0.0
    %1841 = vmatpush1.xpose.msra.mxu0 0.0
    %1842 = vmatprep.subr.mxu0 0.0
    %1843 = vmatpush1.xpose.msra.mxu0 0.0
    %1844 = vmatprep.subr.mxu0 0.0
    %1845 = vmatpush1.xpose.msra.mxu0 0.0
    %1846 = vmatprep.subr.mxu0 0.0
    %1847 = vmatpush1.xpose.msra.mxu0 0.0
    %1848 = vmatprep.subr.mxu0 0.0
    %1849 = vmatpush1.xpose.msra.mxu0 0.0
    %1850 = vmatprep.subr.mxu0 0.0
    %1851 = vmatpush1.xpose.msra.mxu0 0.0
    %1852 = vmatprep.subr.mxu0 0.0
    %1853 = vmatpush1.xpose.msra.mxu0 0.0
    %1854 = vmatprep.subr.mxu0 0.0
    %1855 = vmatpush1.xpose.msra.mxu0 %v1824
    %1856 = vmatprep.subr.mxu0 0.0
    %1857 = vmatpush1.xpose.msra.mxu0 %v1822
    %1858 = vmatprep.subr.mxu0 0.0
    %1859 = vmatpush2.xpose.msra.mxu0 0.0
    %1860 = vmatprep.subr.mxu0 0.0
    %1861 = vmatpush2.xpose.msra.mxu0 0.0
    %1862 = vmatprep.subr.mxu0 0.0
    %1863 = vmatpush2.xpose.msra.mxu0 0.0
    %1864 = vmatprep.subr.mxu0 0.0
    %1865 = vmatpush2.xpose.msra.mxu0 0.0
    %1866 = vmatprep.subr.mxu0 0.0
    %1867 = vmatpush2.xpose.msra.mxu0 0.0
    %1868 = vmatprep.subr.mxu0 0.0
    %1869 = vmatpush2.xpose.msra.mxu0 0.0
    %1870 = vmatprep.subr.mxu0 0.0
    %1871 = vmatpush2.xpose.msra.mxu0 0.0
    %1872 = vmatprep.subr.mxu0 0.0
    %1873 = vmatpush2.xpose.msra.mxu0 0.0
    %1874 = vmatprep.subr.mxu0 0.0
    %1875 = vmatpush2.xpose.msra.mxu0 0.0
    %1876 = vmatprep.subr.mxu0 0.0
    %1877 = vmatpush2.xpose.msra.mxu0 0.0
    %1878 = vmatprep.subr.mxu0 0.0
    %1879 = vmatpush2.xpose.msra.mxu0 0.0
    %1880 = vmatprep.subr.mxu0 0.0
    %1881 = vmatpush2.xpose.msra.mxu0 0.0
    %1882 = vmatprep.subr.mxu0 0.0
    %1883 = vmatpush2.xpose.msra.mxu0 0.0
    %1884 = vmatprep.subr.mxu0 0.0
    %1885 = vmatpush2.xpose.msra.mxu0 0.0
    %1886 = vmatprep.subr.mxu0 0.0
    %1887 = vmatpush2.xpose.msra.mxu0 0.0
    %1888 = vmatprep.subr.mxu0 0.0
    %1889 = vmatpush2.xpose.msra.mxu0 0.0
    %1890 = vmatprep.mubr.f32.mxu0 0.0
    %1891 = vmatmul.mubr.f32.gmra.mxu0 %v1820
    %v1892 = vpop.f32.mrf.mxu0
    %v1893 = vadd.f32 0.0, %v1892
    %v1894 = vpop.f32.mrf.mxu0
    %1895 = vdwg.mxu0
    %v1896 = vsel %vm78, %v1893, -inf
    %1897 = vmax.xlane.f32.xlu0 %v1896
    %v1898 = vpop.xlane.xlu0 %1897
    %v1899 = vsub.f32 %v1893, %v1898
    %v1900 = vmul.f32 %v1899, 1.442695
    %v1901 = vpow.pop %v1900
    %v1902 = vsel %vm78, %v1901, 0.0
    %1903 = vadd.xlane.f32.xlu0 %v1902
    %v1904 = vpop.xlane.xlu0 %1903
    %v1905 = vrcp.pop %v1904
    %v1906 = vmul.f32 %v1901, %v1905
    %1907 = vrot.lane.b32.xlu0 %v329, 48
    %v1908 = vpop.permute.xlu0 %1907
    %1909 = vrot.lane.b32.xlu0 %v334, 48
    %v1910 = vpop.permute.xlu0 %1909
    %v1914 = vsel %vm78, %v1906, 0
    %1916 = vmatprep.subr.mxu0 0.0
    %1917 = vmatpush1.msra.mxu0 0.0
    %1918 = vmatprep.subr.mxu0 0.0
    %1919 = vmatpush1.msra.mxu0 0.0
    %1920 = vmatprep.subr.mxu0 0.0
    %1921 = vmatpush1.msra.mxu0 0.0
    %1922 = vmatprep.subr.mxu0 0.0
    %1923 = vmatpush1.msra.mxu0 0.0
    %1924 = vmatprep.subr.mxu0 0.0
    %1925 = vmatpush1.msra.mxu0 0.0
    %1926 = vmatprep.subr.mxu0 0.0
    %1927 = vmatpush1.msra.mxu0 0.0
    %1928 = vmatprep.subr.mxu0 0.0
    %1929 = vmatpush1.msra.mxu0 0.0
    %1930 = vmatprep.subr.mxu0 0.0
    %1931 = vmatpush1.msra.mxu0 0.0
    %1932 = vmatprep.subr.mxu0 0.0
    %1933 = vmatpush1.msra.mxu0 0.0
    %1934 = vmatprep.subr.mxu0 0.0
    %1935 = vmatpush1.msra.mxu0 0.0
    %1936 = vmatprep.subr.mxu0 0.0
    %1937 = vmatpush1.msra.mxu0 0.0
    %1938 = vmatprep.subr.mxu0 0.0
    %1939 = vmatpush1.msra.mxu0 0.0
    %1940 = vmatprep.subr.mxu0 0.0
    %1941 = vmatpush1.msra.mxu0 0.0
    %1942 = vmatprep.subr.mxu0 0.0
    %1943 = vmatpush1.msra.mxu0 0.0
    %1944 = vmatprep.subr.mxu0 0.0
    %1945 = vmatpush1.msra.mxu0 %v1910
    %1946 = vmatprep.subr.mxu0 0.0
    %1947 = vmatpush1.msra.mxu0 %v1908
    %1948 = vmatprep.subr.mxu0 0.0
    %1949 = vmatpush2.msra.mxu0 0.0
    %1950 = vmatprep.subr.mxu0 0.0
    %1951 = vmatpush2.msra.mxu0 0.0
    %1952 = vmatprep.subr.mxu0 0.0
    %1953 = vmatpush2.msra.mxu0 0.0
    %1954 = vmatprep.subr.mxu0 0.0
    %1955 = vmatpush2.msra.mxu0 0.0
    %1956 = vmatprep.subr.mxu0 0.0
    %1957 = vmatpush2.msra.mxu0 0.0
    %1958 = vmatprep.subr.mxu0 0.0
    %1959 = vmatpush2.msra.mxu0 0.0
    %1960 = vmatprep.subr.mxu0 0.0
    %1961 = vmatpush2.msra.mxu0 0.0
    %1962 = vmatprep.subr.mxu0 0.0
    %1963 = vmatpush2.msra.mxu0 0.0
    %1964 = vmatprep.subr.mxu0 0.0
    %1965 = vmatpush2.msra.mxu0 0.0
    %1966 = vmatprep.subr.mxu0 0.0
    %1967 = vmatpush2.msra.mxu0 0.0
    %1968 = vmatprep.subr.mxu0 0.0
    %1969 = vmatpush2.msra.mxu0 0.0
    %1970 = vmatprep.subr.mxu0 0.0
    %1971 = vmatpush2.msra.mxu0 0.0
    %1972 = vmatprep.subr.mxu0 0.0
    %1973 = vmatpush2.msra.mxu0 0.0
    %1974 = vmatprep.subr.mxu0 0.0
    %1975 = vmatpush2.msra.mxu0 0.0
    %1976 = vmatprep.subr.mxu0 0.0
    %1977 = vmatpush2.msra.mxu0 0.0
    %1978 = vmatprep.subr.mxu0 0.0
    %1979 = vmatpush2.msra.mxu0 0.0
    %1980 = vmatprep.mubr.f32.mxu0 0.0
    %1981 = vmatmul.mubr.f32.gmra.mxu0 %v1914
    %v1982 = vpop.f32.mrf.mxu0
    %v1983 = vadd.f32 0.0, %v1982
    %v1984 = vpop.f32.mrf.mxu0
    %1985 = vdwg.mxu0
    %v1987 = vsel %vm343, %v1983, 0
    %1989 = vmatprep.subr.mxu0 0.0
    %1990 = vmatpush1.msra.mxu0 0.0
    %1991 = vmatprep.subr.mxu0 0.0
    %1992 = vmatpush1.msra.mxu0 0.0
    %1993 = vmatprep.subr.mxu0 0.0
    %1994 = vmatpush1.msra.mxu0 0.0
    %1995 = vmatprep.subr.mxu0 0.0
    %1996 = vmatpush1.msra.mxu0 0.0
    %1997 = vmatprep.subr.mxu0 0.0
    %1998 = vmatpush1.msra.mxu0 0.0
    %1999 = vmatprep.subr.mxu0 0.0
    %2000 = vmatpush1.msra.mxu0 0.0
    %2001 = vmatprep.subr.mxu0 0.0
    %2002 = vmatpush1.msra.mxu0 0.0
    %2003 = vmatprep.subr.mxu0 0.0
    %2004 = vmatpush1.msra.mxu0 0.0
    %2005 = vmatprep.subr.mxu0 0.0
    %2006 = vmatpush1.msra.mxu0 0.0
    %2007 = vmatprep.subr.mxu0 0.0
    %2008 = vmatpush1.msra.mxu0 0.0
    %2009 = vmatprep.subr.mxu0 0.0
    %2010 = vmatpush1.msra.mxu0 0.0
    %2011 = vmatprep.subr.mxu0 0.0
    %2012 = vmatpush1.msra.mxu0 0.0
    %2013 = vmatprep.subr.mxu0 0.0
    %2014 = vmatpush1.msra.mxu0 0.0
    %2015 = vmatprep.subr.mxu0 0.0
    %2016 = vmatpush1.msra.mxu0 0.0
    %2017 = vmatprep.subr.mxu0 0.0
    %2018 = vmatpush1.msra.mxu0 0.0
    %2019 = vmatprep.subr.mxu0 0.0
    %2020 = vmatpush1.msra.mxu0 %v1002
    %2021 = vmatprep.subr.mxu0 0.0
    %2022 = vmatpush2.msra.mxu0 0.0
    %2023 = vmatprep.subr.mxu0 0.0
    %2024 = vmatpush2.msra.mxu0 0.0
    %2025 = vmatprep.subr.mxu0 0.0
    %2026 = vmatpush2.msra.mxu0 0.0
    %2027 = vmatprep.subr.mxu0 0.0
    %2028 = vmatpush2.msra.mxu0 0.0
    %2029 = vmatprep.subr.mxu0 0.0
    %2030 = vmatpush2.msra.mxu0 0.0
    %2031 = vmatprep.subr.mxu0 0.0
    %2032 = vmatpush2.msra.mxu0 0.0
    %2033 = vmatprep.subr.mxu0 0.0
    %2034 = vmatpush2.msra.mxu0 0.0
    %2035 = vmatprep.subr.mxu0 0.0
    %2036 = vmatpush2.msra.mxu0 0.0
    %2037 = vmatprep.subr.mxu0 0.0
    %2038 = vmatpush2.msra.mxu0 0.0
    %2039 = vmatprep.subr.mxu0 0.0
    %2040 = vmatpush2.msra.mxu0 0.0
    %2041 = vmatprep.subr.mxu0 0.0
    %2042 = vmatpush2.msra.mxu0 0.0
    %2043 = vmatprep.subr.mxu0 0.0
    %2044 = vmatpush2.msra.mxu0 0.0
    %2045 = vmatprep.subr.mxu0 0.0
    %2046 = vmatpush2.msra.mxu0 0.0
    %2047 = vmatprep.subr.mxu0 0.0
    %2048 = vmatpush2.msra.mxu0 0.0
    %2049 = vmatprep.subr.mxu0 0.0
    %2050 = vmatpush2.msra.mxu0 0.0
    %2051 = vmatprep.subr.mxu0 0.0
    %2052 = vmatpush2.msra.mxu0 0.0
    %2053 = vmatprep.mubr.f32.mxu0 0.0
    %2054 = vmatmul.mubr.f32.gmra.mxu0 %v1987
    %v2055 = vpop.f32.mrf.mxu0
    %v2056 = vadd.f32 0.0, %v2055
    %v2057 = vpop.f32.mrf.mxu0
    %2058 = vdwg.mxu0
    %v2059 = vadd.f32 %v1811, %v2056
    %2060 = vrot.lane.b32.xlu0 %v329, 104
    %v2061 = vpop.permute.xlu0 %2060
    %2062 = vrot.lane.b32.xlu0 %v329, 72
    %v2063 = vpop.permute.xlu0 %2062
    %2064 = vrot.lane.b32.xlu0 %v334, 72
    %v2065 = vpop.permute.xlu0 %2064
    %v2066 = vsel %vm343, %v2061, 0
    %v2068 = vsel %vm343, %v2063, 0
    %v2070 = vsel %vm343, %v2065, 0
    %2072 = vmatprep.subr.mxu0 0.0
    %2073 = vmatpush1.xpose.msra.mxu0 0.0
    %2074 = vmatprep.subr.mxu0 0.0
    %2075 = vmatpush1.xpose.msra.mxu0 0.0
    %2076 = vmatprep.subr.mxu0 0.0
    %2077 = vmatpush1.xpose.msra.mxu0 0.0
    %2078 = vmatprep.subr.mxu0 0.0
    %2079 = vmatpush1.xpose.msra.mxu0 0.0
    %2080 = vmatprep.subr.mxu0 0.0
    %2081 = vmatpush1.xpose.msra.mxu0 0.0
    %2082 = vmatprep.subr.mxu0 0.0
    %2083 = vmatpush1.xpose.msra.mxu0 0.0
    %2084 = vmatprep.subr.mxu0 0.0
    %2085 = vmatpush1.xpose.msra.mxu0 0.0
    %2086 = vmatprep.subr.mxu0 0.0
    %2087 = vmatpush1.xpose.msra.mxu0 0.0
    %2088 = vmatprep.subr.mxu0 0.0
    %2089 = vmatpush1.xpose.msra.mxu0 0.0
    %2090 = vmatprep.subr.mxu0 0.0
    %2091 = vmatpush1.xpose.msra.mxu0 0.0
    %2092 = vmatprep.subr.mxu0 0.0
    %2093 = vmatpush1.xpose.msra.mxu0 0.0
    %2094 = vmatprep.subr.mxu0 0.0
    %2095 = vmatpush1.xpose.msra.mxu0 0.0
    %2096 = vmatprep.subr.mxu0 0.0
    %2097 = vmatpush1.xpose.msra.mxu0 0.0
    %2098 = vmatprep.subr.mxu0 0.0
    %2099 = vmatpush1.xpose.msra.mxu0 0.0
    %2100 = vmatprep.subr.mxu0 0.0
    %2101 = vmatpush1.xpose.msra.mxu0 %v2070
    %2102 = vmatprep.subr.mxu0 0.0
    %2103 = vmatpush1.xpose.msra.mxu0 %v2068
    %2104 = vmatprep.subr.mxu0 0.0
    %2105 = vmatpush2.xpose.msra.mxu0 0.0
    %2106 = vmatprep.subr.mxu0 0.0
    %2107 = vmatpush2.xpose.msra.mxu0 0.0
    %2108 = vmatprep.subr.mxu0 0.0
    %2109 = vmatpush2.xpose.msra.mxu0 0.0
    %2110 = vmatprep.subr.mxu0 0.0
    %2111 = vmatpush2.xpose.msra.mxu0 0.0
    %2112 = vmatprep.subr.mxu0 0.0
    %2113 = vmatpush2.xpose.msra.mxu0 0.0
    %2114 = vmatprep.subr.mxu0 0.0
    %2115 = vmatpush2.xpose.msra.mxu0 0.0
    %2116 = vmatprep.subr.mxu0 0.0
    %2117 = vmatpush2.xpose.msra.mxu0 0.0
    %2118 = vmatprep.subr.mxu0 0.0
    %2119 = vmatpush2.xpose.msra.mxu0 0.0
    %2120 = vmatprep.subr.mxu0 0.0
    %2121 = vmatpush2.xpose.msra.mxu0 0.0
    %2122 = vmatprep.subr.mxu0 0.0
    %2123 = vmatpush2.xpose.msra.mxu0 0.0
    %2124 = vmatprep.subr.mxu0 0.0
    %2125 = vmatpush2.xpose.msra.mxu0 0.0
    %2126 = vmatprep.subr.mxu0 0.0
    %2127 = vmatpush2.xpose.msra.mxu0 0.0
    %2128 = vmatprep.subr.mxu0 0.0
    %2129 = vmatpush2.xpose.msra.mxu0 0.0
    %2130 = vmatprep.subr.mxu0 0.0
    %2131 = vmatpush2.xpose.msra.mxu0 0.0
    %2132 = vmatprep.subr.mxu0 0.0
    %2133 = vmatpush2.xpose.msra.mxu0 0.0
    %2134 = vmatprep.subr.mxu0 0.0
    %2135 = vmatpush2.xpose.msra.mxu0 0.0
    %2136 = vmatprep.mubr.f32.mxu0 0.0
    %2137 = vmatmul.mubr.f32.gmra.mxu0 %v2066
    %v2138 = vpop.f32.mrf.mxu0
    %v2139 = vadd.f32 0.0, %v2138
    %v2140 = vpop.f32.mrf.mxu0
    %2141 = vdwg.mxu0
    %v2142 = vsel %vm78, %v2139, -inf
    %2143 = vmax.xlane.f32.xlu0 %v2142
    %v2144 = vpop.xlane.xlu0 %2143
    %v2145 = vsub.f32 %v2139, %v2144
    %v2146 = vmul.f32 %v2145, 1.442695
    %v2147 = vpow.pop %v2146
    %v2148 = vsel %vm78, %v2147, 0.0
    %2149 = vadd.xlane.f32.xlu0 %v2148
    %v2150 = vpop.xlane.xlu0 %2149
    %v2151 = vrcp.pop %v2150
    %v2152 = vmul.f32 %v2147, %v2151
    %2153 = vrot.lane.b32.xlu0 %v329, 40
    %v2154 = vpop.permute.xlu0 %2153
    %2155 = vrot.lane.b32.xlu0 %v334, 40
    %v2156 = vpop.permute.xlu0 %2155
    %v2160 = vsel %vm78, %v2152, 0
    %2162 = vmatprep.subr.mxu0 0.0
    %2163 = vmatpush1.msra.mxu0 0.0
    %2164 = vmatprep.subr.mxu0 0.0
    %2165 = vmatpush1.msra.mxu0 0.0
    %2166 = vmatprep.subr.mxu0 0.0
    %2167 = vmatpush1.msra.mxu0 0.0
    %2168 = vmatprep.subr.mxu0 0.0
    %2169 = vmatpush1.msra.mxu0 0.0
    %2170 = vmatprep.subr.mxu0 0.0
    %2171 = vmatpush1.msra.mxu0 0.0
    %2172 = vmatprep.subr.mxu0 0.0
    %2173 = vmatpush1.msra.mxu0 0.0
    %2174 = vmatprep.subr.mxu0 0.0
    %2175 = vmatpush1.msra.mxu0 0.0
    %2176 = vmatprep.subr.mxu0 0.0
    %2177 = vmatpush1.msra.mxu0 0.0
    %2178 = vmatprep.subr.mxu0 0.0
    %2179 = vmatpush1.msra.mxu0 0.0
    %2180 = vmatprep.subr.mxu0 0.0
    %2181 = vmatpush1.msra.mxu0 0.0
    %2182 = vmatprep.subr.mxu0 0.0
    %2183 = vmatpush1.msra.mxu0 0.0
    %2184 = vmatprep.subr.mxu0 0.0
    %2185 = vmatpush1.msra.mxu0 0.0
    %2186 = vmatprep.subr.mxu0 0.0
    %2187 = vmatpush1.msra.mxu0 0.0
    %2188 = vmatprep.subr.mxu0 0.0
    %2189 = vmatpush1.msra.mxu0 0.0
    %2190 = vmatprep.subr.mxu0 0.0
    %2191 = vmatpush1.msra.mxu0 %v2156
    %2192 = vmatprep.subr.mxu0 0.0
    %2193 = vmatpush1.msra.mxu0 %v2154
    %2194 = vmatprep.subr.mxu0 0.0
    %2195 = vmatpush2.msra.mxu0 0.0
    %2196 = vmatprep.subr.mxu0 0.0
    %2197 = vmatpush2.msra.mxu0 0.0
    %2198 = vmatprep.subr.mxu0 0.0
    %2199 = vmatpush2.msra.mxu0 0.0
    %2200 = vmatprep.subr.mxu0 0.0
    %2201 = vmatpush2.msra.mxu0 0.0
    %2202 = vmatprep.subr.mxu0 0.0
    %2203 = vmatpush2.msra.mxu0 0.0
    %2204 = vmatprep.subr.mxu0 0.0
    %2205 = vmatpush2.msra.mxu0 0.0
    %2206 = vmatprep.subr.mxu0 0.0
    %2207 = vmatpush2.msra.mxu0 0.0
    %2208 = vmatprep.subr.mxu0 0.0
    %2209 = vmatpush2.msra.mxu0 0.0
    %2210 = vmatprep.subr.mxu0 0.0
    %2211 = vmatpush2.msra.mxu0 0.0
    %2212 = vmatprep.subr.mxu0 0.0
    %2213 = vmatpush2.msra.mxu0 0.0
    %2214 = vmatprep.subr.mxu0 0.0
    %2215 = vmatpush2.msra.mxu0 0.0
    %2216 = vmatprep.subr.mxu0 0.0
    %2217 = vmatpush2.msra.mxu0 0.0
    %2218 = vmatprep.subr.mxu0 0.0
    %2219 = vmatpush2.msra.mxu0 0.0
    %2220 = vmatprep.subr.mxu0 0.0
    %2221 = vmatpush2.msra.mxu0 0.0
    %2222 = vmatprep.subr.mxu0 0.0
    %2223 = vmatpush2.msra.mxu0 0.0
    %2224 = vmatprep.subr.mxu0 0.0
    %2225 = vmatpush2.msra.mxu0 0.0
    %2226 = vmatprep.mubr.f32.mxu0 0.0
    %2227 = vmatmul.mubr.f32.gmra.mxu0 %v2160
    %v2228 = vpop.f32.mrf.mxu0
    %v2229 = vadd.f32 0.0, %v2228
    %v2230 = vpop.f32.mrf.mxu0
    %2231 = vdwg.mxu0
    %v2233 = vsel %vm343, %v2229, 0
    %2235 = vmatprep.subr.mxu0 0.0
    %2236 = vmatpush1.msra.mxu0 0.0
    %2237 = vmatprep.subr.mxu0 0.0
    %2238 = vmatpush1.msra.mxu0 0.0
    %2239 = vmatprep.subr.mxu0 0.0
    %2240 = vmatpush1.msra.mxu0 0.0
    %2241 = vmatprep.subr.mxu0 0.0
    %2242 = vmatpush1.msra.mxu0 0.0
    %2243 = vmatprep.subr.mxu0 0.0
    %2244 = vmatpush1.msra.mxu0 0.0
    %2245 = vmatprep.subr.mxu0 0.0
    %2246 = vmatpush1.msra.mxu0 0.0
    %2247 = vmatprep.subr.mxu0 0.0
    %2248 = vmatpush1.msra.mxu0 0.0
    %2249 = vmatprep.subr.mxu0 0.0
    %2250 = vmatpush1.msra.mxu0 0.0
    %2251 = vmatprep.subr.mxu0 0.0
    %2252 = vmatpush1.msra.mxu0 0.0
    %2253 = vmatprep.subr.mxu0 0.0
    %2254 = vmatpush1.msra.mxu0 0.0
    %2255 = vmatprep.subr.mxu0 0.0
    %2256 = vmatpush1.msra.mxu0 0.0
    %2257 = vmatprep.subr.mxu0 0.0
    %2258 = vmatpush1.msra.mxu0 0.0
    %2259 = vmatprep.subr.mxu0 0.0
    %2260 = vmatpush1.msra.mxu0 0.0
    %2261 = vmatprep.subr.mxu0 0.0
    %2262 = vmatpush1.msra.mxu0 0.0
    %2263 = vmatprep.subr.mxu0 0.0
    %2264 = vmatpush1.msra.mxu0 0.0
    %2265 = vmatprep.subr.mxu0 0.0
    %2266 = vmatpush1.msra.mxu0 %v1249
    %2267 = vmatprep.subr.mxu0 0.0
    %2268 = vmatpush2.msra.mxu0 0.0
    %2269 = vmatprep.subr.mxu0 0.0
    %2270 = vmatpush2.msra.mxu0 0.0
    %2271 = vmatprep.subr.mxu0 0.0
    %2272 = vmatpush2.msra.mxu0 0.0
    %2273 = vmatprep.subr.mxu0 0.0
    %2274 = vmatpush2.msra.mxu0 0.0
    %2275 = vmatprep.subr.mxu0 0.0
    %2276 = vmatpush2.msra.mxu0 0.0
    %2277 = vmatprep.subr.mxu0 0.0
    %2278 = vmatpush2.msra.mxu0 0.0
    %2279 = vmatprep.subr.mxu0 0.0
    %2280 = vmatpush2.msra.mxu0 0.0
    %2281 = vmatprep.subr.mxu0 0.0
    %2282 = vmatpush2.msra.mxu0 0.0
    %2283 = vmatprep.subr.mxu0 0.0
    %2284 = vmatpush2.msra.mxu0 0.0
    %2285 = vmatprep.subr.mxu0 0.0
    %2286 = vmatpush2.msra.mxu0 0.0
    %2287 = vmatprep.subr.mxu0 0.0
    %2288 = vmatpush2.msra.mxu0 0.0
    %2289 = vmatprep.subr.mxu0 0.0
    %2290 = vmatpush2.msra.mxu0 0.0
    %2291 = vmatprep.subr.mxu0 0.0
    %2292 = vmatpush2.msra.mxu0 0.0
    %2293 = vmatprep.subr.mxu0 0.0
    %2294 = vmatpush2.msra.mxu0 0.0
    %2295 = vmatprep.subr.mxu0 0.0
    %2296 = vmatpush2.msra.mxu0 0.0
    %2297 = vmatprep.subr.mxu0 0.0
    %2298 = vmatpush2.msra.mxu0 0.0
    %2299 = vmatprep.mubr.f32.mxu0 0.0
    %2300 = vmatmul.mubr.f32.gmra.mxu0 %v2233
    %v2301 = vpop.f32.mrf.mxu0
    %v2302 = vadd.f32 0.0, %v2301
    %v2303 = vpop.f32.mrf.mxu0
    %2304 = vdwg.mxu0
    %v2305 = vadd.f32 %v2059, %v2302
    %v2306 = vadd.f32 %v65, %v1323
    %v2307 = vadd.f32 %v66, %v2305
    %v2308 = vld [vmem:[%s8] sm:$0x1]
    %v2310 = vlaneseq
    %v2311 = vshrl.u32 %v2310, 7
    %v2312 = vsub.s32 0, %v2311
    %v2313 = vrot.slane %v2308, %v2312
    %v2315 = vadd.f32 %v2306, %v2313
    %v2316 = vadd.f32 %v2307, %v2313
    %v2317 = vld [vmem:[%s9] sm:$0x1]
    %v2318 = vld [vmem:[%s10] sm:$0x1]
    %v2319 = vsel %vm162, %v2315, 0.0
    %2320 = vadd.xlane.f32.xlu0 %v2319
    %v2321 = vpop.xlane.xlu0 %2320
    %v2322 = vsel %vm162, %v2316, 0.0
    %2323 = vadd.xlane.f32.xlu0 %v2322
    %v2324 = vpop.xlane.xlu0 %2323
    %v2325 = vmul.f32 %v2321, %v169
    %v2326 = vmul.f32 %v2324, %v169
    %v2327 = vsub.f32 %v2315, %v2325
    %v2328 = vsub.f32 %v2316, %v2326
    %v2329 = vmul.f32 %v2327, %v2327
    %v2330 = vmul.f32 %v2328, %v2328
    %v2331 = vsel %vm162, %v2329, 0.0
    %2332 = vadd.xlane.f32.xlu0 %v2331
    %v2333 = vpop.xlane.xlu0 %2332
    %v2334 = vsel %vm162, %v2330, 0.0
    %2335 = vadd.xlane.f32.xlu0 %v2334
    %v2336 = vpop.xlane.xlu0 %2335
    %v2337 = vmul.f32 %v2333, %v169
    %v2338 = vmul.f32 %v2336, %v169
    %v2339 = vadd.f32 %v2337, 1e-05
    %v2340 = vadd.f32 %v2338, 1e-05
    %v2341 = vrsqrt.pop %v2339
    %v2342 = vrsqrt.pop %v2340
    %v2343 = vmul.f32 %v2327, %v2341
    %v2344 = vmul.f32 %v2328, %v2342
    %v2346 = vlaneseq
    %v2347 = vshrl.u32 %v2346, 7
    %v2348 = vsub.s32 0, %v2347
    %v2349 = vrot.slane %v2317, %v2348
    %v2351 = vmul.f32 %v2343, %v2349
    %v2352 = vmul.f32 %v2344, %v2349
    %v2354 = vlaneseq
    %v2355 = vshrl.u32 %v2354, 7
    %v2356 = vsub.s32 0, %v2355
    %v2357 = vrot.slane %v2318, %v2356
    %v2359 = vadd.f32 %v2351, %v2357
    %v2360 = vadd.f32 %v2352, %v2357
    %v2361 = vld [vmem:[%s11] sm:$0xff]
    %v2362 = vld [vmem:[%s11 + $0x8] sm:$0xff]
    %v2363 = vld [vmem:[%s11 + $0x10] sm:$0xff]
    %v2364 = vld [vmem:[%s11 + $0x18] sm:$0xff]
    %v2365 = vld [vmem:[%s11 + $0x20] sm:$0xff]
    %v2366 = vld [vmem:[%s11 + $0x28] sm:$0xff]
    %v2367 = vld [vmem:[%s11 + $0x30] sm:$0xff]
    %v2368 = vld [vmem:[%s11 + $0x38] sm:$0xff]
    %v2369 = vld [vmem:[%s12] sm:$0x3]
    %v2371 = vlaneseq
    %v2372 = vshrl.u32 %v2371, 7
    %v2373 = vsub.s32 0, %v2372
    %v2374 = vrot.slane %v2369, %v2373
    %v2375 = vlaneseq
    %v2376 = vshrl.u32 %v2375, 7
    %v2377 = vsub.s32 1, %v2376
    %v2378 = vrot.slane %v2369, %v2377
    %v2382 = vsel %vm162, %v2359, 0
    %v2385 = vsel %vm162, %v2360, 0
    %2387 = vmatprep.subr.mxu0 0.0
    %2388 = vmatpush1.msra.mxu0 0.0
    %2389 = vmatprep.subr.mxu0 0.0
    %2390 = vmatpush1.msra.mxu0 0.0
    %2391 = vmatprep.subr.mxu0 0.0
    %2392 = vmatpush1.msra.mxu0 0.0
    %2393 = vmatprep.subr.mxu0 0.0
    %2394 = vmatpush1.msra.mxu0 0.0
    %2395 = vmatprep.subr.mxu0 0.0
    %2396 = vmatpush1.msra.mxu0 0.0
    %2397 = vmatprep.subr.mxu0 0.0
    %2398 = vmatpush1.msra.mxu0 0.0
    %2399 = vmatprep.subr.mxu0 0.0
    %2400 = vmatpush1.msra.mxu0 0.0
    %2401 = vmatprep.subr.mxu0 0.0
    %2402 = vmatpush1.msra.mxu0 0.0
    %2403 = vmatprep.subr.mxu0 0.0
    %2404 = vmatpush1.msra.mxu0 0.0
    %2405 = vmatprep.subr.mxu0 0.0
    %2406 = vmatpush1.msra.mxu0 0.0
    %2407 = vmatprep.subr.mxu0 0.0
    %2408 = vmatpush1.msra.mxu0 0.0
    %2409 = vmatprep.subr.mxu0 0.0
    %2410 = vmatpush1.msra.mxu0 0.0
    %2411 = vmatprep.subr.mxu0 %v2368
    %2412 = vmatpush1.msra.mxu0 %v2367
    %2413 = vmatprep.subr.mxu0 %v2366
    %2414 = vmatpush1.msra.mxu0 %v2365
    %2415 = vmatprep.subr.mxu0 %v2364
    %2416 = vmatpush1.msra.mxu0 %v2363
    %2417 = vmatprep.subr.mxu0 %v2362
    %2418 = vmatpush1.msra.mxu0 %v2361
    %2419 = vmatprep.subr.mxu0 0.0
    %2420 = vmatpush2.msra.mxu0 0.0
    %2421 = vmatprep.subr.mxu0 0.0
    %2422 = vmatpush2.msra.mxu0 0.0
    %2423 = vmatprep.subr.mxu0 0.0
    %2424 = vmatpush2.msra.mxu0 0.0
    %2425 = vmatprep.subr.mxu0 0.0
    %2426 = vmatpush2.msra.mxu0 0.0
    %2427 = vmatprep.subr.mxu0 0.0
    %2428 = vmatpush2.msra.mxu0 0.0
    %2429 = vmatprep.subr.mxu0 0.0
    %2430 = vmatpush2.msra.mxu0 0.0
    %2431 = vmatprep.subr.mxu0 0.0
    %2432 = vmatpush2.msra.mxu0 0.0
    %2433 = vmatprep.subr.mxu0 0.0
    %2434 = vmatpush2.msra.mxu0 0.0
    %2435 = vmatprep.subr.mxu0 0.0
    %2436 = vmatpush2.msra.mxu0 0.0
    %2437 = vmatprep.subr.mxu0 0.0
    %2438 = vmatpush2.msra.mxu0 0.0
    %2439 = vmatprep.subr.mxu0 0.0
    %2440 = vmatpush2.msra.mxu0 0.0
    %2441 = vmatprep.subr.mxu0 0.0
    %2442 = vmatpush2.msra.mxu0 0.0
    %2443 = vmatprep.subr.mxu0 0.0
    %2444 = vmatpush2.msra.mxu0 0.0
    %2445 = vmatprep.subr.mxu0 0.0
    %2446 = vmatpush2.msra.mxu0 0.0
    %2447 = vmatprep.subr.mxu0 0.0
    %2448 = vmatpush2.msra.mxu0 0.0
    %2449 = vmatprep.subr.mxu0 0.0
    %2450 = vmatpush2.msra.mxu0 0.0
    %2451 = vmatprep.mubr.f32.mxu0 0.0
    %2452 = vmatmul.mubr.f32.gmra.mxu0 %v2382
    %v2453 = vpop.f32.mrf.mxu0
    %v2454 = vadd.f32 %v2374, %v2453
    %v2455 = vpop.f32.mrf.mxu0
    %v2456 = vadd.f32 %v2378, %v2455
    %2457 = vmatprep.mubr.f32.mxu0 0.0
    %2458 = vmatmul.mubr.f32.gmra.mxu0 %v2385
    %v2459 = vpop.f32.mrf.mxu0
    %v2460 = vadd.f32 %v2374, %v2459
    %v2461 = vpop.f32.mrf.mxu0
    %v2462 = vadd.f32 %v2378, %v2461
    %2463 = vdwg.mxu0
    %v2464 = vmul.f32 %v2456, 0.5
    %v2465 = vmul.f32 %v2462, 0.5
    %v2466 = vmul.f32 %v2456, 0.70710677
    %v2467 = vmul.f32 %v2462, 0.70710677
    %v2468 = verf.f32.pop %v2466
    %v2469 = verf.f32.pop %v2467
    %v2470 = vadd.f32 %v2468, 1.0
    %v2471 = vadd.f32 %v2469, 1.0
    %v2472 = vmul.f32 %v2464, %v2470
    %v2473 = vmul.f32 %v2465, %v2471
    %v2474 = vmul.f32 %v2454, %v2472
    %v2475 = vmul.f32 %v2460, %v2473
    %v2476 = vld [vmem:[%s13] sm:$0xff]
    %v2477 = vld [vmem:[%s13 + $0x8] sm:$0xff]
    %v2478 = vld [vmem:[%s13 + $0x10] sm:$0xff]
    %v2479 = vld [vmem:[%s13 + $0x18] sm:$0xff]
    %v2480 = vld [vmem:[%s13 + $0x20] sm:$0xff]
    %v2481 = vld [vmem:[%s13 + $0x28] sm:$0xff]
    %v2482 = vld [vmem:[%s13 + $0x30] sm:$0xff]
    %v2483 = vld [vmem:[%s13 + $0x38] sm:$0xff]
    %v2484 = vld [vmem:[%s13 + $0x40] sm:$0xff]
    %v2485 = vld [vmem:[%s13 + $0x48] sm:$0xff]
    %v2486 = vld [vmem:[%s13 + $0x50] sm:$0xff]
    %v2487 = vld [vmem:[%s13 + $0x58] sm:$0xff]
    %v2488 = vld [vmem:[%s13 + $0x60] sm:$0xff]
    %v2489 = vld [vmem:[%s13 + $0x68] sm:$0xff]
    %v2490 = vld [vmem:[%s13 + $0x70] sm:$0xff]
    %v2491 = vld [vmem:[%s13 + $0x78] sm:$0xff]
    %v2492 = vld [vmem:[%s14] sm:$0x1]
    %v2494 = vlaneseq
    %v2495 = vshrl.u32 %v2494, 7
    %v2496 = vsub.s32 0, %v2495
    %v2497 = vrot.slane %v2492, %v2496
    %2499 = vmatprep.subr.mxu0 0.0
    %2500 = vmatpush1.msra.mxu0 %v2491
    %2501 = vmatprep.subr.mxu0 0.0
    %2502 = vmatpush1.msra.mxu0 %v2490
    %2503 = vmatprep.subr.mxu0 0.0
    %2504 = vmatpush1.msra.mxu0 %v2489
    %2505 = vmatprep.subr.mxu0 0.0
    %2506 = vmatpush1.msra.mxu0 %v2488
    %2507 = vmatprep.subr.mxu0 0.0
    %2508 = vmatpush1.msra.mxu0 %v2487
    %2509 = vmatprep.subr.mxu0 0.0
    %2510 = vmatpush1.msra.mxu0 %v2486
    %2511 = vmatprep.subr.mxu0 0.0
    %2512 = vmatpush1.msra.mxu0 %v2485
    %2513 = vmatprep.subr.mxu0 0.0
    %2514 = vmatpush1.msra.mxu0 %v2484
    %2515 = vmatprep.subr.mxu0 0.0
    %2516 = vmatpush1.msra.mxu0 %v2483
    %2517 = vmatprep.subr.mxu0 0.0
    %2518 = vmatpush1.msra.mxu0 %v2482
    %2519 = vmatprep.subr.mxu0 0.0
    %2520 = vmatpush1.msra.mxu0 %v2481
    %2521 = vmatprep.subr.mxu0 0.0
    %2522 = vmatpush1.msra.mxu0 %v2480
    %2523 = vmatprep.subr.mxu0 0.0
    %2524 = vmatpush1.msra.mxu0 %v2479
    %2525 = vmatprep.subr.mxu0 0.0
    %2526 = vmatpush1.msra.mxu0 %v2478
    %2527 = vmatprep.subr.mxu0 0.0
    %2528 = vmatpush1.msra.mxu0 %v2477
    %2529 = vmatprep.subr.mxu0 0.0
    %2530 = vmatpush1.msra.mxu0 %v2476
    %2531 = vmatprep.subr.mxu0 0.0
    %2532 = vmatpush2.msra.mxu0 0.0
    %2533 = vmatprep.subr.mxu0 0.0
    %2534 = vmatpush2.msra.mxu0 0.0
    %2535 = vmatprep.subr.mxu0 0.0
    %2536 = vmatpush2.msra.mxu0 0.0
    %2537 = vmatprep.subr.mxu0 0.0
    %2538 = vmatpush2.msra.mxu0 0.0
    %2539 = vmatprep.subr.mxu0 0.0
    %2540 = vmatpush2.msra.mxu0 0.0
    %2541 = vmatprep.subr.mxu0 0.0
    %2542 = vmatpush2.msra.mxu0 0.0
    %2543 = vmatprep.subr.mxu0 0.0
    %2544 = vmatpush2.msra.mxu0 0.0
    %2545 = vmatprep.subr.mxu0 0.0
    %2546 = vmatpush2.msra.mxu0 0.0
    %2547 = vmatprep.subr.mxu0 0.0
    %2548 = vmatpush2.msra.mxu0 0.0
    %2549 = vmatprep.subr.mxu0 0.0
    %2550 = vmatpush2.msra.mxu0 0.0
    %2551 = vmatprep.subr.mxu0 0.0
    %2552 = vmatpush2.msra.mxu0 0.0
    %2553 = vmatprep.subr.mxu0 0.0
    %2554 = vmatpush2.msra.mxu0 0.0
    %2555 = vmatprep.subr.mxu0 0.0
    %2556 = vmatpush2.msra.mxu0 0.0
    %2557 = vmatprep.subr.mxu0 0.0
    %2558 = vmatpush2.msra.mxu0 0.0
    %2559 = vmatprep.subr.mxu0 0.0
    %2560 = vmatpush2.msra.mxu0 0.0
    %2561 = vmatprep.subr.mxu0 0.0
    %2562 = vmatpush2.msra.mxu0 0.0
    %2563 = vmatprep.mubr.f32.mxu0 0.0
    %2564 = vmatmul.mubr.f32.gmra.mxu0 %v2474
    %v2565 = vpop.f32.mrf.mxu0
    %v2566 = vadd.f32 %v2497, %v2565
    %v2567 = vpop.f32.mrf.mxu0
    %2568 = vmatprep.mubr.f32.mxu0 0.0
    %2569 = vmatmul.mubr.f32.gmra.mxu0 %v2475
    %v2570 = vpop.f32.mrf.mxu0
    %v2571 = vadd.f32 %v2497, %v2570
    %v2572 = vpop.f32.mrf.mxu0
    %2573 = vdwg.mxu0
    %v2574 = vadd.f32 %v2315, %v2566
    %v2575 = vadd.f32 %v2316, %v2571
    %2576 = vst.msk [vmem:[#allocation5] sm:$0xff] %vm162, %v2574
    %2577 = vst.msk [vmem:[#allocation5 + $0x8] sm:$0xff] %vm162, %v2575
    // Predicated region
    $region66: #{tpu_custom_call.1} parent=1 // pred_check
      _
    $region67: #{tpu_custom_call.1} parent=1 // pred_check_branch
      %2579 = sbr.rel (0) target = $region69
    $region68: #{tpu_custom_call.1} parent=1 // pred_region
      %s2581 = ssub.s32 256, 256
      %2582 = vsyncadd [#allocation4], %s2581
      %s2583 = sshll.u32 [#allocation5], 4
      %s2584 = int_to_ptr.vmem [resolvable:$true] %s2583
      %2589 = dma.vmem_to_hbm [thread:$0]  %s2584, 256, %s15, [#allocation4], 128, 128, 8
    $region69: #{tpu_custom_call.1} parent=1 // pred_fallthru
      _
    // Predicated region
    $region70: #{tpu_custom_call.1} parent=1 // pred_check
      _
    $region71: #{tpu_custom_call.1} parent=1 // pred_check_branch
      %2591 = sbr.rel (0) target = $region73
    $region72: #{tpu_custom_call.1} parent=1 // pred_region
      %2592 = dma.done [#allocation4], 256
    $region73: #{tpu_custom_call.1} parent=1 // pred_fallthru
      _
    %2593 = vsyncpa [#allocation3], 1
    %2594 = vsyncpa [#allocation4], 1

</llo_original>
